<compile_context>
chip_gen: v5e
topology: v5e:2x2
jax: 0.10.0
libtpu: 0.0.40
codegen_flags: <defaults>
</compile_context>

<pallas_src>
import functools

import jax
import jax.numpy as jnp
from jax.experimental import pallas as pl
from jax.experimental.pallas import tpu as pltpu


def _vmem_limit_bytes():
    # Re-derive scoped-VMEM budget per generation (v7x: 64 MiB physical).
    try:
        cap = pltpu.get_tpu_info().vmem_capacity_bytes
        return min(int(cap) * 3 // 5, 80 * 1024 * 1024)
    except Exception:  # pragma: no cover - defensive fallback
        return 32 * 1024 * 1024


_VMEM_LIMIT = _vmem_limit_bytes()


# ----------------------------------------------------------------------------
# Fused input projection (transpose folded in):
#   reads native (B, Din, S), contracts over Din -> (S, D), adds bias + PE.
# ----------------------------------------------------------------------------
def _input_fc_kernel(x_ref, w_ref, b_ref, pe_ref, o_ref):
    x = x_ref[0].astype(jnp.bfloat16)                        # (Din, S), lane-dense S
    # Contract over Din (axis 0 of both operands) -> (S, D); free MXU transpose.
    h = jax.lax.dot_general(x, w_ref[...], (((0,), (0,)), ((), ())),
                            preferred_element_type=jnp.float32)
    o_ref[0] = h + b_ref[...] + pe_ref[...]                  # bias + PE fused


def input_fc(x, w_bf16, b, pe):
    bsz, din, s = x.shape
    d = w_bf16.shape[1]
    return pl.pallas_call(
        _input_fc_kernel,
        out_shape=jax.ShapeDtypeStruct((bsz, s, d), jnp.float32),
        grid=(bsz,),
        in_specs=[
            pl.BlockSpec((1, din, s), lambda b: (b, 0, 0)),
            pl.BlockSpec((din, d), lambda b: (0, 0)),
            pl.BlockSpec((1, d), lambda b: (0, 0)),
            pl.BlockSpec((s, d), lambda b: (0, 0)),
        ],
        out_specs=pl.BlockSpec((1, s, d), lambda b: (b, 0, 0)),
        compiler_params=pltpu.CompilerParams(
            dimension_semantics=("parallel",), vmem_limit_bytes=_VMEM_LIMIT),
    )(x, w_bf16, b, pe)


# ----------------------------------------------------------------------------
# Fully fused pre-norm encoder layer, one pallas_call per layer:
#   grid = (B, S // TQ)
#   qi == 0 : LN1(x) and fused QKV projection -> persistent bf16 VMEM scratch
#   each qi : per-head attention on a (TQ, S) score tile (mask from lens),
#             per-head Wo accumulation, residual, LN2, W1+ReLU, W2, residual.
# ----------------------------------------------------------------------------
def _encoder_layer_kernel(lens_ref, x_ref, wqkv_ref, bqkv_ref, wo_ref, bo_ref,
                          ln1g_ref, ln1b_ref, ln2g_ref, ln2b_ref,
                          w1_ref, b1_ref, w2_ref, b2_ref,
                          o_ref, qkv_scr, *, num_heads, tq):
    b = pl.program_id(0)
    qi = pl.program_id(1)
    s = x_ref.shape[1]
    d = x_ref.shape[2]
    dh = d // num_heads

    # --- once per batch element: LN1 + fused QKV projection into bf16 scratch
    @pl.when(qi == 0)
    def _():
        x_full = x_ref[0]                                    # (S, D) f32
        mean = jnp.mean(x_full, axis=-1, keepdims=True)
        var = jnp.mean(jnp.square(x_full - mean), axis=-1, keepdims=True)
        xn = ((x_full - mean) * jax.lax.rsqrt(var + 1e-5)
              * ln1g_ref[...] + ln1b_ref[...])
        qkv = jax.lax.dot_general(
            xn.astype(jnp.bfloat16), wqkv_ref[...],
            (((1,), (0,)), ((), ())),
            preferred_element_type=jnp.float32) + bqkv_ref[...]   # (S, 3D)
        qkv_scr[...] = qkv.astype(jnp.bfloat16)              # single bf16 cast

    q_start = pl.multiple_of(qi * tq, tq)
    x_q = x_ref[0, pl.ds(q_start, tq), :]                    # (TQ, D) f32 residual
    q_all = qkv_scr[pl.ds(q_start, tq), :]                   # (TQ, 3D) bf16

    # Key-padding mask as a single (1, S) boolean row (broadcast over queries).
    key_pos = jax.lax.broadcasted_iota(jnp.int32, (1, s), 1)
    pad = key_pos >= lens_ref[b]

    scale = 1.0 / (float(dh) ** 0.5)
    attn_out = jnp.zeros((tq, d), jnp.float32)
    for h in range(num_heads):                               # static unroll
        qh = q_all[:, h * dh:(h + 1) * dh]                             # bf16
        kh = qkv_scr[:, d + h * dh:d + (h + 1) * dh]                   # (S, dh) bf16
        vh = qkv_scr[:, 2 * d + h * dh:2 * d + (h + 1) * dh]           # (S, dh) bf16
        sc = jax.lax.dot_general(qh, kh, (((1,), (1,)), ((), ())),
                                 preferred_element_type=jnp.float32) * scale
        sc = jnp.where(pad, -1e9, sc)                        # (TQ, S)
        m = jnp.max(sc, axis=-1, keepdims=True)
        p = jnp.exp(sc - m)
        p = p / jnp.sum(p, axis=-1, keepdims=True)           # exact softmax
        ctx = jax.lax.dot_general(p.astype(jnp.bfloat16), vh,
                                  (((1,), (0,)), ((), ())),
                                  preferred_element_type=jnp.float32)  # (TQ, dh)
        # Per-head output projection accumulation (no lane-axis concatenate).
        attn_out = attn_out + jax.lax.dot_general(
            ctx.astype(jnp.bfloat16), wo_ref[h * dh:(h + 1) * dh, :],
            (((1,), (0,)), ((), ())), preferred_element_type=jnp.float32)

    h1 = x_q + attn_out + bo_ref[...]                        # residual 1

    # --- fused FFN sub-block on the same (TQ, D) tile
    mean2 = jnp.mean(h1, axis=-1, keepdims=True)
    var2 = jnp.mean(jnp.square(h1 - mean2), axis=-1, keepdims=True)
    hn = ((h1 - mean2) * jax.lax.rsqrt(var2 + 1e-5)
          * ln2g_ref[...] + ln2b_ref[...])
    f = jax.lax.dot_general(hn.astype(jnp.bfloat16), w1_ref[...],
                            (((1,), (0,)), ((), ())),
                            preferred_element_type=jnp.float32) + b1_ref[...]
    f = jnp.maximum(f, 0.0)
    f = jax.lax.dot_general(f.astype(jnp.bfloat16), w2_ref[...],
                            (((1,), (0,)), ((), ())),
                            preferred_element_type=jnp.float32) + b2_ref[...]
    o_ref[0] = h1 + f                                        # residual 2


def _q_tile(s):
    for t in (256, 128, 64, 32, 16, 8):
        if s % t == 0:
            return t
    return s


def encoder_layer(x, lens, lp, num_heads):
    bsz, s, d = x.shape
    dff = lp["w1"].shape[1]
    tq = _q_tile(s)
    kernel = functools.partial(_encoder_layer_kernel, num_heads=num_heads, tq=tq)
    cexpr = lambda b, qi, lens: (0, 0)        # resident weights / params
    return pl.pallas_call(
        kernel,
        out_shape=jax.ShapeDtypeStruct((bsz, s, d), jnp.float32),
        grid_spec=pltpu.PrefetchScalarGridSpec(
            num_scalar_prefetch=1,
            grid=(bsz, s // tq),
            in_specs=[
                pl.BlockSpec((1, s, d), lambda b, qi, lens: (b, 0, 0)),   # x
                pl.BlockSpec((d, 3 * d), cexpr),                          # wqkv
                pl.BlockSpec((1, 3 * d), cexpr),                          # bqkv
                pl.BlockSpec((d, d), cexpr),                              # wo
                pl.BlockSpec((1, d), cexpr),                              # bo
                pl.BlockSpec((1, d), cexpr),                              # ln1 gamma
                pl.BlockSpec((1, d), cexpr),                              # ln1 beta
                pl.BlockSpec((1, d), cexpr),                              # ln2 gamma
                pl.BlockSpec((1, d), cexpr),                              # ln2 beta
                pl.BlockSpec((d, dff), cexpr),                            # w1
                pl.BlockSpec((1, dff), cexpr),                            # b1
                pl.BlockSpec((dff, d), cexpr),                            # w2
                pl.BlockSpec((1, d), cexpr),                              # b2
            ],
            out_specs=pl.BlockSpec((1, tq, d), lambda b, qi, lens: (b, qi, 0)),
            scratch_shapes=[pltpu.VMEM((s, 3 * d), jnp.bfloat16)],
        ),
        compiler_params=pltpu.CompilerParams(
            dimension_semantics=("parallel", "arbitrary"),
            vmem_limit_bytes=_VMEM_LIMIT),
    )(lens, x, lp["wqkv"], lp["bqkv"], lp["wo"], lp["bo"],
      lp["ln1_g"], lp["ln1_b"], lp["ln2_g"], lp["ln2_b"],
      lp["w1"], lp["b1"], lp["w2"], lp["b2"])


# ----------------------------------------------------------------------------
# Model glue (plain JAX): parameters, positional encoding, layer loop
# ----------------------------------------------------------------------------
def sinusoidal_positional_encoding(seq_len, d_model):
    pos = jnp.arange(seq_len, dtype=jnp.float32)[:, None]
    i = jnp.arange(0, d_model, 2, dtype=jnp.float32)[None, :]
    angle = pos / jnp.power(10000.0, i / float(d_model))
    pe = jnp.zeros((seq_len, d_model), dtype=jnp.float32)
    pe = pe.at[:, 0::2].set(jnp.sin(angle))
    pe = pe.at[:, 1::2].set(jnp.cos(angle))
    return pe                                                # (S, D)


def init_params(key, input_size, model_dim, ff_dim, num_layers):
    def dense(k, fan_in, fan_out):
        w = jax.random.normal(k, (fan_in, fan_out), jnp.float32) * 0.02
        return w.astype(jnp.bfloat16)                        # bf16 MXU weights

    keys = jax.random.split(key, 1 + num_layers)
    params = {
        "fc_w": dense(keys[0], input_size, model_dim),
        "fc_b": jnp.zeros((1, model_dim), jnp.float32),
        "layers": [],
    }
    for l in range(num_layers):
        ks = jax.random.split(keys[1 + l], 6)
        wq = dense(ks[0], model_dim, model_dim)
        wk = dense(ks[1], model_dim, model_dim)
        wv = dense(ks[2], model_dim, model_dim)
        params["layers"].append(
            {
                "ln1_g": jnp.ones((1, model_dim), jnp.float32),
                "ln1_b": jnp.zeros((1, model_dim), jnp.float32),
                "wqkv": jnp.concatenate([wq, wk, wv], axis=1),   # (D, 3D) bf16
                "bqkv": jnp.zeros((1, 3 * model_dim), jnp.float32),
                "wo": dense(ks[3], model_dim, model_dim),
                "bo": jnp.zeros((1, model_dim), jnp.float32),
                "ln2_g": jnp.ones((1, model_dim), jnp.float32),
                "ln2_b": jnp.zeros((1, model_dim), jnp.float32),
                "w1": dense(ks[4], model_dim, ff_dim),
                "b1": jnp.zeros((1, ff_dim), jnp.float32),
                "w2": dense(ks[5], ff_dim, model_dim),
                "b2": jnp.zeros((1, model_dim), jnp.float32),
            }
        )
    return params


def transducer_audio_encoder(inputs, inputs_lens, params, num_heads):
    # inputs: (B, D_in, S) float32 ; inputs_lens: (B,) int32
    b, din, s = inputs.shape
    d = params["fc_w"].shape[1]
    lens = inputs_lens.astype(jnp.int32)

    pe = sinusoidal_positional_encoding(s, d)                # (S, D)
    # transpose folded into the kernel; fc + bias + PE fused
    h = input_fc(inputs, params["fc_w"], params["fc_b"], pe)
    # input dropout == identity (eval)

    for lp in params["layers"]:
        h = encoder_layer(h, lens, lp, num_heads)            # one pallas_call/layer
    return h                                                 # (B, S, D)


# ----------------------------------------------------------------------------
if __name__ == "__main__":
    # Small, module-consistent shapes (real perf should be measured at
    # D >= 128 and S a multiple of 128 so all blocks are lane-dense).
    B = 2
    INPUT_SIZE = 16      # "input_size"
    MODEL_DIM = 32       # "model_dim"
    FF_DIM = 64          # "ff_dim"
    NUM_LAYERS = 2       # "num_layers"
    NUM_HEADS = 4        # "num_heads"
    SEQ_LEN = 8

    key = jax.random.PRNGKey(0)
    k_in, k_par = jax.random.split(key)

    inputs = jax.random.normal(k_in, (B, INPUT_SIZE, SEQ_LEN), jnp.float32)
    inputs_lens = jnp.array([SEQ_LEN, 5], dtype=jnp.int32)

    params = init_params(k_par, INPUT_SIZE, MODEL_DIM, FF_DIM, NUM_LAYERS)

    fwd = jax.jit(functools.partial(transducer_audio_encoder, num_heads=NUM_HEADS))
    out = fwd(inputs, inputs_lens, params)
    out = jax.block_until_ready(out)

    assert out.shape == (B, SEQ_LEN, MODEL_DIM), out.shape
    assert bool(jnp.all(jnp.isfinite(out)))
    print("KERNEL_OK")
</pallas_src>

<mosaic_0001>
module attributes {stable_mosaic.version = 11 : i64} {
  func.func @_input_fc_kernel(%arg0: i32, %arg1: memref<1x16x8xf32, #tpu.memory_space<vmem>>, %arg2: memref<16x32xbf16, #tpu.memory_space<vmem>>, %arg3: memref<1x32xf32, #tpu.memory_space<vmem>>, %arg4: memref<8x32xf32, #tpu.memory_space<vmem>>, %arg5: memref<1x8x32xf32, #tpu.memory_space<vmem>>) attributes {dimension_semantics = [#tpu.dimension_semantics<parallel>], iteration_bounds = array<i64: 2>, scalar_prefetch = 0 : i64, scratch_operands = 0 : i64, tpu.core_type = #tpu.core_type<tc>, window_params = [{transform_indices = @transform_0, window_bounds = array<i64: 1, 16, 8>}, {pipeline_mode = #tpu.pipeline_mode<synchronous>, transform_indices = @transform_1, window_bounds = array<i64: 16, 32>}, {pipeline_mode = #tpu.pipeline_mode<synchronous>, transform_indices = @transform_2, window_bounds = array<i64: 1, 32>}, {pipeline_mode = #tpu.pipeline_mode<synchronous>, transform_indices = @transform_3, window_bounds = array<i64: 8, 32>}, {transform_indices = @transform_4, window_bounds = array<i64: 1, 8, 32>}]} {
    %c0 = arith.constant 0 : index
    %c0_0 = arith.constant 0 : index
    %c0_1 = arith.constant 0 : index
    %0 = vector.load %arg1[%c0, %c0_0, %c0_1] : memref<1x16x8xf32, #tpu.memory_space<vmem>>, vector<1x16x8xf32>
    %1 = vector.shape_cast %0 : vector<1x16x8xf32> to vector<16x8xf32>
    %2 = arith.truncf %1 : vector<16x8xf32> to vector<16x8xbf16>
    %c0_2 = arith.constant 0 : index
    %c0_3 = arith.constant 0 : index
    %3 = vector.load %arg2[%c0_2, %c0_3] : memref<16x32xbf16, #tpu.memory_space<vmem>>, vector<16x32xbf16>
    %cst = arith.constant dense<0.000000e+00> : vector<8x32xf32>
    %4 = tpu.matmul %2, %3, %cst {dimension_numbers = #tpu.dot_dimension_numbers<[0], [0], [1], [1], [0, 1, 1, 1], [], []>} : vector<16x8xbf16>, vector<16x32xbf16>, vector<8x32xf32> -> vector<8x32xf32>
    %c0_4 = arith.constant 0 : index
    %c0_5 = arith.constant 0 : index
    %5 = vector.load %arg3[%c0_4, %c0_5] : memref<1x32xf32, #tpu.memory_space<vmem>>, vector<1x32xf32>
    %6 = vector.broadcast %5 : vector<1x32xf32> to vector<8x32xf32>
    %7 = arith.addf %4, %6 : vector<8x32xf32>
    %c0_6 = arith.constant 0 : index
    %c0_7 = arith.constant 0 : index
    %8 = vector.load %arg4[%c0_6, %c0_7] : memref<8x32xf32, #tpu.memory_space<vmem>>, vector<8x32xf32>
    %9 = arith.addf %7, %8 : vector<8x32xf32>
    %c0_8 = arith.constant 0 : index
    %c0_9 = arith.constant 0 : index
    %c0_10 = arith.constant 0 : index
    %10 = vector.load %arg5[%c0_8, %c0_9, %c0_10] : memref<1x8x32xf32, #tpu.memory_space<vmem>>, vector<1x8x32xf32>
    %11 = vector.shape_cast %10 : vector<1x8x32xf32> to vector<8x32xf32>
    %12 = vector.shape_cast %9 : vector<8x32xf32> to vector<1x8x32xf32>
    tpu.vector_store %arg5[%c0_8, %c0_9, %c0_10], %12 {strides = array<i32>} : memref<1x8x32xf32, #tpu.memory_space<vmem>>, vector<1x8x32xf32>,
    return
  }
  func.func @transform_0(%arg0: i32) -> (i32, i32, i32) {
    %c0_i32 = arith.constant 0 : i32
    %c0_i32_0 = arith.constant 0 : i32
    %c0_i32_1 = arith.constant 0 : i32
    return %arg0, %c0_i32, %c0_i32_0 : i32, i32, i32
  }
  func.func @transform_1(%arg0: i32) -> (i32, i32) {
    %c0_i32 = arith.constant 0 : i32
    %c0_i32_0 = arith.constant 0 : i32
    %c0_i32_1 = arith.constant 0 : i32
    return %c0_i32, %c0_i32_0 : i32, i32
  }
  func.func @transform_2(%arg0: i32) -> (i32, i32) {
    %c0_i32 = arith.constant 0 : i32
    %c0_i32_0 = arith.constant 0 : i32
    %c0_i32_1 = arith.constant 0 : i32
    return %c0_i32, %c0_i32_0 : i32, i32
  }
  func.func @transform_3(%arg0: i32) -> (i32, i32) {
    %c0_i32 = arith.constant 0 : i32
    %c0_i32_0 = arith.constant 0 : i32
    %c0_i32_1 = arith.constant 0 : i32
    return %c0_i32, %c0_i32_0 : i32, i32
  }
  func.func @transform_4(%arg0: i32) -> (i32, i32, i32) {
    %c0_i32 = arith.constant 0 : i32
    %c0_i32_0 = arith.constant 0 : i32
    %c0_i32_1 = arith.constant 0 : i32
    return %arg0, %c0_i32, %c0_i32_0 : i32, i32, i32
  }
}

module attributes {stable_mosaic.version = 11 : i64} {
  func.func @_encoder_layer_kernel(%arg0: i32, %arg1: i32, %arg2: memref<2xi32, #tpu.memory_space<smem>>, %arg3: memref<1x8x32xf32, #tpu.memory_space<vmem>>, %arg4: memref<32x96xbf16, #tpu.memory_space<vmem>>, %arg5: memref<1x96xf32, #tpu.memory_space<vmem>>, %arg6: memref<32x32xbf16, #tpu.memory_space<vmem>>, %arg7: memref<1x32xf32, #tpu.memory_space<vmem>>, %arg8: memref<1x32xf32, #tpu.memory_space<vmem>>, %arg9: memref<1x32xf32, #tpu.memory_space<vmem>>, %arg10: memref<1x32xf32, #tpu.memory_space<vmem>>, %arg11: memref<1x32xf32, #tpu.memory_space<vmem>>, %arg12: memref<32x64xbf16, #tpu.memory_space<vmem>>, %arg13: memref<1x64xf32, #tpu.memory_space<vmem>>, %arg14: memref<64x32xbf16, #tpu.memory_space<vmem>>, %arg15: memref<1x32xf32, #tpu.memory_space<vmem>>, %arg16: memref<1x8x32xf32, #tpu.memory_space<vmem>>, %arg17: memref<8x96xbf16, #tpu.memory_space<vmem>>) attributes {dimension_semantics = [#tpu.dimension_semantics<parallel>, #tpu.dimension_semantics<arbitrary>], iteration_bounds = array<i64: 2, 1>, scalar_prefetch = 1 : i64, scratch_operands = 1 : i64, tpu.core_type = #tpu.core_type<tc>, window_params = [{transform_indices = @transform_0, window_bounds = array<i64: 1, 8, 32>}, {pipeline_mode = #tpu.pipeline_mode<synchronous>, transform_indices = @transform_1, window_bounds = array<i64: 32, 96>}, {pipeline_mode = #tpu.pipeline_mode<synchronous>, transform_indices = @transform_2, window_bounds = array<i64: 1, 96>}, {pipeline_mode = #tpu.pipeline_mode<synchronous>, transform_indices = @transform_3, window_bounds = array<i64: 32, 32>}, {pipeline_mode = #tpu.pipeline_mode<synchronous>, transform_indices = @transform_4, window_bounds = array<i64: 1, 32>}, {pipeline_mode = #tpu.pipeline_mode<synchronous>, transform_indices = @transform_5, window_bounds = array<i64: 1, 32>}, {pipeline_mode = #tpu.pipeline_mode<synchronous>, transform_indices = @transform_6, window_bounds = array<i64: 1, 32>}, {pipeline_mode = #tpu.pipeline_mode<synchronous>, transform_indices = @transform_7, window_bounds = array<i64: 1, 32>}, {pipeline_mode = #tpu.pipeline_mode<synchronous>, transform_indices = @transform_8, window_bounds = array<i64: 1, 32>}, {pipeline_mode = #tpu.pipeline_mode<synchronous>, transform_indices = @transform_9, window_bounds = array<i64: 32, 64>}, {pipeline_mode = #tpu.pipeline_mode<synchronous>, transform_indices = @transform_10, window_bounds = array<i64: 1, 64>}, {pipeline_mode = #tpu.pipeline_mode<synchronous>, transform_indices = @transform_11, window_bounds = array<i64: 64, 32>}, {pipeline_mode = #tpu.pipeline_mode<synchronous>, transform_indices = @transform_12, window_bounds = array<i64: 1, 32>}, {transform_indices = @transform_13, window_bounds = array<i64: 1, 8, 32>}]} {
    %c0_i32 = arith.constant 0 : i32
    %0 = arith.cmpi eq, %arg1, %c0_i32 : i32
    %1 = arith.extui %0 : i1 to i32
    %c0_i32_0 = arith.constant 0 : i32
    %2 = arith.cmpi ne, %1, %c0_i32_0 : i32
    scf.if %2 {
      %c0_69 = arith.constant 0 : index
      %c0_70 = arith.constant 0 : index
      %c0_71 = arith.constant 0 : index
      %162 = vector.load %arg3[%c0_69, %c0_70, %c0_71] : memref<1x8x32xf32, #tpu.memory_space<vmem>>, vector<1x8x32xf32>
      %163 = vector.shape_cast %162 : vector<1x8x32xf32> to vector<8x32xf32>
      %cst_72 = arith.constant dense<0.000000e+00> : vector<8xf32>
      %164 = vector.multi_reduction <add>, %163, %cst_72 [1] : vector<8x32xf32> to vector<8xf32>
      %165 = vector.shape_cast %164 : vector<8xf32> to vector<8x1xf32>
      %cst_73 = arith.constant 3.200000e+01 : f32
      %166 = vector.broadcast %cst_73 : f32 to vector<8x1xf32>
      %167 = arith.divf %165, %166 : vector<8x1xf32>
      %168 = vector.broadcast %167 : vector<8x1xf32> to vector<8x32xf32>
      %169 = arith.subf %163, %168 : vector<8x32xf32>
      %170 = arith.mulf %169, %169 : vector<8x32xf32>
      %cst_74 = arith.constant dense<0.000000e+00> : vector<8xf32>
      %171 = vector.multi_reduction <add>, %170, %cst_74 [1] : vector<8x32xf32> to vector<8xf32>
      %172 = vector.shape_cast %171 : vector<8xf32> to vector<8x1xf32>
      %cst_75 = arith.constant 3.200000e+01 : f32
      %173 = vector.broadcast %cst_75 : f32 to vector<8x1xf32>
      %174 = arith.divf %172, %173 : vector<8x1xf32>
      %175 = vector.broadcast %167 : vector<8x1xf32> to vector<8x32xf32>
      %176 = arith.subf %163, %175 : vector<8x32xf32>
      %cst_76 = arith.constant 9.99999974E-6 : f32
      %177 = vector.broadcast %cst_76 : f32 to vector<8x1xf32>
      %178 = arith.addf %174, %177 : vector<8x1xf32>
      %179 = math.rsqrt %178 : vector<8x1xf32>
      %180 = vector.broadcast %179 : vector<8x1xf32> to vector<8x32xf32>
      %181 = arith.mulf %176, %180 : vector<8x32xf32>
      %c0_77 = arith.constant 0 : index
      %c0_78 = arith.constant 0 : index
      %182 = vector.load %arg8[%c0_77, %c0_78] : memref<1x32xf32, #tpu.memory_space<vmem>>, vector<1x32xf32>
      %183 = vector.broadcast %182 : vector<1x32xf32> to vector<8x32xf32>
      %184 = arith.mulf %181, %183 : vector<8x32xf32>
      %c0_79 = arith.constant 0 : index
      %c0_80 = arith.constant 0 : index
      %185 = vector.load %arg9[%c0_79, %c0_80] : memref<1x32xf32, #tpu.memory_space<vmem>>, vector<1x32xf32>
      %186 = vector.broadcast %185 : vector<1x32xf32> to vector<8x32xf32>
      %187 = arith.addf %184, %186 : vector<8x32xf32>
      %188 = arith.truncf %187 : vector<8x32xf32> to vector<8x32xbf16>
      %c0_81 = arith.constant 0 : index
      %c0_82 = arith.constant 0 : index
      %189 = vector.load %arg4[%c0_81, %c0_82] : memref<32x96xbf16, #tpu.memory_space<vmem>>, vector<32x96xbf16>
      %cst_83 = arith.constant dense<0.000000e+00> : vector<8x96xf32>
      %190 = tpu.matmul %188, %189, %cst_83 {dimension_numbers = #tpu.dot_dimension_numbers<[1], [0], [0], [1], [0, 0, 1, 1], [], []>} : vector<8x32xbf16>, vector<32x96xbf16>, vector<8x96xf32> -> vector<8x96xf32>
      %c0_84 = arith.constant 0 : index
      %c0_85 = arith.constant 0 : index
      %191 = vector.load %arg5[%c0_84, %c0_85] : memref<1x96xf32, #tpu.memory_space<vmem>>, vector<1x96xf32>
      %192 = vector.broadcast %191 : vector<1x96xf32> to vector<8x96xf32>
      %193 = arith.addf %190, %192 : vector<8x96xf32>
      %194 = arith.truncf %193 : vector<8x96xf32> to vector<8x96xbf16>
      %c0_86 = arith.constant 0 : index
      %c0_87 = arith.constant 0 : index
      %195 = vector.load %arg17[%c0_86, %c0_87] : memref<8x96xbf16, #tpu.memory_space<vmem>>, vector<8x96xbf16>
      tpu.vector_store %arg17[%c0_86, %c0_87], %194 {strides = array<i32>} : memref<8x96xbf16, #tpu.memory_space<vmem>>, vector<8x96xbf16>,
    } else {
    }
    %c8_i32 = arith.constant 8 : i32
    %3 = arith.muli %arg1, %c8_i32 : i32
    %4 = tpu.assume_multiple %3, 8 : i32
    %c0 = arith.constant 0 : index
    %5 = arith.index_cast %4 : i32 to index
    %c0_1 = arith.constant 0 : index
    %6 = vector.load %arg3[%c0, %5, %c0_1] : memref<1x8x32xf32, #tpu.memory_space<vmem>>, vector<1x8x32xf32>
    %7 = vector.shape_cast %6 : vector<1x8x32xf32> to vector<8x32xf32>
    %8 = arith.index_cast %4 : i32 to index
    %c0_2 = arith.constant 0 : index
    %9 = vector.load %arg17[%8, %c0_2] : memref<8x96xbf16, #tpu.memory_space<vmem>>, vector<8x96xbf16>
    %10 = tpu.iota {dimensions = array<i32: 1>} : vector<1x8xi32>
    %11 = arith.index_cast %arg0 : i32 to index
    %12 = memref.load %arg2[%11] : memref<2xi32, #tpu.memory_space<smem>>
    %13 = vector.broadcast %12 : i32 to vector<1x8xi32>
    %14 = arith.cmpi sge, %10, %13 : vector<1x8xi32>
    %cst = arith.constant 0.000000e+00 : f32
    %15 = vector.broadcast %cst : f32 to vector<8x32xf32>
    %16 = vector.extract_strided_slice %9 {offsets = [0, 0], sizes = [8, 8], strides = [1, 1]} : vector<8x96xbf16> to vector<8x8xbf16>
    %c0_3 = arith.constant 0 : index
    %c32 = arith.constant 32 : index
    %17 = vector.load %arg17[%c0_3, %c32] : memref<8x96xbf16, #tpu.memory_space<vmem>>, vector<8x8xbf16>
    %c0_4 = arith.constant 0 : index
    %c64 = arith.constant 64 : index
    %18 = vector.load %arg17[%c0_4, %c64] : memref<8x96xbf16, #tpu.memory_space<vmem>>, vector<8x8xbf16>
    %cst_5 = arith.constant dense<0.000000e+00> : vector<8x8xf32>
    %19 = tpu.matmul %16, %17, %cst_5 {dimension_numbers = #tpu.dot_dimension_numbers<[1], [1], [0], [0], [0, 0, 1, 0], [], []>} : vector<8x8xbf16>, vector<8x8xbf16>, vector<8x8xf32> -> vector<8x8xf32>
    %cst_6 = arith.constant 0.353553385 : f32
    %20 = vector.broadcast %cst_6 : f32 to vector<8x8xf32>
    %21 = arith.mulf %19, %20 : vector<8x8xf32>
    %cst_7 = arith.constant -1.000000e+09 : f32
    %22 = vector.shape_cast %14 : vector<1x8xi1> to vector<1x8xi1>
    %23 = vector.broadcast %22 : vector<1x8xi1> to vector<8x8xi1>
    %24 = vector.broadcast %cst_7 : f32 to vector<8x8xf32>
    %25 = arith.select %23, %24, %21 : vector<8x8xi1>, vector<8x8xf32>
    %cst_8 = arith.constant dense<0xFF800000> : vector<8xf32>
    %26 = vector.multi_reduction <maximumf>, %25, %cst_8 [1] : vector<8x8xf32> to vector<8xf32>
    %27 = vector.shape_cast %26 : vector<8xf32> to vector<8x1xf32>
    %28 = vector.broadcast %27 : vector<8x1xf32> to vector<8x8xf32>
    %29 = arith.subf %25, %28 : vector<8x8xf32>
    %30 = math.exp %29 : vector<8x8xf32>
    %cst_9 = arith.constant dense<0.000000e+00> : vector<8xf32>
    %31 = vector.multi_reduction <add>, %30, %cst_9 [1] : vector<8x8xf32> to vector<8xf32>
    %32 = vector.shape_cast %31 : vector<8xf32> to vector<8x1xf32>
    %33 = vector.broadcast %32 : vector<8x1xf32> to vector<8x8xf32>
    %34 = arith.divf %30, %33 : vector<8x8xf32>
    %35 = arith.truncf %34 : vector<8x8xf32> to vector<8x8xbf16>
    %cst_10 = arith.constant dense<0.000000e+00> : vector<8x8xf32>
    %36 = tpu.matmul %35, %18, %cst_10 {dimension_numbers = #tpu.dot_dimension_numbers<[1], [0], [0], [1], [0, 0, 1, 1], [], []>} : vector<8x8xbf16>, vector<8x8xbf16>, vector<8x8xf32> -> vector<8x8xf32>
    %37 = arith.truncf %36 : vector<8x8xf32> to vector<8x8xbf16>
    %c0_11 = arith.constant 0 : index
    %c0_12 = arith.constant 0 : index
    %38 = vector.load %arg6[%c0_11, %c0_12] : memref<32x32xbf16, #tpu.memory_space<vmem>>, vector<8x32xbf16>
    %cst_13 = arith.constant dense<0.000000e+00> : vector<8x32xf32>
    %39 = tpu.matmul %37, %38, %cst_13 {dimension_numbers = #tpu.dot_dimension_numbers<[1], [0], [0], [1], [0, 0, 1, 1], [], []>} : vector<8x8xbf16>, vector<8x32xbf16>, vector<8x32xf32> -> vector<8x32xf32>
    %40 = arith.addf %15, %39 : vector<8x32xf32>
    %41 = vector.extract_strided_slice %9 {offsets = [0, 8], sizes = [8, 8], strides = [1, 1]} : vector<8x96xbf16> to vector<8x8xbf16>
    %c0_14 = arith.constant 0 : index
    %c40 = arith.constant 40 : index
    %42 = vector.load %arg17[%c0_14, %c40] : memref<8x96xbf16, #tpu.memory_space<vmem>>, vector<8x8xbf16>
    %c0_15 = arith.constant 0 : index
    %c72 = arith.constant 72 : index
    %43 = vector.load %arg17[%c0_15, %c72] : memref<8x96xbf16, #tpu.memory_space<vmem>>, vector<8x8xbf16>
    %cst_16 = arith.constant dense<0.000000e+00> : vector<8x8xf32>
    %44 = tpu.matmul %41, %42, %cst_16 {dimension_numbers = #tpu.dot_dimension_numbers<[1], [1], [0], [0], [0, 0, 1, 0], [], []>} : vector<8x8xbf16>, vector<8x8xbf16>, vector<8x8xf32> -> vector<8x8xf32>
    %cst_17 = arith.constant 0.353553385 : f32
    %45 = vector.broadcast %cst_17 : f32 to vector<8x8xf32>
    %46 = arith.mulf %44, %45 : vector<8x8xf32>
    %cst_18 = arith.constant -1.000000e+09 : f32
    %47 = vector.shape_cast %14 : vector<1x8xi1> to vector<1x8xi1>
    %48 = vector.broadcast %47 : vector<1x8xi1> to vector<8x8xi1>
    %49 = vector.broadcast %cst_18 : f32 to vector<8x8xf32>
    %50 = arith.select %48, %49, %46 : vector<8x8xi1>, vector<8x8xf32>
    %cst_19 = arith.constant dense<0xFF800000> : vector<8xf32>
    %51 = vector.multi_reduction <maximumf>, %50, %cst_19 [1] : vector<8x8xf32> to vector<8xf32>
    %52 = vector.shape_cast %51 : vector<8xf32> to vector<8x1xf32>
    %53 = vector.broadcast %52 : vector<8x1xf32> to vector<8x8xf32>
    %54 = arith.subf %50, %53 : vector<8x8xf32>
    %55 = math.exp %54 : vector<8x8xf32>
    %cst_20 = arith.constant dense<0.000000e+00> : vector<8xf32>
    %56 = vector.multi_reduction <add>, %55, %cst_20 [1] : vector<8x8xf32> to vector<8xf32>
    %57 = vector.shape_cast %56 : vector<8xf32> to vector<8x1xf32>
    %58 = vector.broadcast %57 : vector<8x1xf32> to vector<8x8xf32>
    %59 = arith.divf %55, %58 : vector<8x8xf32>
    %60 = arith.truncf %59 : vector<8x8xf32> to vector<8x8xbf16>
    %cst_21 = arith.constant dense<0.000000e+00> : vector<8x8xf32>
    %61 = tpu.matmul %60, %43, %cst_21 {dimension_numbers = #tpu.dot_dimension_numbers<[1], [0], [0], [1], [0, 0, 1, 1], [], []>} : vector<8x8xbf16>, vector<8x8xbf16>, vector<8x8xf32> -> vector<8x8xf32>
    %62 = arith.truncf %61 : vector<8x8xf32> to vector<8x8xbf16>
    %c8 = arith.constant 8 : index
    %c0_22 = arith.constant 0 : index
    %63 = vector.load %arg6[%c8, %c0_22] : memref<32x32xbf16, #tpu.memory_space<vmem>>, vector<8x32xbf16>
    %cst_23 = arith.constant dense<0.000000e+00> : vector<8x32xf32>
    %64 = tpu.matmul %62, %63, %cst_23 {dimension_numbers = #tpu.dot_dimension_numbers<[1], [0], [0], [1], [0, 0, 1, 1], [], []>} : vector<8x8xbf16>, vector<8x32xbf16>, vector<8x32xf32> -> vector<8x32xf32>
    %65 = arith.addf %40, %64 : vector<8x32xf32>
    %66 = vector.extract_strided_slice %9 {offsets = [0, 16], sizes = [8, 8], strides = [1, 1]} : vector<8x96xbf16> to vector<8x8xbf16>
    %c0_24 = arith.constant 0 : index
    %c48 = arith.constant 48 : index
    %67 = vector.load %arg17[%c0_24, %c48] : memref<8x96xbf16, #tpu.memory_space<vmem>>, vector<8x8xbf16>
    %c0_25 = arith.constant 0 : index
    %c80 = arith.constant 80 : index
    %68 = vector.load %arg17[%c0_25, %c80] : memref<8x96xbf16, #tpu.memory_space<vmem>>, vector<8x8xbf16>
    %cst_26 = arith.constant dense<0.000000e+00> : vector<8x8xf32>
    %69 = tpu.matmul %66, %67, %cst_26 {dimension_numbers = #tpu.dot_dimension_numbers<[1], [1], [0], [0], [0, 0, 1, 0], [], []>} : vector<8x8xbf16>, vector<8x8xbf16>, vector<8x8xf32> -> vector<8x8xf32>
    %cst_27 = arith.constant 0.353553385 : f32
    %70 = vector.broadcast %cst_27 : f32 to vector<8x8xf32>
    %71 = arith.mulf %69, %70 : vector<8x8xf32>
    %cst_28 = arith.constant -1.000000e+09 : f32
    %72 = vector.shape_cast %14 : vector<1x8xi1> to vector<1x8xi1>
    %73 = vector.broadcast %72 : vector<1x8xi1> to vector<8x8xi1>
    %74 = vector.broadcast %cst_28 : f32 to vector<8x8xf32>
    %75 = arith.select %73, %74, %71 : vector<8x8xi1>, vector<8x8xf32>
    %cst_29 = arith.constant dense<0xFF800000> : vector<8xf32>
    %76 = vector.multi_reduction <maximumf>, %75, %cst_29 [1] : vector<8x8xf32> to vector<8xf32>
    %77 = vector.shape_cast %76 : vector<8xf32> to vector<8x1xf32>
    %78 = vector.broadcast %77 : vector<8x1xf32> to vector<8x8xf32>
    %79 = arith.subf %75, %78 : vector<8x8xf32>
    %80 = math.exp %79 : vector<8x8xf32>
    %cst_30 = arith.constant dense<0.000000e+00> : vector<8xf32>
    %81 = vector.multi_reduction <add>, %80, %cst_30 [1] : vector<8x8xf32> to vector<8xf32>
    %82 = vector.shape_cast %81 : vector<8xf32> to vector<8x1xf32>
    %83 = vector.broadcast %82 : vector<8x1xf32> to vector<8x8xf32>
    %84 = arith.divf %80, %83 : vector<8x8xf32>
    %85 = arith.truncf %84 : vector<8x8xf32> to vector<8x8xbf16>
    %cst_31 = arith.constant dense<0.000000e+00> : vector<8x8xf32>
    %86 = tpu.matmul %85, %68, %cst_31 {dimension_numbers = #tpu.dot_dimension_numbers<[1], [0], [0], [1], [0, 0, 1, 1], [], []>} : vector<8x8xbf16>, vector<8x8xbf16>, vector<8x8xf32> -> vector<8x8xf32>
    %87 = arith.truncf %86 : vector<8x8xf32> to vector<8x8xbf16>
    %c16 = arith.constant 16 : index
    %c0_32 = arith.constant 0 : index
    %88 = vector.load %arg6[%c16, %c0_32] : memref<32x32xbf16, #tpu.memory_space<vmem>>, vector<8x32xbf16>
    %cst_33 = arith.constant dense<0.000000e+00> : vector<8x32xf32>
    %89 = tpu.matmul %87, %88, %cst_33 {dimension_numbers = #tpu.dot_dimension_numbers<[1], [0], [0], [1], [0, 0, 1, 1], [], []>} : vector<8x8xbf16>, vector<8x32xbf16>, vector<8x32xf32> -> vector<8x32xf32>
    %90 = arith.addf %65, %89 : vector<8x32xf32>
    %91 = vector.extract_strided_slice %9 {offsets = [0, 24], sizes = [8, 8], strides = [1, 1]} : vector<8x96xbf16> to vector<8x8xbf16>
    %c0_34 = arith.constant 0 : index
    %c56 = arith.constant 56 : index
    %92 = vector.load %arg17[%c0_34, %c56] : memref<8x96xbf16, #tpu.memory_space<vmem>>, vector<8x8xbf16>
    %c0_35 = arith.constant 0 : index
    %c88 = arith.constant 88 : index
    %93 = vector.load %arg17[%c0_35, %c88] : memref<8x96xbf16, #tpu.memory_space<vmem>>, vector<8x8xbf16>
    %cst_36 = arith.constant dense<0.000000e+00> : vector<8x8xf32>
    %94 = tpu.matmul %91, %92, %cst_36 {dimension_numbers = #tpu.dot_dimension_numbers<[1], [1], [0], [0], [0, 0, 1, 0], [], []>} : vector<8x8xbf16>, vector<8x8xbf16>, vector<8x8xf32> -> vector<8x8xf32>
    %cst_37 = arith.constant 0.353553385 : f32
    %95 = vector.broadcast %cst_37 : f32 to vector<8x8xf32>
    %96 = arith.mulf %94, %95 : vector<8x8xf32>
    %cst_38 = arith.constant -1.000000e+09 : f32
    %97 = vector.shape_cast %14 : vector<1x8xi1> to vector<1x8xi1>
    %98 = vector.broadcast %97 : vector<1x8xi1> to vector<8x8xi1>
    %99 = vector.broadcast %cst_38 : f32 to vector<8x8xf32>
    %100 = arith.select %98, %99, %96 : vector<8x8xi1>, vector<8x8xf32>
    %cst_39 = arith.constant dense<0xFF800000> : vector<8xf32>
    %101 = vector.multi_reduction <maximumf>, %100, %cst_39 [1] : vector<8x8xf32> to vector<8xf32>
    %102 = vector.shape_cast %101 : vector<8xf32> to vector<8x1xf32>
    %103 = vector.broadcast %102 : vector<8x1xf32> to vector<8x8xf32>
    %104 = arith.subf %100, %103 : vector<8x8xf32>
    %105 = math.exp %104 : vector<8x8xf32>
    %cst_40 = arith.constant dense<0.000000e+00> : vector<8xf32>
    %106 = vector.multi_reduction <add>, %105, %cst_40 [1] : vector<8x8xf32> to vector<8xf32>
    %107 = vector.shape_cast %106 : vector<8xf32> to vector<8x1xf32>
    %108 = vector.broadcast %107 : vector<8x1xf32> to vector<8x8xf32>
    %109 = arith.divf %105, %108 : vector<8x8xf32>
    %110 = arith.truncf %109 : vector<8x8xf32> to vector<8x8xbf16>
    %cst_41 = arith.constant dense<0.000000e+00> : vector<8x8xf32>
    %111 = tpu.matmul %110, %93, %cst_41 {dimension_numbers = #tpu.dot_dimension_numbers<[1], [0], [0], [1], [0, 0, 1, 1], [], []>} : vector<8x8xbf16>, vector<8x8xbf16>, vector<8x8xf32> -> vector<8x8xf32>
    %112 = arith.truncf %111 : vector<8x8xf32> to vector<8x8xbf16>
    %c24 = arith.constant 24 : index
    %c0_42 = arith.constant 0 : index
    %113 = vector.load %arg6[%c24, %c0_42] : memref<32x32xbf16, #tpu.memory_space<vmem>>, vector<8x32xbf16>
    %cst_43 = arith.constant dense<0.000000e+00> : vector<8x32xf32>
    %114 = tpu.matmul %112, %113, %cst_43 {dimension_numbers = #tpu.dot_dimension_numbers<[1], [0], [0], [1], [0, 0, 1, 1], [], []>} : vector<8x8xbf16>, vector<8x32xbf16>, vector<8x32xf32> -> vector<8x32xf32>
    %115 = arith.addf %90, %114 : vector<8x32xf32>
    %116 = arith.addf %7, %115 : vector<8x32xf32>
    %c0_44 = arith.constant 0 : index
    %c0_45 = arith.constant 0 : index
    %117 = vector.load %arg7[%c0_44, %c0_45] : memref<1x32xf32, #tpu.memory_space<vmem>>, vector<1x32xf32>
    %118 = vector.broadcast %117 : vector<1x32xf32> to vector<8x32xf32>
    %119 = arith.addf %116, %118 : vector<8x32xf32>
    %cst_46 = arith.constant dense<0.000000e+00> : vector<8xf32>
    %120 = vector.multi_reduction <add>, %119, %cst_46 [1] : vector<8x32xf32> to vector<8xf32>
    %121 = vector.shape_cast %120 : vector<8xf32> to vector<8x1xf32>
    %cst_47 = arith.constant 3.200000e+01 : f32
    %122 = vector.broadcast %cst_47 : f32 to vector<8x1xf32>
    %123 = arith.divf %121, %122 : vector<8x1xf32>
    %124 = vector.broadcast %123 : vector<8x1xf32> to vector<8x32xf32>
    %125 = arith.subf %119, %124 : vector<8x32xf32>
    %126 = arith.mulf %125, %125 : vector<8x32xf32>
    %cst_48 = arith.constant dense<0.000000e+00> : vector<8xf32>
    %127 = vector.multi_reduction <add>, %126, %cst_48 [1] : vector<8x32xf32> to vector<8xf32>
    %128 = vector.shape_cast %127 : vector<8xf32> to vector<8x1xf32>
    %cst_49 = arith.constant 3.200000e+01 : f32
    %129 = vector.broadcast %cst_49 : f32 to vector<8x1xf32>
    %130 = arith.divf %128, %129 : vector<8x1xf32>
    %131 = vector.broadcast %123 : vector<8x1xf32> to vector<8x32xf32>
    %132 = arith.subf %119, %131 : vector<8x32xf32>
    %cst_50 = arith.constant 9.99999974E-6 : f32
    %133 = vector.broadcast %cst_50 : f32 to vector<8x1xf32>
    %134 = arith.addf %130, %133 : vector<8x1xf32>
    %135 = math.rsqrt %134 : vector<8x1xf32>
    %136 = vector.broadcast %135 : vector<8x1xf32> to vector<8x32xf32>
    %137 = arith.mulf %132, %136 : vector<8x32xf32>
    %c0_51 = arith.constant 0 : index
    %c0_52 = arith.constant 0 : index
    %138 = vector.load %arg10[%c0_51, %c0_52] : memref<1x32xf32, #tpu.memory_space<vmem>>, vector<1x32xf32>
    %139 = vector.broadcast %138 : vector<1x32xf32> to vector<8x32xf32>
    %140 = arith.mulf %137, %139 : vector<8x32xf32>
    %c0_53 = arith.constant 0 : index
    %c0_54 = arith.constant 0 : index
    %141 = vector.load %arg11[%c0_53, %c0_54] : memref<1x32xf32, #tpu.memory_space<vmem>>, vector<1x32xf32>
    %142 = vector.broadcast %141 : vector<1x32xf32> to vector<8x32xf32>
    %143 = arith.addf %140, %142 : vector<8x32xf32>
    %144 = arith.truncf %143 : vector<8x32xf32> to vector<8x32xbf16>
    %c0_55 = arith.constant 0 : index
    %c0_56 = arith.constant 0 : index
    %145 = vector.load %arg12[%c0_55, %c0_56] : memref<32x64xbf16, #tpu.memory_space<vmem>>, vector<32x64xbf16>
    %cst_57 = arith.constant dense<0.000000e+00> : vector<8x64xf32>
    %146 = tpu.matmul %144, %145, %cst_57 {dimension_numbers = #tpu.dot_dimension_numbers<[1], [0], [0], [1], [0, 0, 1, 1], [], []>} : vector<8x32xbf16>, vector<32x64xbf16>, vector<8x64xf32> -> vector<8x64xf32>
    %c0_58 = arith.constant 0 : index
    %c0_59 = arith.constant 0 : index
    %147 = vector.load %arg13[%c0_58, %c0_59] : memref<1x64xf32, #tpu.memory_space<vmem>>, vector<1x64xf32>
    %148 = vector.broadcast %147 : vector<1x64xf32> to vector<8x64xf32>
    %149 = arith.addf %146, %148 : vector<8x64xf32>
    %cst_60 = arith.constant 0.000000e+00 : f32
    %150 = vector.broadcast %cst_60 : f32 to vector<8x64xf32>
    %151 = arith.maximumf %149, %150 : vector<8x64xf32>
    %152 = arith.truncf %151 : vector<8x64xf32> to vector<8x64xbf16>
    %c0_61 = arith.constant 0 : index
    %c0_62 = arith.constant 0 : index
    %153 = vector.load %arg14[%c0_61, %c0_62] : memref<64x32xbf16, #tpu.memory_space<vmem>>, vector<64x32xbf16>
    %cst_63 = arith.constant dense<0.000000e+00> : vector<8x32xf32>
    %154 = tpu.matmul %152, %153, %cst_63 {dimension_numbers = #tpu.dot_dimension_numbers<[1], [0], [0], [1], [0, 0, 1, 1], [], []>} : vector<8x64xbf16>, vector<64x32xbf16>, vector<8x32xf32> -> vector<8x32xf32>
    %c0_64 = arith.constant 0 : index
    %c0_65 = arith.constant 0 : index
    %155 = vector.load %arg15[%c0_64, %c0_65] : memref<1x32xf32, #tpu.memory_space<vmem>>, vector<1x32xf32>
    %156 = vector.broadcast %155 : vector<1x32xf32> to vector<8x32xf32>
    %157 = arith.addf %154, %156 : vector<8x32xf32>
    %158 = arith.addf %119, %157 : vector<8x32xf32>
    %c0_66 = arith.constant 0 : index
    %c0_67 = arith.constant 0 : index
    %c0_68 = arith.constant 0 : index
    %159 = vector.load %arg16[%c0_66, %c0_67, %c0_68] : memref<1x8x32xf32, #tpu.memory_space<vmem>>, vector<1x8x32xf32>
    %160 = vector.shape_cast %159 : vector<1x8x32xf32> to vector<8x32xf32>
    %161 = vector.shape_cast %158 : vector<8x32xf32> to vector<1x8x32xf32>
    tpu.vector_store %arg16[%c0_66, %c0_67, %c0_68], %161 {strides = array<i32>} : memref<1x8x32xf32, #tpu.memory_space<vmem>>, vector<1x8x32xf32>,
    return
  }
  func.func @transform_0(%arg0: i32, %arg1: i32, %arg2: memref<2xi32, #tpu.memory_space<smem>>) -> (i32, i32, i32) {
    %c0_i32 = arith.constant 0 : i32
    %c0_i32_0 = arith.constant 0 : i32
    %c0_i32_1 = arith.constant 0 : i32
    return %arg0, %c0_i32, %c0_i32_0 : i32, i32, i32
  }
  func.func @transform_1(%arg0: i32, %arg1: i32, %arg2: memref<2xi32, #tpu.memory_space<smem>>) -> (i32, i32) {
    %c0_i32 = arith.constant 0 : i32
    %c0_i32_0 = arith.constant 0 : i32
    %c0_i32_1 = arith.constant 0 : i32
    return %c0_i32, %c0_i32_0 : i32, i32
  }
  func.func @transform_2(%arg0: i32, %arg1: i32, %arg2: memref<2xi32, #tpu.memory_space<smem>>) -> (i32, i32) {
    %c0_i32 = arith.constant 0 : i32
    %c0_i32_0 = arith.constant 0 : i32
    %c0_i32_1 = arith.constant 0 : i32
    return %c0_i32, %c0_i32_0 : i32, i32
  }
  func.func @transform_3(%arg0: i32, %arg1: i32, %arg2: memref<2xi32, #tpu.memory_space<smem>>) -> (i32, i32) {
    %c0_i32 = arith.constant 0 : i32
    %c0_i32_0 = arith.constant 0 : i32
    %c0_i32_1 = arith.constant 0 : i32
    return %c0_i32, %c0_i32_0 : i32, i32
  }
  func.func @transform_4(%arg0: i32, %arg1: i32, %arg2: memref<2xi32, #tpu.memory_space<smem>>) -> (i32, i32) {
    %c0_i32 = arith.constant 0 : i32
    %c0_i32_0 = arith.constant 0 : i32
    %c0_i32_1 = arith.constant 0 : i32
    return %c0_i32, %c0_i32_0 : i32, i32
  }
  func.func @transform_5(%arg0: i32, %arg1: i32, %arg2: memref<2xi32, #tpu.memory_space<smem>>) -> (i32, i32) {
    %c0_i32 = arith.constant 0 : i32
    %c0_i32_0 = arith.constant 0 : i32
    %c0_i32_1 = arith.constant 0 : i32
    return %c0_i32, %c0_i32_0 : i32, i32
  }
  func.func @transform_6(%arg0: i32, %arg1: i32, %arg2: memref<2xi32, #tpu.memory_space<smem>>) -> (i32, i32) {
    %c0_i32 = arith.constant 0 : i32
    %c0_i32_0 = arith.constant 0 : i32
    %c0_i32_1 = arith.constant 0 : i32
    return %c0_i32, %c0_i32_0 : i32, i32
  }
  func.func @transform_7(%arg0: i32, %arg1: i32, %arg2: memref<2xi32, #tpu.memory_space<smem>>) -> (i32, i32) {
    %c0_i32 = arith.constant 0 : i32
    %c0_i32_0 = arith.constant 0 : i32
    %c0_i32_1 = arith.constant 0 : i32
    return %c0_i32, %c0_i32_0 : i32, i32
  }
  func.func @transform_8(%arg0: i32, %arg1: i32, %arg2: memref<2xi32, #tpu.memory_space<smem>>) -> (i32, i32) {
    %c0_i32 = arith.constant 0 : i32
    %c0_i32_0 = arith.constant 0 : i32
    %c0_i32_1 = arith.constant 0 : i32
    return %c0_i32, %c0_i32_0 : i32, i32
  }
  func.func @transform_9(%arg0: i32, %arg1: i32, %arg2: memref<2xi32, #tpu.memory_space<smem>>) -> (i32, i32) {
    %c0_i32 = arith.constant 0 : i32
    %c0_i32_0 = arith.constant 0 : i32
    %c0_i32_1 = arith.constant 0 : i32
    return %c0_i32, %c0_i32_0 : i32, i32
  }
  func.func @transform_10(%arg0: i32, %arg1: i32, %arg2: memref<2xi32, #tpu.memory_space<smem>>) -> (i32, i32) {
    %c0_i32 = arith.constant 0 : i32
    %c0_i32_0 = arith.constant 0 : i32
    %c0_i32_1 = arith.constant 0 : i32
    return %c0_i32, %c0_i32_0 : i32, i32
  }
  func.func @transform_11(%arg0: i32, %arg1: i32, %arg2: memref<2xi32, #tpu.memory_space<smem>>) -> (i32, i32) {
    %c0_i32 = arith.constant 0 : i32
    %c0_i32_0 = arith.constant 0 : i32
    %c0_i32_1 = arith.constant 0 : i32
    return %c0_i32, %c0_i32_0 : i32, i32
  }
  func.func @transform_12(%arg0: i32, %arg1: i32, %arg2: memref<2xi32, #tpu.memory_space<smem>>) -> (i32, i32) {
    %c0_i32 = arith.constant 0 : i32
    %c0_i32_0 = arith.constant 0 : i32
    %c0_i32_1 = arith.constant 0 : i32
    return %c0_i32, %c0_i32_0 : i32, i32
  }
  func.func @transform_13(%arg0: i32, %arg1: i32, %arg2: memref<2xi32, #tpu.memory_space<smem>>) -> (i32, i32, i32) {
    %c0_i32 = arith.constant 0 : i32
    %c0_i32_0 = arith.constant 0 : i32
    return %arg0, %arg1, %c0_i32 : i32, i32, i32
  }
}

module attributes {stable_mosaic.version = 11 : i64} {
  func.func @_encoder_layer_kernel(%arg0: i32, %arg1: i32, %arg2: memref<2xi32, #tpu.memory_space<smem>>, %arg3: memref<1x8x32xf32, #tpu.memory_space<vmem>>, %arg4: memref<32x96xbf16, #tpu.memory_space<vmem>>, %arg5: memref<1x96xf32, #tpu.memory_space<vmem>>, %arg6: memref<32x32xbf16, #tpu.memory_space<vmem>>, %arg7: memref<1x32xf32, #tpu.memory_space<vmem>>, %arg8: memref<1x32xf32, #tpu.memory_space<vmem>>, %arg9: memref<1x32xf32, #tpu.memory_space<vmem>>, %arg10: memref<1x32xf32, #tpu.memory_space<vmem>>, %arg11: memref<1x32xf32, #tpu.memory_space<vmem>>, %arg12: memref<32x64xbf16, #tpu.memory_space<vmem>>, %arg13: memref<1x64xf32, #tpu.memory_space<vmem>>, %arg14: memref<64x32xbf16, #tpu.memory_space<vmem>>, %arg15: memref<1x32xf32, #tpu.memory_space<vmem>>, %arg16: memref<1x8x32xf32, #tpu.memory_space<vmem>>, %arg17: memref<8x96xbf16, #tpu.memory_space<vmem>>) attributes {dimension_semantics = [#tpu.dimension_semantics<parallel>, #tpu.dimension_semantics<arbitrary>], iteration_bounds = array<i64: 2, 1>, scalar_prefetch = 1 : i64, scratch_operands = 1 : i64, tpu.core_type = #tpu.core_type<tc>, window_params = [{transform_indices = @transform_0, window_bounds = array<i64: 1, 8, 32>}, {pipeline_mode = #tpu.pipeline_mode<synchronous>, transform_indices = @transform_1, window_bounds = array<i64: 32, 96>}, {pipeline_mode = #tpu.pipeline_mode<synchronous>, transform_indices = @transform_2, window_bounds = array<i64: 1, 96>}, {pipeline_mode = #tpu.pipeline_mode<synchronous>, transform_indices = @transform_3, window_bounds = array<i64: 32, 32>}, {pipeline_mode = #tpu.pipeline_mode<synchronous>, transform_indices = @transform_4, window_bounds = array<i64: 1, 32>}, {pipeline_mode = #tpu.pipeline_mode<synchronous>, transform_indices = @transform_5, window_bounds = array<i64: 1, 32>}, {pipeline_mode = #tpu.pipeline_mode<synchronous>, transform_indices = @transform_6, window_bounds = array<i64: 1, 32>}, {pipeline_mode = #tpu.pipeline_mode<synchronous>, transform_indices = @transform_7, window_bounds = array<i64: 1, 32>}, {pipeline_mode = #tpu.pipeline_mode<synchronous>, transform_indices = @transform_8, window_bounds = array<i64: 1, 32>}, {pipeline_mode = #tpu.pipeline_mode<synchronous>, transform_indices = @transform_9, window_bounds = array<i64: 32, 64>}, {pipeline_mode = #tpu.pipeline_mode<synchronous>, transform_indices = @transform_10, window_bounds = array<i64: 1, 64>}, {pipeline_mode = #tpu.pipeline_mode<synchronous>, transform_indices = @transform_11, window_bounds = array<i64: 64, 32>}, {pipeline_mode = #tpu.pipeline_mode<synchronous>, transform_indices = @transform_12, window_bounds = array<i64: 1, 32>}, {transform_indices = @transform_13, window_bounds = array<i64: 1, 8, 32>}]} {
    %c0_i32 = arith.constant 0 : i32
    %0 = arith.cmpi eq, %arg1, %c0_i32 : i32
    %1 = arith.extui %0 : i1 to i32
    %c0_i32_0 = arith.constant 0 : i32
    %2 = arith.cmpi ne, %1, %c0_i32_0 : i32
    scf.if %2 {
      %c0_69 = arith.constant 0 : index
      %c0_70 = arith.constant 0 : index
      %c0_71 = arith.constant 0 : index
      %162 = vector.load %arg3[%c0_69, %c0_70, %c0_71] : memref<1x8x32xf32, #tpu.memory_space<vmem>>, vector<1x8x32xf32>
      %163 = vector.shape_cast %162 : vector<1x8x32xf32> to vector<8x32xf32>
      %cst_72 = arith.constant dense<0.000000e+00> : vector<8xf32>
      %164 = vector.multi_reduction <add>, %163, %cst_72 [1] : vector<8x32xf32> to vector<8xf32>
      %165 = vector.shape_cast %164 : vector<8xf32> to vector<8x1xf32>
      %cst_73 = arith.constant 3.200000e+01 : f32
      %166 = vector.broadcast %cst_73 : f32 to vector<8x1xf32>
      %167 = arith.divf %165, %166 : vector<8x1xf32>
      %168 = vector.broadcast %167 : vector<8x1xf32> to vector<8x32xf32>
      %169 = arith.subf %163, %168 : vector<8x32xf32>
      %170 = arith.mulf %169, %169 : vector<8x32xf32>
      %cst_74 = arith.constant dense<0.000000e+00> : vector<8xf32>
      %171 = vector.multi_reduction <add>, %170, %cst_74 [1] : vector<8x32xf32> to vector<8xf32>
      %172 = vector.shape_cast %171 : vector<8xf32> to vector<8x1xf32>
      %cst_75 = arith.constant 3.200000e+01 : f32
      %173 = vector.broadcast %cst_75 : f32 to vector<8x1xf32>
      %174 = arith.divf %172, %173 : vector<8x1xf32>
      %175 = vector.broadcast %167 : vector<8x1xf32> to vector<8x32xf32>
      %176 = arith.subf %163, %175 : vector<8x32xf32>
      %cst_76 = arith.constant 9.99999974E-6 : f32
      %177 = vector.broadcast %cst_76 : f32 to vector<8x1xf32>
      %178 = arith.addf %174, %177 : vector<8x1xf32>
      %179 = math.rsqrt %178 : vector<8x1xf32>
      %180 = vector.broadcast %179 : vector<8x1xf32> to vector<8x32xf32>
      %181 = arith.mulf %176, %180 : vector<8x32xf32>
      %c0_77 = arith.constant 0 : index
      %c0_78 = arith.constant 0 : index
      %182 = vector.load %arg8[%c0_77, %c0_78] : memref<1x32xf32, #tpu.memory_space<vmem>>, vector<1x32xf32>
      %183 = vector.broadcast %182 : vector<1x32xf32> to vector<8x32xf32>
      %184 = arith.mulf %181, %183 : vector<8x32xf32>
      %c0_79 = arith.constant 0 : index
      %c0_80 = arith.constant 0 : index
      %185 = vector.load %arg9[%c0_79, %c0_80] : memref<1x32xf32, #tpu.memory_space<vmem>>, vector<1x32xf32>
      %186 = vector.broadcast %185 : vector<1x32xf32> to vector<8x32xf32>
      %187 = arith.addf %184, %186 : vector<8x32xf32>
      %188 = arith.truncf %187 : vector<8x32xf32> to vector<8x32xbf16>
      %c0_81 = arith.constant 0 : index
      %c0_82 = arith.constant 0 : index
      %189 = vector.load %arg4[%c0_81, %c0_82] : memref<32x96xbf16, #tpu.memory_space<vmem>>, vector<32x96xbf16>
      %cst_83 = arith.constant dense<0.000000e+00> : vector<8x96xf32>
      %190 = tpu.matmul %188, %189, %cst_83 {dimension_numbers = #tpu.dot_dimension_numbers<[1], [0], [0], [1], [0, 0, 1, 1], [], []>} : vector<8x32xbf16>, vector<32x96xbf16>, vector<8x96xf32> -> vector<8x96xf32>
      %c0_84 = arith.constant 0 : index
      %c0_85 = arith.constant 0 : index
      %191 = vector.load %arg5[%c0_84, %c0_85] : memref<1x96xf32, #tpu.memory_space<vmem>>, vector<1x96xf32>
      %192 = vector.broadcast %191 : vector<1x96xf32> to vector<8x96xf32>
      %193 = arith.addf %190, %192 : vector<8x96xf32>
      %194 = arith.truncf %193 : vector<8x96xf32> to vector<8x96xbf16>
      %c0_86 = arith.constant 0 : index
      %c0_87 = arith.constant 0 : index
      %195 = vector.load %arg17[%c0_86, %c0_87] : memref<8x96xbf16, #tpu.memory_space<vmem>>, vector<8x96xbf16>
      tpu.vector_store %arg17[%c0_86, %c0_87], %194 {strides = array<i32>} : memref<8x96xbf16, #tpu.memory_space<vmem>>, vector<8x96xbf16>,
    } else {
    }
    %c8_i32 = arith.constant 8 : i32
    %3 = arith.muli %arg1, %c8_i32 : i32
    %4 = tpu.assume_multiple %3, 8 : i32
    %c0 = arith.constant 0 : index
    %5 = arith.index_cast %4 : i32 to index
    %c0_1 = arith.constant 0 : index
    %6 = vector.load %arg3[%c0, %5, %c0_1] : memref<1x8x32xf32, #tpu.memory_space<vmem>>, vector<1x8x32xf32>
    %7 = vector.shape_cast %6 : vector<1x8x32xf32> to vector<8x32xf32>
    %8 = arith.index_cast %4 : i32 to index
    %c0_2 = arith.constant 0 : index
    %9 = vector.load %arg17[%8, %c0_2] : memref<8x96xbf16, #tpu.memory_space<vmem>>, vector<8x96xbf16>
    %10 = tpu.iota {dimensions = array<i32: 1>} : vector<1x8xi32>
    %11 = arith.index_cast %arg0 : i32 to index
    %12 = memref.load %arg2[%11] : memref<2xi32, #tpu.memory_space<smem>>
    %13 = vector.broadcast %12 : i32 to vector<1x8xi32>
    %14 = arith.cmpi sge, %10, %13 : vector<1x8xi32>
    %cst = arith.constant 0.000000e+00 : f32
    %15 = vector.broadcast %cst : f32 to vector<8x32xf32>
    %16 = vector.extract_strided_slice %9 {offsets = [0, 0], sizes = [8, 8], strides = [1, 1]} : vector<8x96xbf16> to vector<8x8xbf16>
    %c0_3 = arith.constant 0 : index
    %c32 = arith.constant 32 : index
    %17 = vector.load %arg17[%c0_3, %c32] : memref<8x96xbf16, #tpu.memory_space<vmem>>, vector<8x8xbf16>
    %c0_4 = arith.constant 0 : index
    %c64 = arith.constant 64 : index
    %18 = vector.load %arg17[%c0_4, %c64] : memref<8x96xbf16, #tpu.memory_space<vmem>>, vector<8x8xbf16>
    %cst_5 = arith.constant dense<0.000000e+00> : vector<8x8xf32>
    %19 = tpu.matmul %16, %17, %cst_5 {dimension_numbers = #tpu.dot_dimension_numbers<[1], [1], [0], [0], [0, 0, 1, 0], [], []>} : vector<8x8xbf16>, vector<8x8xbf16>, vector<8x8xf32> -> vector<8x8xf32>
    %cst_6 = arith.constant 0.353553385 : f32
    %20 = vector.broadcast %cst_6 : f32 to vector<8x8xf32>
    %21 = arith.mulf %19, %20 : vector<8x8xf32>
    %cst_7 = arith.constant -1.000000e+09 : f32
    %22 = vector.shape_cast %14 : vector<1x8xi1> to vector<1x8xi1>
    %23 = vector.broadcast %22 : vector<1x8xi1> to vector<8x8xi1>
    %24 = vector.broadcast %cst_7 : f32 to vector<8x8xf32>
    %25 = arith.select %23, %24, %21 : vector<8x8xi1>, vector<8x8xf32>
    %cst_8 = arith.constant dense<0xFF800000> : vector<8xf32>
    %26 = vector.multi_reduction <maximumf>, %25, %cst_8 [1] : vector<8x8xf32> to vector<8xf32>
    %27 = vector.shape_cast %26 : vector<8xf32> to vector<8x1xf32>
    %28 = vector.broadcast %27 : vector<8x1xf32> to vector<8x8xf32>
    %29 = arith.subf %25, %28 : vector<8x8xf32>
    %30 = math.exp %29 : vector<8x8xf32>
    %cst_9 = arith.constant dense<0.000000e+00> : vector<8xf32>
    %31 = vector.multi_reduction <add>, %30, %cst_9 [1] : vector<8x8xf32> to vector<8xf32>
    %32 = vector.shape_cast %31 : vector<8xf32> to vector<8x1xf32>
    %33 = vector.broadcast %32 : vector<8x1xf32> to vector<8x8xf32>
    %34 = arith.divf %30, %33 : vector<8x8xf32>
    %35 = arith.truncf %34 : vector<8x8xf32> to vector<8x8xbf16>
    %cst_10 = arith.constant dense<0.000000e+00> : vector<8x8xf32>
    %36 = tpu.matmul %35, %18, %cst_10 {dimension_numbers = #tpu.dot_dimension_numbers<[1], [0], [0], [1], [0, 0, 1, 1], [], []>} : vector<8x8xbf16>, vector<8x8xbf16>, vector<8x8xf32> -> vector<8x8xf32>
    %37 = arith.truncf %36 : vector<8x8xf32> to vector<8x8xbf16>
    %c0_11 = arith.constant 0 : index
    %c0_12 = arith.constant 0 : index
    %38 = vector.load %arg6[%c0_11, %c0_12] : memref<32x32xbf16, #tpu.memory_space<vmem>>, vector<8x32xbf16>
    %cst_13 = arith.constant dense<0.000000e+00> : vector<8x32xf32>
    %39 = tpu.matmul %37, %38, %cst_13 {dimension_numbers = #tpu.dot_dimension_numbers<[1], [0], [0], [1], [0, 0, 1, 1], [], []>} : vector<8x8xbf16>, vector<8x32xbf16>, vector<8x32xf32> -> vector<8x32xf32>
    %40 = arith.addf %15, %39 : vector<8x32xf32>
    %41 = vector.extract_strided_slice %9 {offsets = [0, 8], sizes = [8, 8], strides = [1, 1]} : vector<8x96xbf16> to vector<8x8xbf16>
    %c0_14 = arith.constant 0 : index
    %c40 = arith.constant 40 : index
    %42 = vector.load %arg17[%c0_14, %c40] : memref<8x96xbf16, #tpu.memory_space<vmem>>, vector<8x8xbf16>
    %c0_15 = arith.constant 0 : index
    %c72 = arith.constant 72 : index
    %43 = vector.load %arg17[%c0_15, %c72] : memref<8x96xbf16, #tpu.memory_space<vmem>>, vector<8x8xbf16>
    %cst_16 = arith.constant dense<0.000000e+00> : vector<8x8xf32>
    %44 = tpu.matmul %41, %42, %cst_16 {dimension_numbers = #tpu.dot_dimension_numbers<[1], [1], [0], [0], [0, 0, 1, 0], [], []>} : vector<8x8xbf16>, vector<8x8xbf16>, vector<8x8xf32> -> vector<8x8xf32>
    %cst_17 = arith.constant 0.353553385 : f32
    %45 = vector.broadcast %cst_17 : f32 to vector<8x8xf32>
    %46 = arith.mulf %44, %45 : vector<8x8xf32>
    %cst_18 = arith.constant -1.000000e+09 : f32
    %47 = vector.shape_cast %14 : vector<1x8xi1> to vector<1x8xi1>
    %48 = vector.broadcast %47 : vector<1x8xi1> to vector<8x8xi1>
    %49 = vector.broadcast %cst_18 : f32 to vector<8x8xf32>
    %50 = arith.select %48, %49, %46 : vector<8x8xi1>, vector<8x8xf32>
    %cst_19 = arith.constant dense<0xFF800000> : vector<8xf32>
    %51 = vector.multi_reduction <maximumf>, %50, %cst_19 [1] : vector<8x8xf32> to vector<8xf32>
    %52 = vector.shape_cast %51 : vector<8xf32> to vector<8x1xf32>
    %53 = vector.broadcast %52 : vector<8x1xf32> to vector<8x8xf32>
    %54 = arith.subf %50, %53 : vector<8x8xf32>
    %55 = math.exp %54 : vector<8x8xf32>
    %cst_20 = arith.constant dense<0.000000e+00> : vector<8xf32>
    %56 = vector.multi_reduction <add>, %55, %cst_20 [1] : vector<8x8xf32> to vector<8xf32>
    %57 = vector.shape_cast %56 : vector<8xf32> to vector<8x1xf32>
    %58 = vector.broadcast %57 : vector<8x1xf32> to vector<8x8xf32>
    %59 = arith.divf %55, %58 : vector<8x8xf32>
    %60 = arith.truncf %59 : vector<8x8xf32> to vector<8x8xbf16>
    %cst_21 = arith.constant dense<0.000000e+00> : vector<8x8xf32>
    %61 = tpu.matmul %60, %43, %cst_21 {dimension_numbers = #tpu.dot_dimension_numbers<[1], [0], [0], [1], [0, 0, 1, 1], [], []>} : vector<8x8xbf16>, vector<8x8xbf16>, vector<8x8xf32> -> vector<8x8xf32>
    %62 = arith.truncf %61 : vector<8x8xf32> to vector<8x8xbf16>
    %c8 = arith.constant 8 : index
    %c0_22 = arith.constant 0 : index
    %63 = vector.load %arg6[%c8, %c0_22] : memref<32x32xbf16, #tpu.memory_space<vmem>>, vector<8x32xbf16>
    %cst_23 = arith.constant dense<0.000000e+00> : vector<8x32xf32>
    %64 = tpu.matmul %62, %63, %cst_23 {dimension_numbers = #tpu.dot_dimension_numbers<[1], [0], [0], [1], [0, 0, 1, 1], [], []>} : vector<8x8xbf16>, vector<8x32xbf16>, vector<8x32xf32> -> vector<8x32xf32>
    %65 = arith.addf %40, %64 : vector<8x32xf32>
    %66 = vector.extract_strided_slice %9 {offsets = [0, 16], sizes = [8, 8], strides = [1, 1]} : vector<8x96xbf16> to vector<8x8xbf16>
    %c0_24 = arith.constant 0 : index
    %c48 = arith.constant 48 : index
    %67 = vector.load %arg17[%c0_24, %c48] : memref<8x96xbf16, #tpu.memory_space<vmem>>, vector<8x8xbf16>
    %c0_25 = arith.constant 0 : index
    %c80 = arith.constant 80 : index
    %68 = vector.load %arg17[%c0_25, %c80] : memref<8x96xbf16, #tpu.memory_space<vmem>>, vector<8x8xbf16>
    %cst_26 = arith.constant dense<0.000000e+00> : vector<8x8xf32>
    %69 = tpu.matmul %66, %67, %cst_26 {dimension_numbers = #tpu.dot_dimension_numbers<[1], [1], [0], [0], [0, 0, 1, 0], [], []>} : vector<8x8xbf16>, vector<8x8xbf16>, vector<8x8xf32> -> vector<8x8xf32>
    %cst_27 = arith.constant 0.353553385 : f32
    %70 = vector.broadcast %cst_27 : f32 to vector<8x8xf32>
    %71 = arith.mulf %69, %70 : vector<8x8xf32>
    %cst_28 = arith.constant -1.000000e+09 : f32
    %72 = vector.shape_cast %14 : vector<1x8xi1> to vector<1x8xi1>
    %73 = vector.broadcast %72 : vector<1x8xi1> to vector<8x8xi1>
    %74 = vector.broadcast %cst_28 : f32 to vector<8x8xf32>
    %75 = arith.select %73, %74, %71 : vector<8x8xi1>, vector<8x8xf32>
    %cst_29 = arith.constant dense<0xFF800000> : vector<8xf32>
    %76 = vector.multi_reduction <maximumf>, %75, %cst_29 [1] : vector<8x8xf32> to vector<8xf32>
    %77 = vector.shape_cast %76 : vector<8xf32> to vector<8x1xf32>
    %78 = vector.broadcast %77 : vector<8x1xf32> to vector<8x8xf32>
    %79 = arith.subf %75, %78 : vector<8x8xf32>
    %80 = math.exp %79 : vector<8x8xf32>
    %cst_30 = arith.constant dense<0.000000e+00> : vector<8xf32>
    %81 = vector.multi_reduction <add>, %80, %cst_30 [1] : vector<8x8xf32> to vector<8xf32>
    %82 = vector.shape_cast %81 : vector<8xf32> to vector<8x1xf32>
    %83 = vector.broadcast %82 : vector<8x1xf32> to vector<8x8xf32>
    %84 = arith.divf %80, %83 : vector<8x8xf32>
    %85 = arith.truncf %84 : vector<8x8xf32> to vector<8x8xbf16>
    %cst_31 = arith.constant dense<0.000000e+00> : vector<8x8xf32>
    %86 = tpu.matmul %85, %68, %cst_31 {dimension_numbers = #tpu.dot_dimension_numbers<[1], [0], [0], [1], [0, 0, 1, 1], [], []>} : vector<8x8xbf16>, vector<8x8xbf16>, vector<8x8xf32> -> vector<8x8xf32>
    %87 = arith.truncf %86 : vector<8x8xf32> to vector<8x8xbf16>
    %c16 = arith.constant 16 : index
    %c0_32 = arith.constant 0 : index
    %88 = vector.load %arg6[%c16, %c0_32] : memref<32x32xbf16, #tpu.memory_space<vmem>>, vector<8x32xbf16>
    %cst_33 = arith.constant dense<0.000000e+00> : vector<8x32xf32>
    %89 = tpu.matmul %87, %88, %cst_33 {dimension_numbers = #tpu.dot_dimension_numbers<[1], [0], [0], [1], [0, 0, 1, 1], [], []>} : vector<8x8xbf16>, vector<8x32xbf16>, vector<8x32xf32> -> vector<8x32xf32>
    %90 = arith.addf %65, %89 : vector<8x32xf32>
    %91 = vector.extract_strided_slice %9 {offsets = [0, 24], sizes = [8, 8], strides = [1, 1]} : vector<8x96xbf16> to vector<8x8xbf16>
    %c0_34 = arith.constant 0 : index
    %c56 = arith.constant 56 : index
    %92 = vector.load %arg17[%c0_34, %c56] : memref<8x96xbf16, #tpu.memory_space<vmem>>, vector<8x8xbf16>
    %c0_35 = arith.constant 0 : index
    %c88 = arith.constant 88 : index
    %93 = vector.load %arg17[%c0_35, %c88] : memref<8x96xbf16, #tpu.memory_space<vmem>>, vector<8x8xbf16>
    %cst_36 = arith.constant dense<0.000000e+00> : vector<8x8xf32>
    %94 = tpu.matmul %91, %92, %cst_36 {dimension_numbers = #tpu.dot_dimension_numbers<[1], [1], [0], [0], [0, 0, 1, 0], [], []>} : vector<8x8xbf16>, vector<8x8xbf16>, vector<8x8xf32> -> vector<8x8xf32>
    %cst_37 = arith.constant 0.353553385 : f32
    %95 = vector.broadcast %cst_37 : f32 to vector<8x8xf32>
    %96 = arith.mulf %94, %95 : vector<8x8xf32>
    %cst_38 = arith.constant -1.000000e+09 : f32
    %97 = vector.shape_cast %14 : vector<1x8xi1> to vector<1x8xi1>
    %98 = vector.broadcast %97 : vector<1x8xi1> to vector<8x8xi1>
    %99 = vector.broadcast %cst_38 : f32 to vector<8x8xf32>
    %100 = arith.select %98, %99, %96 : vector<8x8xi1>, vector<8x8xf32>
    %cst_39 = arith.constant dense<0xFF800000> : vector<8xf32>
    %101 = vector.multi_reduction <maximumf>, %100, %cst_39 [1] : vector<8x8xf32> to vector<8xf32>
    %102 = vector.shape_cast %101 : vector<8xf32> to vector<8x1xf32>
    %103 = vector.broadcast %102 : vector<8x1xf32> to vector<8x8xf32>
    %104 = arith.subf %100, %103 : vector<8x8xf32>
    %105 = math.exp %104 : vector<8x8xf32>
    %cst_40 = arith.constant dense<0.000000e+00> : vector<8xf32>
    %106 = vector.multi_reduction <add>, %105, %cst_40 [1] : vector<8x8xf32> to vector<8xf32>
    %107 = vector.shape_cast %106 : vector<8xf32> to vector<8x1xf32>
    %108 = vector.broadcast %107 : vector<8x1xf32> to vector<8x8xf32>
    %109 = arith.divf %105, %108 : vector<8x8xf32>
    %110 = arith.truncf %109 : vector<8x8xf32> to vector<8x8xbf16>
    %cst_41 = arith.constant dense<0.000000e+00> : vector<8x8xf32>
    %111 = tpu.matmul %110, %93, %cst_41 {dimension_numbers = #tpu.dot_dimension_numbers<[1], [0], [0], [1], [0, 0, 1, 1], [], []>} : vector<8x8xbf16>, vector<8x8xbf16>, vector<8x8xf32> -> vector<8x8xf32>
    %112 = arith.truncf %111 : vector<8x8xf32> to vector<8x8xbf16>
    %c24 = arith.constant 24 : index
    %c0_42 = arith.constant 0 : index
    %113 = vector.load %arg6[%c24, %c0_42] : memref<32x32xbf16, #tpu.memory_space<vmem>>, vector<8x32xbf16>
    %cst_43 = arith.constant dense<0.000000e+00> : vector<8x32xf32>
    %114 = tpu.matmul %112, %113, %cst_43 {dimension_numbers = #tpu.dot_dimension_numbers<[1], [0], [0], [1], [0, 0, 1, 1], [], []>} : vector<8x8xbf16>, vector<8x32xbf16>, vector<8x32xf32> -> vector<8x32xf32>
    %115 = arith.addf %90, %114 : vector<8x32xf32>
    %116 = arith.addf %7, %115 : vector<8x32xf32>
    %c0_44 = arith.constant 0 : index
    %c0_45 = arith.constant 0 : index
    %117 = vector.load %arg7[%c0_44, %c0_45] : memref<1x32xf32, #tpu.memory_space<vmem>>, vector<1x32xf32>
    %118 = vector.broadcast %117 : vector<1x32xf32> to vector<8x32xf32>
    %119 = arith.addf %116, %118 : vector<8x32xf32>
    %cst_46 = arith.constant dense<0.000000e+00> : vector<8xf32>
    %120 = vector.multi_reduction <add>, %119, %cst_46 [1] : vector<8x32xf32> to vector<8xf32>
    %121 = vector.shape_cast %120 : vector<8xf32> to vector<8x1xf32>
    %cst_47 = arith.constant 3.200000e+01 : f32
    %122 = vector.broadcast %cst_47 : f32 to vector<8x1xf32>
    %123 = arith.divf %121, %122 : vector<8x1xf32>
    %124 = vector.broadcast %123 : vector<8x1xf32> to vector<8x32xf32>
    %125 = arith.subf %119, %124 : vector<8x32xf32>
    %126 = arith.mulf %125, %125 : vector<8x32xf32>
    %cst_48 = arith.constant dense<0.000000e+00> : vector<8xf32>
    %127 = vector.multi_reduction <add>, %126, %cst_48 [1] : vector<8x32xf32> to vector<8xf32>
    %128 = vector.shape_cast %127 : vector<8xf32> to vector<8x1xf32>
    %cst_49 = arith.constant 3.200000e+01 : f32
    %129 = vector.broadcast %cst_49 : f32 to vector<8x1xf32>
    %130 = arith.divf %128, %129 : vector<8x1xf32>
    %131 = vector.broadcast %123 : vector<8x1xf32> to vector<8x32xf32>
    %132 = arith.subf %119, %131 : vector<8x32xf32>
    %cst_50 = arith.constant 9.99999974E-6 : f32
    %133 = vector.broadcast %cst_50 : f32 to vector<8x1xf32>
    %134 = arith.addf %130, %133 : vector<8x1xf32>
    %135 = math.rsqrt %134 : vector<8x1xf32>
    %136 = vector.broadcast %135 : vector<8x1xf32> to vector<8x32xf32>
    %137 = arith.mulf %132, %136 : vector<8x32xf32>
    %c0_51 = arith.constant 0 : index
    %c0_52 = arith.constant 0 : index
    %138 = vector.load %arg10[%c0_51, %c0_52] : memref<1x32xf32, #tpu.memory_space<vmem>>, vector<1x32xf32>
    %139 = vector.broadcast %138 : vector<1x32xf32> to vector<8x32xf32>
    %140 = arith.mulf %137, %139 : vector<8x32xf32>
    %c0_53 = arith.constant 0 : index
    %c0_54 = arith.constant 0 : index
    %141 = vector.load %arg11[%c0_53, %c0_54] : memref<1x32xf32, #tpu.memory_space<vmem>>, vector<1x32xf32>
    %142 = vector.broadcast %141 : vector<1x32xf32> to vector<8x32xf32>
    %143 = arith.addf %140, %142 : vector<8x32xf32>
    %144 = arith.truncf %143 : vector<8x32xf32> to vector<8x32xbf16>
    %c0_55 = arith.constant 0 : index
    %c0_56 = arith.constant 0 : index
    %145 = vector.load %arg12[%c0_55, %c0_56] : memref<32x64xbf16, #tpu.memory_space<vmem>>, vector<32x64xbf16>
    %cst_57 = arith.constant dense<0.000000e+00> : vector<8x64xf32>
    %146 = tpu.matmul %144, %145, %cst_57 {dimension_numbers = #tpu.dot_dimension_numbers<[1], [0], [0], [1], [0, 0, 1, 1], [], []>} : vector<8x32xbf16>, vector<32x64xbf16>, vector<8x64xf32> -> vector<8x64xf32>
    %c0_58 = arith.constant 0 : index
    %c0_59 = arith.constant 0 : index
    %147 = vector.load %arg13[%c0_58, %c0_59] : memref<1x64xf32, #tpu.memory_space<vmem>>, vector<1x64xf32>
    %148 = vector.broadcast %147 : vector<1x64xf32> to vector<8x64xf32>
    %149 = arith.addf %146, %148 : vector<8x64xf32>
    %cst_60 = arith.constant 0.000000e+00 : f32
    %150 = vector.broadcast %cst_60 : f32 to vector<8x64xf32>
    %151 = arith.maximumf %149, %150 : vector<8x64xf32>
    %152 = arith.truncf %151 : vector<8x64xf32> to vector<8x64xbf16>
    %c0_61 = arith.constant 0 : index
    %c0_62 = arith.constant 0 : index
    %153 = vector.load %arg14[%c0_61, %c0_62] : memref<64x32xbf16, #tpu.memory_space<vmem>>, vector<64x32xbf16>
    %cst_63 = arith.constant dense<0.000000e+00> : vector<8x32xf32>
    %154 = tpu.matmul %152, %153, %cst_63 {dimension_numbers = #tpu.dot_dimension_numbers<[1], [0], [0], [1], [0, 0, 1, 1], [], []>} : vector<8x64xbf16>, vector<64x32xbf16>, vector<8x32xf32> -> vector<8x32xf32>
    %c0_64 = arith.constant 0 : index
    %c0_65 = arith.constant 0 : index
    %155 = vector.load %arg15[%c0_64, %c0_65] : memref<1x32xf32, #tpu.memory_space<vmem>>, vector<1x32xf32>
    %156 = vector.broadcast %155 : vector<1x32xf32> to vector<8x32xf32>
    %157 = arith.addf %154, %156 : vector<8x32xf32>
    %158 = arith.addf %119, %157 : vector<8x32xf32>
    %c0_66 = arith.constant 0 : index
    %c0_67 = arith.constant 0 : index
    %c0_68 = arith.constant 0 : index
    %159 = vector.load %arg16[%c0_66, %c0_67, %c0_68] : memref<1x8x32xf32, #tpu.memory_space<vmem>>, vector<1x8x32xf32>
    %160 = vector.shape_cast %159 : vector<1x8x32xf32> to vector<8x32xf32>
    %161 = vector.shape_cast %158 : vector<8x32xf32> to vector<1x8x32xf32>
    tpu.vector_store %arg16[%c0_66, %c0_67, %c0_68], %161 {strides = array<i32>} : memref<1x8x32xf32, #tpu.memory_space<vmem>>, vector<1x8x32xf32>,
    return
  }
  func.func @transform_0(%arg0: i32, %arg1: i32, %arg2: memref<2xi32, #tpu.memory_space<smem>>) -> (i32, i32, i32) {
    %c0_i32 = arith.constant 0 : i32
    %c0_i32_0 = arith.constant 0 : i32
    %c0_i32_1 = arith.constant 0 : i32
    return %arg0, %c0_i32, %c0_i32_0 : i32, i32, i32
  }
  func.func @transform_1(%arg0: i32, %arg1: i32, %arg2: memref<2xi32, #tpu.memory_space<smem>>) -> (i32, i32) {
    %c0_i32 = arith.constant 0 : i32
    %c0_i32_0 = arith.constant 0 : i32
    %c0_i32_1 = arith.constant 0 : i32
    return %c0_i32, %c0_i32_0 : i32, i32
  }
  func.func @transform_2(%arg0: i32, %arg1: i32, %arg2: memref<2xi32, #tpu.memory_space<smem>>) -> (i32, i32) {
    %c0_i32 = arith.constant 0 : i32
    %c0_i32_0 = arith.constant 0 : i32
    %c0_i32_1 = arith.constant 0 : i32
    return %c0_i32, %c0_i32_0 : i32, i32
  }
  func.func @transform_3(%arg0: i32, %arg1: i32, %arg2: memref<2xi32, #tpu.memory_space<smem>>) -> (i32, i32) {
    %c0_i32 = arith.constant 0 : i32
    %c0_i32_0 = arith.constant 0 : i32
    %c0_i32_1 = arith.constant 0 : i32
    return %c0_i32, %c0_i32_0 : i32, i32
  }
  func.func @transform_4(%arg0: i32, %arg1: i32, %arg2: memref<2xi32, #tpu.memory_space<smem>>) -> (i32, i32) {
    %c0_i32 = arith.constant 0 : i32
    %c0_i32_0 = arith.constant 0 : i32
    %c0_i32_1 = arith.constant 0 : i32
    return %c0_i32, %c0_i32_0 : i32, i32
  }
  func.func @transform_5(%arg0: i32, %arg1: i32, %arg2: memref<2xi32, #tpu.memory_space<smem>>) -> (i32, i32) {
    %c0_i32 = arith.constant 0 : i32
    %c0_i32_0 = arith.constant 0 : i32
    %c0_i32_1 = arith.constant 0 : i32
    return %c0_i32, %c0_i32_0 : i32, i32
  }
  func.func @transform_6(%arg0: i32, %arg1: i32, %arg2: memref<2xi32, #tpu.memory_space<smem>>) -> (i32, i32) {
    %c0_i32 = arith.constant 0 : i32
    %c0_i32_0 = arith.constant 0 : i32
    %c0_i32_1 = arith.constant 0 : i32
    return %c0_i32, %c0_i32_0 : i32, i32
  }
  func.func @transform_7(%arg0: i32, %arg1: i32, %arg2: memref<2xi32, #tpu.memory_space<smem>>) -> (i32, i32) {
    %c0_i32 = arith.constant 0 : i32
    %c0_i32_0 = arith.constant 0 : i32
    %c0_i32_1 = arith.constant 0 : i32
    return %c0_i32, %c0_i32_0 : i32, i32
  }
  func.func @transform_8(%arg0: i32, %arg1: i32, %arg2: memref<2xi32, #tpu.memory_space<smem>>) -> (i32, i32) {
    %c0_i32 = arith.constant 0 : i32
    %c0_i32_0 = arith.constant 0 : i32
    %c0_i32_1 = arith.constant 0 : i32
    return %c0_i32, %c0_i32_0 : i32, i32
  }
  func.func @transform_9(%arg0: i32, %arg1: i32, %arg2: memref<2xi32, #tpu.memory_space<smem>>) -> (i32, i32) {
    %c0_i32 = arith.constant 0 : i32
    %c0_i32_0 = arith.constant 0 : i32
    %c0_i32_1 = arith.constant 0 : i32
    return %c0_i32, %c0_i32_0 : i32, i32
  }
  func.func @transform_10(%arg0: i32, %arg1: i32, %arg2: memref<2xi32, #tpu.memory_space<smem>>) -> (i32, i32) {
    %c0_i32 = arith.constant 0 : i32
    %c0_i32_0 = arith.constant 0 : i32
    %c0_i32_1 = arith.constant 0 : i32
    return %c0_i32, %c0_i32_0 : i32, i32
  }
  func.func @transform_11(%arg0: i32, %arg1: i32, %arg2: memref<2xi32, #tpu.memory_space<smem>>) -> (i32, i32) {
    %c0_i32 = arith.constant 0 : i32
    %c0_i32_0 = arith.constant 0 : i32
    %c0_i32_1 = arith.constant 0 : i32
    return %c0_i32, %c0_i32_0 : i32, i32
  }
  func.func @transform_12(%arg0: i32, %arg1: i32, %arg2: memref<2xi32, #tpu.memory_space<smem>>) -> (i32, i32) {
    %c0_i32 = arith.constant 0 : i32
    %c0_i32_0 = arith.constant 0 : i32
    %c0_i32_1 = arith.constant 0 : i32
    return %c0_i32, %c0_i32_0 : i32, i32
  }
  func.func @transform_13(%arg0: i32, %arg1: i32, %arg2: memref<2xi32, #tpu.memory_space<smem>>) -> (i32, i32, i32) {
    %c0_i32 = arith.constant 0 : i32
    %c0_i32_0 = arith.constant 0 : i32
    return %arg0, %arg1, %c0_i32 : i32, i32, i32
  }
}

</mosaic_0001>

<llo_original>
// kernel: transducer_audio_encoder.3
$region0: #{transducer_audio_encoder.3}
  #allocation0 [shape = 'u32[]', space=smem, size = 0x4, offset = 0x4, fixed_abs, tag = 'smem constant byte address 0x4 - core index']
  #allocation1 [shape = 'u32[72,128]{1,0:T(1,128)}', space=vmem, size = 0x9000, scoped, tag = 'internal scratch']
  %s0 = inlined_call_operand.vmem [shape: f32[2,16,8], index: 0, kind: input, shape index: {}]
  %s1 = inlined_call_operand.vmem [shape: bf16[16,32], index: 1, kind: input, shape index: {}]
  %s2 = inlined_call_operand.vmem [shape: f32[1,32], index: 2, kind: input, shape index: {}]
  %s3 = inlined_call_operand.vmem [shape: f32[8,32], index: 3, kind: input, shape index: {}]
  %s4 = inlined_call_operand.vmem [shape: f32[2,8,32], index: 4, kind: output, shape index: {}]
  %s5 = sld [smem:[#allocation0]]
  $region49: #{transducer_audio_encoder.3} parent=0
    _
  %s7 = ssub.s32 1, %s5
  %s8 = scalar_select 0, %s7, %s5
  loop: start=0, step=1, limit=4
  $region2: #{transducer_audio_encoder.3} parent=0 // loop_pre_header
    _
  $region3: #{transducer_audio_encoder.3} parent=0 // loop_header
    %s10 = sphi 0, %s14
    %p11 = scmp.ge.s32.totalorder %s10, 4
    %s20 = sphi 0, %s22
    %s23 = sphi 0, %s20
    %s24 = sphi 0, %s23
    %s40 = sphi 0, %s24
    %s44 = sphi 0, %s44
    %s46 = sphi 0, %s44
    %s47 = sphi 0, %s46
    %s61 = sphi 0, %s47
    %s65 = sphi 0, %s65
    %s67 = sphi 0, %s65
    %s68 = sphi 0, %s67
    %s82 = sphi 0, %s68
    %s86 = sphi 0, %s86
    %s88 = sphi 0, %s86
    %s89 = sphi 0, %s88
    %s103 = sphi 0, %s89
    %s109 = sphi 0, %s111
    %s112 = sphi 0, %s109
    %s113 = sphi 0, %s112
    %s129 = sphi 0, %s113
  $region4: #{transducer_audio_encoder.3} parent=0 // loop_header_branch
    %13 = sbr.rel (%p11) target = $region8
  $region5: #{transducer_audio_encoder.3} parent=0 // loop_body
    %s15 = ssub.s32 %s10, 1
    %s16 = ssub.s32 %s10, 2
    %s17 = sadd.s32 %s10, 1
    %s18 = ssub.s32 %s10, %s17
    %p19 = scmp.eq.s32.totalorder %s18, 0
    %s21 = sadd.s32 %s20, 1
    %s22 = scalar_select %p19, %s20, %s21
    %p25 = pneg %p19
    %p26 = scmp.eq.s32.totalorder %s10, 1
    %p27 = por %p25, %p26
    %p28 = scmp.ne.s32.totalorder %s20, %s23
    %p29 = scmp.eq.s32.totalorder %s10, 0
    %p30 = por %p28, %p29
    %p31 = scmp.ne.s32.totalorder %s20, %s23
    %p32 = scmp.eq.s32.totalorder %s15, 1
    %p33 = por %p31, %p32
    %p34 = scmp.ne.s32.totalorder %s23, %s24
    %p35 = scmp.eq.s32.totalorder %s15, 0
    %p36 = por %p34, %p35
    %p37 = scmp.ne.s32.totalorder %s23, %s24
    %p38 = scmp.eq.s32.totalorder %s16, 1
    %p39 = por %p37, %p38
    %p41 = scmp.ne.s32.totalorder %s24, %s40
    %p42 = scmp.eq.s32.totalorder %s16, 0
    %p43 = por %p41, %p42
    %s45 = sadd.s32 %s44, 1
    %p48 = scmp.eq.s32.totalorder %s10, 1
    %p49 = scmp.ne.s32.totalorder %s44, %s46
    %p50 = scmp.eq.s32.totalorder %s10, 0
    %p51 = por %p49, %p50
    %p52 = scmp.ne.s32.totalorder %s44, %s46
    %p53 = scmp.eq.s32.totalorder %s15, 1
    %p54 = por %p52, %p53
    %p55 = scmp.ne.s32.totalorder %s46, %s47
    %p56 = scmp.eq.s32.totalorder %s15, 0
    %p57 = por %p55, %p56
    %p58 = scmp.ne.s32.totalorder %s46, %s47
    %p59 = scmp.eq.s32.totalorder %s16, 1
    %p60 = por %p58, %p59
    %p62 = scmp.ne.s32.totalorder %s47, %s61
    %p63 = scmp.eq.s32.totalorder %s16, 0
    %p64 = por %p62, %p63
    %s66 = sadd.s32 %s65, 1
    %p69 = scmp.eq.s32.totalorder %s10, 1
    %p70 = scmp.ne.s32.totalorder %s65, %s67
    %p71 = scmp.eq.s32.totalorder %s10, 0
    %p72 = por %p70, %p71
    %p73 = scmp.ne.s32.totalorder %s65, %s67
    %p74 = scmp.eq.s32.totalorder %s15, 1
    %p75 = por %p73, %p74
    %p76 = scmp.ne.s32.totalorder %s67, %s68
    %p77 = scmp.eq.s32.totalorder %s15, 0
    %p78 = por %p76, %p77
    %p79 = scmp.ne.s32.totalorder %s67, %s68
    %p80 = scmp.eq.s32.totalorder %s16, 1
    %p81 = por %p79, %p80
    %p83 = scmp.ne.s32.totalorder %s68, %s82
    %p84 = scmp.eq.s32.totalorder %s16, 0
    %p85 = por %p83, %p84
    %s87 = sadd.s32 %s86, 1
    %p90 = scmp.eq.s32.totalorder %s10, 1
    %p91 = scmp.ne.s32.totalorder %s86, %s88
    %p92 = scmp.eq.s32.totalorder %s10, 0
    %p93 = por %p91, %p92
    %p94 = scmp.ne.s32.totalorder %s86, %s88
    %p95 = scmp.eq.s32.totalorder %s15, 1
    %p96 = por %p94, %p95
    %p97 = scmp.ne.s32.totalorder %s88, %s89
    %p98 = scmp.eq.s32.totalorder %s15, 0
    %p99 = por %p97, %p98
    %p100 = scmp.ne.s32.totalorder %s88, %s89
    %p101 = scmp.eq.s32.totalorder %s16, 1
    %p102 = por %p100, %p101
    %p104 = scmp.ne.s32.totalorder %s89, %s103
    %p105 = scmp.eq.s32.totalorder %s16, 0
    %p106 = por %p104, %p105
    %s107 = ssub.s32 %s10, %s17
    %p108 = scmp.eq.s32.totalorder %s107, 0
    %s110 = sadd.s32 %s109, 1
    %s111 = scalar_select %p108, %s109, %s110
    %p114 = pneg %p108
    %p115 = scmp.eq.s32.totalorder %s10, 1
    %p116 = por %p114, %p115
    %p117 = scmp.ne.s32.totalorder %s109, %s112
    %p118 = scmp.eq.s32.totalorder %s10, 0
    %p119 = por %p117, %p118
    %p120 = scmp.ne.s32.totalorder %s109, %s112
    %p121 = scmp.eq.s32.totalorder %s15, 1
    %p122 = por %p120, %p121
    %p123 = scmp.ne.s32.totalorder %s112, %s113
    %p124 = scmp.eq.s32.totalorder %s15, 0
    %p125 = por %p123, %p124
    %p126 = scmp.ne.s32.totalorder %s112, %s113
    %p127 = scmp.eq.s32.totalorder %s16, 1
    %p128 = por %p126, %p127
    %p130 = scmp.ne.s32.totalorder %s113, %s129
    %p131 = scmp.eq.s32.totalorder %s16, 0
    %p132 = por %p130, %p131
    %p133 = scmp.le.s32.totalorder 1, %s10
    %p134 = scmp.lt.s32.totalorder %s10, 3
    %p135 = pnand %p133, %p134
    %p136 = pneg %p135
    // Predicated region
    $region9: #{transducer_audio_encoder.3} parent=5 // pred_check
      _
    $region10: #{transducer_audio_encoder.3} parent=5 // pred_check_branch
      %138 = sbr.rel (%p135) target = $region12
    $region11: #{transducer_audio_encoder.3} parent=5 // pred_region
      %s139 = ssub.s32 %s10, 1
      // Predicated region
      $region13: #{transducer_audio_encoder.3} parent=11 // pred_check
        %p140 = pneg %p57
      $region14: #{transducer_audio_encoder.3} parent=11 // pred_check_branch
        %142 = sbr.rel (%p140) target = $region16
      $region15: #{transducer_audio_encoder.3} parent=11 // pred_region
        _
      $region16: #{transducer_audio_encoder.3} parent=11 // pred_fallthru
        _
      // Predicated region
      $region17: #{transducer_audio_encoder.3} parent=11 // pred_check
        %p143 = pneg %p78
      $region18: #{transducer_audio_encoder.3} parent=11 // pred_check_branch
        %145 = sbr.rel (%p143) target = $region20
      $region19: #{transducer_audio_encoder.3} parent=11 // pred_region
        _
      $region20: #{transducer_audio_encoder.3} parent=11 // pred_fallthru
        _
      // Predicated region
      $region21: #{transducer_audio_encoder.3} parent=11 // pred_check
        %p146 = pneg %p99
      $region22: #{transducer_audio_encoder.3} parent=11 // pred_check_branch
        %148 = sbr.rel (%p146) target = $region24
      $region23: #{transducer_audio_encoder.3} parent=11 // pred_region
        _
      $region24: #{transducer_audio_encoder.3} parent=11 // pred_fallthru
        _
    $region12: #{transducer_audio_encoder.3} parent=5 // pred_fallthru
      _
    %p149 = scmp.lt.s32.totalorder %s10, 2
    // Predicated region
    $region25: #{transducer_audio_encoder.3} parent=5 // pred_check
      %p150 = pneg %p149
    $region26: #{transducer_audio_encoder.3} parent=5 // pred_check_branch
      %152 = sbr.rel (%p150) target = $region28
    $region27: #{transducer_audio_encoder.3} parent=5 // pred_region
      // Predicated region
      $region29: #{transducer_audio_encoder.3} parent=27 // pred_check
        %p153 = pneg %p30
      $region30: #{transducer_audio_encoder.3} parent=27 // pred_check_branch
        %155 = sbr.rel (%p153) target = $region32
      $region31: #{transducer_audio_encoder.3} parent=27 // pred_region
        %p156 = scmp.lt.s32.totalorder %s10, 1
        %s157 = scalar_select %p156, %s10, 1
        %s158 = smul.addr %s157, 2
        %s159 = smul.addr %s158, 8
        %s160 = scalar_lea.vmem %s0, %s159
      $region32: #{transducer_audio_encoder.3} parent=27 // pred_fallthru
        _
    $region28: #{transducer_audio_encoder.3} parent=5 // pred_fallthru
      _
    %p161 = scmp.le.s32.totalorder 1, %s10
    %p162 = scmp.lt.s32.totalorder %s10, 3
    %p163 = pnand %p161, %p162
    %p164 = pneg %p163
    // Predicated region
    $region33: #{transducer_audio_encoder.3} parent=5 // pred_check
      _
    $region34: #{transducer_audio_encoder.3} parent=5 // pred_check_branch
      %166 = sbr.rel (%p163) target = $region36
    $region35: #{transducer_audio_encoder.3} parent=5 // pred_region
      %s167 = ssub.s32 %s10, 1
      %p168 = scmp.lt.s32.totalorder %s15, 1
      %s169 = scalar_select %p168, %s15, 1
      %s170 = smul.addr %s169, 2
      %s171 = smul.addr %s170, 8
      %s172 = scalar_lea.vmem %s0, %s171
      %p173 = pneg %p36
      %p174 = pneg %p33
      %p175 = pneg %p57
      %p176 = pneg %p54
      %p177 = pneg %p78
      %p178 = pneg %p75
      %p179 = pneg %p99
      %p180 = pneg %p96
      %p181 = pneg %p125
      %p182 = pneg %p122
      %p183 = scmp.lt.s32.totalorder %s15, 1
      %s184 = scalar_select %p183, %s15, 1
      %s185 = smul.addr %s184, 8
      %s186 = scalar_lea.vmem %s4, %s185
      %p187 = scmp.lt.s32.totalorder %s15, 1
      %s188 = scalar_select %p187, %s15, 1
      %s189 = smul.addr %s188, 2
      %s190 = smul.addr %s189, 8
      %s191 = scalar_lea.vmem %s0, %s190
      %p192 = scmp.lt.s32.totalorder %s15, 1
      %s193 = scalar_select %p192, %s15, 1
      %s194 = smul.addr %s193, 8
      %s195 = scalar_lea.vmem %s4, %s194
      %v197 = vld [vmem:[%s191] sm:$0xff]
      %v198 = vld [vmem:[%s191 + $0x8] sm:$0xff]
      %v199 = vpack.c.bf16 %v198, %v197
      %v200 = vld [vmem:[%s1] sm:$0xf]
      %v201 = vld [vmem:[%s1 + $0x4] sm:$0xf]
      %v202 = vld [vmem:[%s2] sm:$0x1]
      %v204 = vperm.slane %v202, 0
      %206 = vxpose.xlu0.c.b16.start [1/8] %v199, 128
      %207 = vxpose.xlu0.c.b16.cont [2/8] 0, 128
      %208 = vxpose.xlu0.c.b16.cont [3/8] 0, 128
      %209 = vxpose.xlu0.c.b16.cont [4/8] 0, 128
      %210 = vxpose.xlu0.c.b16.cont [5/8] 0, 128
      %211 = vxpose.xlu0.c.b16.cont [6/8] 0, 128
      %212 = vxpose.xlu0.c.b16.cont [7/8] 0, 128
      %213 = vxpose.xlu0.c.b16.end [8/8] 0, 128
      %v214 = vpop.trf.xlu0
      %v215 = vpop.trf.xlu0
      %v216 = vpop.trf.xlu0
      %v217 = vpop.trf.xlu0
      %v218 = vpop.trf.xlu0
      %v219 = vpop.trf.xlu0
      %v220 = vpop.trf.xlu0
      %v221 = vpop.trf.xlu0
      %v224 = vunpack.c.l.b16 %v200
      %v225 = vunpack.c.l.b16 %v201
      %v226 = vpack.c.b16 %v225, %v224
      %vm228 = vcmask 130048
      %v230 = vsel %vm228, %v214, 0
      %232 = vmatpush.bf16.msra.mxu0 0
      %233 = vmatpush.bf16.msra.mxu0 0
      %234 = vmatpush.bf16.msra.mxu0 0
      %235 = vmatpush.bf16.msra.mxu0 0
      %236 = vmatpush.bf16.msra.mxu0 0
      %237 = vmatpush.bf16.msra.mxu0 0
      %238 = vmatpush.bf16.msra.mxu0 0
      %239 = vmatpush.bf16.msra.mxu0 %v226
      %240 = vmatmul.bf16.gmra.mxu0 %v230
      %v241 = vpop.f32.mrf.mxu0
      %v242 = vadd.f32 %v204, %v241
      %v243 = vpop.f32.mrf.mxu0
      %244 = vdwg.mxu0
      %v245 = vld [vmem:[%s3] sm:$0xff]
      %v246 = vadd.f32 %v242, %v245
      %vm247 = vcmask 261120
      %248 = vst.msk [vmem:[%s195] sm:$0xff] %vm247, %v246
      %p249 = scmp.lt.s32.totalorder %s15, 1
      %s250 = scalar_select %p249, %s15, 1
      %s251 = smul.addr %s250, 8
      %s252 = scalar_lea.vmem %s4, %s251
      // Predicated region
      $region37: #{transducer_audio_encoder.3} parent=35 // pred_check
        %p253 = pneg %p122
      $region38: #{transducer_audio_encoder.3} parent=35 // pred_check_branch
        %255 = sbr.rel (%p253) target = $region40
      $region39: #{transducer_audio_encoder.3} parent=35 // pred_region
        _
      $region40: #{transducer_audio_encoder.3} parent=35 // pred_fallthru
        _
    $region36: #{transducer_audio_encoder.3} parent=5 // pred_fallthru
      _
    %p256 = scmp.le.s32.totalorder 2, %s10
    // Predicated region
    $region41: #{transducer_audio_encoder.3} parent=5 // pred_check
      %p257 = pneg %p256
    $region42: #{transducer_audio_encoder.3} parent=5 // pred_check_branch
      %259 = sbr.rel (%p257) target = $region44
    $region43: #{transducer_audio_encoder.3} parent=5 // pred_region
      %s260 = ssub.s32 %s10, 2
      // Predicated region
      $region45: #{transducer_audio_encoder.3} parent=43 // pred_check
        %p261 = pneg %p128
      $region46: #{transducer_audio_encoder.3} parent=43 // pred_check_branch
        %263 = sbr.rel (%p261) target = $region48
      $region47: #{transducer_audio_encoder.3} parent=43 // pred_region
        %p264 = scmp.lt.s32.totalorder %s16, 1
        %s265 = scalar_select %p264, %s16, 1
        %s266 = smul.addr %s265, 8
        %s267 = scalar_lea.vmem %s4, %s266
      $region48: #{transducer_audio_encoder.3} parent=43 // pred_fallthru
        _
    $region44: #{transducer_audio_encoder.3} parent=5 // pred_fallthru
      _
  $region6: #{transducer_audio_encoder.3} parent=0 // loop_footer
    %s14 = sadd.s32 1, %s10
  $region7: #{transducer_audio_encoder.3} parent=0 // loop_footer_branch
    %9 = sbr.rel target = $region3
  $region8: #{transducer_audio_encoder.3} parent=0 // loop_exit
    _

// kernel: transducer_audio_encoder.4
$region0: #{transducer_audio_encoder.4}
  #allocation0 [shape = 'u32[]', space=smem, size = 0x4, offset = 0x4, fixed_abs, tag = 'smem constant byte address 0x4 - core index']
  #allocation1 [shape = 'u32[72,128]{1,0:T(1,128)}', space=vmem, size = 0x9000, scoped, tag = 'internal scratch']
  #allocation2 [shape = 'bf16[8,96]{1,0:T(8,128)(2,1)}', space=vmem, size = 0x800, scoped, tag = 'scratch operand']
  #allocation3 [shape = 's32[1]{0}', space=sflag, size = 0x4, scoped, tag = 'scoped memory for transducer_audio_encoder.4']
  #allocation4 [shape = 'u8[512]{0}', space=smem, size = 0x200, scoped, tag = 'prefetched SMEM operand 0']
  %s0 = inlined_call_operand.vmem [shape: s32[2], index: 0, kind: input, shape index: {}]
  %s1 = inlined_call_operand.vmem [shape: f32[2,8,32], index: 1, kind: input, shape index: {}]
  %s2 = inlined_call_operand.vmem [shape: bf16[32,96], index: 2, kind: input, shape index: {}]
  %s3 = inlined_call_operand.vmem [shape: f32[1,96], index: 3, kind: input, shape index: {}]
  %s4 = inlined_call_operand.vmem [shape: bf16[32,32], index: 4, kind: input, shape index: {}]
  %s5 = inlined_call_operand.vmem [shape: f32[1,32], index: 5, kind: input, shape index: {}]
  %s6 = inlined_call_operand.vmem [shape: f32[1,32], index: 6, kind: input, shape index: {}]
  %s7 = inlined_call_operand.vmem [shape: f32[1,32], index: 7, kind: input, shape index: {}]
  %s8 = inlined_call_operand.vmem [shape: f32[1,32], index: 8, kind: input, shape index: {}]
  %s9 = inlined_call_operand.vmem [shape: f32[1,32], index: 9, kind: input, shape index: {}]
  %s10 = inlined_call_operand.vmem [shape: bf16[32,64], index: 10, kind: input, shape index: {}]
  %s11 = inlined_call_operand.vmem [shape: f32[1,64], index: 11, kind: input, shape index: {}]
  %s12 = inlined_call_operand.vmem [shape: bf16[64,32], index: 12, kind: input, shape index: {}]
  %s13 = inlined_call_operand.vmem [shape: f32[1,32], index: 13, kind: input, shape index: {}]
  %s14 = inlined_call_operand.vmem [shape: f32[2,8,32], index: 14, kind: output, shape index: {}]
  %s15 = sld [smem:[#allocation0]]
  $region89: #{transducer_audio_encoder.4} parent=0
    _
  %s17 = ssub.s32 1, %s15
  %s18 = scalar_select 0, %s17, %s15
  %s20 = sshll.u32 %s0, 4
  %s21 = int_to_ptr.vmem [resolvable:$true] %s20
  %23 = dma.vmem_to_smem %s21, 16, [#allocation4], [#allocation3]
  %25 = dma.done [#allocation3], 16
  %26 = sfence
  loop: start=0, step=1, limit=4
  $region2: #{transducer_audio_encoder.4} parent=0 // loop_pre_header
    _
  $region3: #{transducer_audio_encoder.4} parent=0 // loop_header
    %s28 = sphi 0, %s32
    %p29 = scmp.ge.s32.totalorder %s28, 4
    %s35 = sphi 0, %s47
    %s36 = sphi 0, %s43
    %s37 = sphi 0, %s35
    %s38 = sphi 0, %s36
    %s39 = sphi 0, %s37
    %s40 = sphi 0, %s38
    %s50 = sphi 0, %s52
    %s53 = sphi 0, %s50
    %s54 = sphi 0, %s53
    %s70 = sphi 0, %s54
    %s74 = sphi 0, %s74
    %s76 = sphi 0, %s74
    %s77 = sphi 0, %s76
    %s91 = sphi 0, %s77
    %s95 = sphi 0, %s95
    %s97 = sphi 0, %s95
    %s98 = sphi 0, %s97
    %s112 = sphi 0, %s98
    %s116 = sphi 0, %s116
    %s118 = sphi 0, %s116
    %s119 = sphi 0, %s118
    %s133 = sphi 0, %s119
    %s137 = sphi 0, %s137
    %s139 = sphi 0, %s137
    %s140 = sphi 0, %s139
    %s154 = sphi 0, %s140
    %s158 = sphi 0, %s158
    %s160 = sphi 0, %s158
    %s161 = sphi 0, %s160
    %s175 = sphi 0, %s161
    %s179 = sphi 0, %s179
    %s181 = sphi 0, %s179
    %s182 = sphi 0, %s181
    %s196 = sphi 0, %s182
    %s200 = sphi 0, %s200
    %s202 = sphi 0, %s200
    %s203 = sphi 0, %s202
    %s217 = sphi 0, %s203
    %s221 = sphi 0, %s221
    %s223 = sphi 0, %s221
    %s224 = sphi 0, %s223
    %s238 = sphi 0, %s224
    %s242 = sphi 0, %s242
    %s244 = sphi 0, %s242
    %s245 = sphi 0, %s244
    %s259 = sphi 0, %s245
    %s263 = sphi 0, %s263
    %s265 = sphi 0, %s263
    %s266 = sphi 0, %s265
    %s280 = sphi 0, %s266
    %s284 = sphi 0, %s284
    %s286 = sphi 0, %s284
    %s287 = sphi 0, %s286
    %s301 = sphi 0, %s287
    %s305 = sphi 0, %s305
    %s307 = sphi 0, %s305
    %s308 = sphi 0, %s307
    %s322 = sphi 0, %s308
    %s330 = sphi 0, %s332
    %s333 = sphi 0, %s330
    %s334 = sphi 0, %s333
    %s350 = sphi 0, %s334
  $region4: #{transducer_audio_encoder.4} parent=0 // loop_header_branch
    %31 = sbr.rel (%p29) target = $region8
  $region5: #{transducer_audio_encoder.4} parent=0 // loop_body
    %s33 = ssub.s32 %s28, 1
    %s34 = ssub.s32 %s28, 2
    %s41 = sadd.s32 1, %s36
    %p42 = scmp.ge.s32.totalorder %s41, 1
    %s43 = scalar_select %p42, 0, %s41
    %s44 = sadd.s32 1, %s35
    %s45 = scalar_select %p42, %s44, %s35
    %p46 = scmp.ge.s32.totalorder %s45, 2
    %s47 = scalar_select %p46, 0, %s45
    %s48 = ssub.s32 %s35, %s47
    %p49 = scmp.eq.s32.totalorder %s48, 0
    %s51 = sadd.s32 %s50, 1
    %s52 = scalar_select %p49, %s50, %s51
    %p55 = pneg %p49
    %p56 = scmp.eq.s32.totalorder %s28, 1
    %p57 = por %p55, %p56
    %p58 = scmp.ne.s32.totalorder %s50, %s53
    %p59 = scmp.eq.s32.totalorder %s28, 0
    %p60 = por %p58, %p59
    %p61 = scmp.ne.s32.totalorder %s50, %s53
    %p62 = scmp.eq.s32.totalorder %s33, 1
    %p63 = por %p61, %p62
    %p64 = scmp.ne.s32.totalorder %s53, %s54
    %p65 = scmp.eq.s32.totalorder %s33, 0
    %p66 = por %p64, %p65
    %p67 = scmp.ne.s32.totalorder %s53, %s54
    %p68 = scmp.eq.s32.totalorder %s34, 1
    %p69 = por %p67, %p68
    %p71 = scmp.ne.s32.totalorder %s54, %s70
    %p72 = scmp.eq.s32.totalorder %s34, 0
    %p73 = por %p71, %p72
    %s75 = sadd.s32 %s74, 1
    %p78 = scmp.eq.s32.totalorder %s28, 1
    %p79 = scmp.ne.s32.totalorder %s74, %s76
    %p80 = scmp.eq.s32.totalorder %s28, 0
    %p81 = por %p79, %p80
    %p82 = scmp.ne.s32.totalorder %s74, %s76
    %p83 = scmp.eq.s32.totalorder %s33, 1
    %p84 = por %p82, %p83
    %p85 = scmp.ne.s32.totalorder %s76, %s77
    %p86 = scmp.eq.s32.totalorder %s33, 0
    %p87 = por %p85, %p86
    %p88 = scmp.ne.s32.totalorder %s76, %s77
    %p89 = scmp.eq.s32.totalorder %s34, 1
    %p90 = por %p88, %p89
    %p92 = scmp.ne.s32.totalorder %s77, %s91
    %p93 = scmp.eq.s32.totalorder %s34, 0
    %p94 = por %p92, %p93
    %s96 = sadd.s32 %s95, 1
    %p99 = scmp.eq.s32.totalorder %s28, 1
    %p100 = scmp.ne.s32.totalorder %s95, %s97
    %p101 = scmp.eq.s32.totalorder %s28, 0
    %p102 = por %p100, %p101
    %p103 = scmp.ne.s32.totalorder %s95, %s97
    %p104 = scmp.eq.s32.totalorder %s33, 1
    %p105 = por %p103, %p104
    %p106 = scmp.ne.s32.totalorder %s97, %s98
    %p107 = scmp.eq.s32.totalorder %s33, 0
    %p108 = por %p106, %p107
    %p109 = scmp.ne.s32.totalorder %s97, %s98
    %p110 = scmp.eq.s32.totalorder %s34, 1
    %p111 = por %p109, %p110
    %p113 = scmp.ne.s32.totalorder %s98, %s112
    %p114 = scmp.eq.s32.totalorder %s34, 0
    %p115 = por %p113, %p114
    %s117 = sadd.s32 %s116, 1
    %p120 = scmp.eq.s32.totalorder %s28, 1
    %p121 = scmp.ne.s32.totalorder %s116, %s118
    %p122 = scmp.eq.s32.totalorder %s28, 0
    %p123 = por %p121, %p122
    %p124 = scmp.ne.s32.totalorder %s116, %s118
    %p125 = scmp.eq.s32.totalorder %s33, 1
    %p126 = por %p124, %p125
    %p127 = scmp.ne.s32.totalorder %s118, %s119
    %p128 = scmp.eq.s32.totalorder %s33, 0
    %p129 = por %p127, %p128
    %p130 = scmp.ne.s32.totalorder %s118, %s119
    %p131 = scmp.eq.s32.totalorder %s34, 1
    %p132 = por %p130, %p131
    %p134 = scmp.ne.s32.totalorder %s119, %s133
    %p135 = scmp.eq.s32.totalorder %s34, 0
    %p136 = por %p134, %p135
    %s138 = sadd.s32 %s137, 1
    %p141 = scmp.eq.s32.totalorder %s28, 1
    %p142 = scmp.ne.s32.totalorder %s137, %s139
    %p143 = scmp.eq.s32.totalorder %s28, 0
    %p144 = por %p142, %p143
    %p145 = scmp.ne.s32.totalorder %s137, %s139
    %p146 = scmp.eq.s32.totalorder %s33, 1
    %p147 = por %p145, %p146
    %p148 = scmp.ne.s32.totalorder %s139, %s140
    %p149 = scmp.eq.s32.totalorder %s33, 0
    %p150 = por %p148, %p149
    %p151 = scmp.ne.s32.totalorder %s139, %s140
    %p152 = scmp.eq.s32.totalorder %s34, 1
    %p153 = por %p151, %p152
    %p155 = scmp.ne.s32.totalorder %s140, %s154
    %p156 = scmp.eq.s32.totalorder %s34, 0
    %p157 = por %p155, %p156
    %s159 = sadd.s32 %s158, 1
    %p162 = scmp.eq.s32.totalorder %s28, 1
    %p163 = scmp.ne.s32.totalorder %s158, %s160
    %p164 = scmp.eq.s32.totalorder %s28, 0
    %p165 = por %p163, %p164
    %p166 = scmp.ne.s32.totalorder %s158, %s160
    %p167 = scmp.eq.s32.totalorder %s33, 1
    %p168 = por %p166, %p167
    %p169 = scmp.ne.s32.totalorder %s160, %s161
    %p170 = scmp.eq.s32.totalorder %s33, 0
    %p171 = por %p169, %p170
    %p172 = scmp.ne.s32.totalorder %s160, %s161
    %p173 = scmp.eq.s32.totalorder %s34, 1
    %p174 = por %p172, %p173
    %p176 = scmp.ne.s32.totalorder %s161, %s175
    %p177 = scmp.eq.s32.totalorder %s34, 0
    %p178 = por %p176, %p177
    %s180 = sadd.s32 %s179, 1
    %p183 = scmp.eq.s32.totalorder %s28, 1
    %p184 = scmp.ne.s32.totalorder %s179, %s181
    %p185 = scmp.eq.s32.totalorder %s28, 0
    %p186 = por %p184, %p185
    %p187 = scmp.ne.s32.totalorder %s179, %s181
    %p188 = scmp.eq.s32.totalorder %s33, 1
    %p189 = por %p187, %p188
    %p190 = scmp.ne.s32.totalorder %s181, %s182
    %p191 = scmp.eq.s32.totalorder %s33, 0
    %p192 = por %p190, %p191
    %p193 = scmp.ne.s32.totalorder %s181, %s182
    %p194 = scmp.eq.s32.totalorder %s34, 1
    %p195 = por %p193, %p194
    %p197 = scmp.ne.s32.totalorder %s182, %s196
    %p198 = scmp.eq.s32.totalorder %s34, 0
    %p199 = por %p197, %p198
    %s201 = sadd.s32 %s200, 1
    %p204 = scmp.eq.s32.totalorder %s28, 1
    %p205 = scmp.ne.s32.totalorder %s200, %s202
    %p206 = scmp.eq.s32.totalorder %s28, 0
    %p207 = por %p205, %p206
    %p208 = scmp.ne.s32.totalorder %s200, %s202
    %p209 = scmp.eq.s32.totalorder %s33, 1
    %p210 = por %p208, %p209
    %p211 = scmp.ne.s32.totalorder %s202, %s203
    %p212 = scmp.eq.s32.totalorder %s33, 0
    %p213 = por %p211, %p212
    %p214 = scmp.ne.s32.totalorder %s202, %s203
    %p215 = scmp.eq.s32.totalorder %s34, 1
    %p216 = por %p214, %p215
    %p218 = scmp.ne.s32.totalorder %s203, %s217
    %p219 = scmp.eq.s32.totalorder %s34, 0
    %p220 = por %p218, %p219
    %s222 = sadd.s32 %s221, 1
    %p225 = scmp.eq.s32.totalorder %s28, 1
    %p226 = scmp.ne.s32.totalorder %s221, %s223
    %p227 = scmp.eq.s32.totalorder %s28, 0
    %p228 = por %p226, %p227
    %p229 = scmp.ne.s32.totalorder %s221, %s223
    %p230 = scmp.eq.s32.totalorder %s33, 1
    %p231 = por %p229, %p230
    %p232 = scmp.ne.s32.totalorder %s223, %s224
    %p233 = scmp.eq.s32.totalorder %s33, 0
    %p234 = por %p232, %p233
    %p235 = scmp.ne.s32.totalorder %s223, %s224
    %p236 = scmp.eq.s32.totalorder %s34, 1
    %p237 = por %p235, %p236
    %p239 = scmp.ne.s32.totalorder %s224, %s238
    %p240 = scmp.eq.s32.totalorder %s34, 0
    %p241 = por %p239, %p240
    %s243 = sadd.s32 %s242, 1
    %p246 = scmp.eq.s32.totalorder %s28, 1
    %p247 = scmp.ne.s32.totalorder %s242, %s244
    %p248 = scmp.eq.s32.totalorder %s28, 0
    %p249 = por %p247, %p248
    %p250 = scmp.ne.s32.totalorder %s242, %s244
    %p251 = scmp.eq.s32.totalorder %s33, 1
    %p252 = por %p250, %p251
    %p253 = scmp.ne.s32.totalorder %s244, %s245
    %p254 = scmp.eq.s32.totalorder %s33, 0
    %p255 = por %p253, %p254
    %p256 = scmp.ne.s32.totalorder %s244, %s245
    %p257 = scmp.eq.s32.totalorder %s34, 1
    %p258 = por %p256, %p257
    %p260 = scmp.ne.s32.totalorder %s245, %s259
    %p261 = scmp.eq.s32.totalorder %s34, 0
    %p262 = por %p260, %p261
    %s264 = sadd.s32 %s263, 1
    %p267 = scmp.eq.s32.totalorder %s28, 1
    %p268 = scmp.ne.s32.totalorder %s263, %s265
    %p269 = scmp.eq.s32.totalorder %s28, 0
    %p270 = por %p268, %p269
    %p271 = scmp.ne.s32.totalorder %s263, %s265
    %p272 = scmp.eq.s32.totalorder %s33, 1
    %p273 = por %p271, %p272
    %p274 = scmp.ne.s32.totalorder %s265, %s266
    %p275 = scmp.eq.s32.totalorder %s33, 0
    %p276 = por %p274, %p275
    %p277 = scmp.ne.s32.totalorder %s265, %s266
    %p278 = scmp.eq.s32.totalorder %s34, 1
    %p279 = por %p277, %p278
    %p281 = scmp.ne.s32.totalorder %s266, %s280
    %p282 = scmp.eq.s32.totalorder %s34, 0
    %p283 = por %p281, %p282
    %s285 = sadd.s32 %s284, 1
    %p288 = scmp.eq.s32.totalorder %s28, 1
    %p289 = scmp.ne.s32.totalorder %s284, %s286
    %p290 = scmp.eq.s32.totalorder %s28, 0
    %p291 = por %p289, %p290
    %p292 = scmp.ne.s32.totalorder %s284, %s286
    %p293 = scmp.eq.s32.totalorder %s33, 1
    %p294 = por %p292, %p293
    %p295 = scmp.ne.s32.totalorder %s286, %s287
    %p296 = scmp.eq.s32.totalorder %s33, 0
    %p297 = por %p295, %p296
    %p298 = scmp.ne.s32.totalorder %s286, %s287
    %p299 = scmp.eq.s32.totalorder %s34, 1
    %p300 = por %p298, %p299
    %p302 = scmp.ne.s32.totalorder %s287, %s301
    %p303 = scmp.eq.s32.totalorder %s34, 0
    %p304 = por %p302, %p303
    %s306 = sadd.s32 %s305, 1
    %p309 = scmp.eq.s32.totalorder %s28, 1
    %p310 = scmp.ne.s32.totalorder %s305, %s307
    %p311 = scmp.eq.s32.totalorder %s28, 0
    %p312 = por %p310, %p311
    %p313 = scmp.ne.s32.totalorder %s305, %s307
    %p314 = scmp.eq.s32.totalorder %s33, 1
    %p315 = por %p313, %p314
    %p316 = scmp.ne.s32.totalorder %s307, %s308
    %p317 = scmp.eq.s32.totalorder %s33, 0
    %p318 = por %p316, %p317
    %p319 = scmp.ne.s32.totalorder %s307, %s308
    %p320 = scmp.eq.s32.totalorder %s34, 1
    %p321 = por %p319, %p320
    %p323 = scmp.ne.s32.totalorder %s308, %s322
    %p324 = scmp.eq.s32.totalorder %s34, 0
    %p325 = por %p323, %p324
    %s326 = ssub.s32 %s35, %s47
    %s327 = ssub.s32 %s36, %s43
    %s328 = sor.u32 %s326, %s327
    %p329 = scmp.eq.s32.totalorder %s328, 0
    %s331 = sadd.s32 %s330, 1
    %s332 = scalar_select %p329, %s330, %s331
    %p335 = pneg %p329
    %p336 = scmp.eq.s32.totalorder %s28, 1
    %p337 = por %p335, %p336
    %p338 = scmp.ne.s32.totalorder %s330, %s333
    %p339 = scmp.eq.s32.totalorder %s28, 0
    %p340 = por %p338, %p339
    %p341 = scmp.ne.s32.totalorder %s330, %s333
    %p342 = scmp.eq.s32.totalorder %s33, 1
    %p343 = por %p341, %p342
    %p344 = scmp.ne.s32.totalorder %s333, %s334
    %p345 = scmp.eq.s32.totalorder %s33, 0
    %p346 = por %p344, %p345
    %p347 = scmp.ne.s32.totalorder %s333, %s334
    %p348 = scmp.eq.s32.totalorder %s34, 1
    %p349 = por %p347, %p348
    %p351 = scmp.ne.s32.totalorder %s334, %s350
    %p352 = scmp.eq.s32.totalorder %s34, 0
    %p353 = por %p351, %p352
    %p354 = scmp.le.s32.totalorder 1, %s28
    %p355 = scmp.lt.s32.totalorder %s28, 3
    %p356 = pnand %p354, %p355
    %p357 = pneg %p356
    // Predicated region
    $region9: #{transducer_audio_encoder.4} parent=5 // pred_check
      _
    $region10: #{transducer_audio_encoder.4} parent=5 // pred_check_branch
      %359 = sbr.rel (%p356) target = $region12
    $region11: #{transducer_audio_encoder.4} parent=5 // pred_region
      %s360 = ssub.s32 %s28, 1
      // Predicated region
      $region13: #{transducer_audio_encoder.4} parent=11 // pred_check
        %p361 = pneg %p87
      $region14: #{transducer_audio_encoder.4} parent=11 // pred_check_branch
        %363 = sbr.rel (%p361) target = $region16
      $region15: #{transducer_audio_encoder.4} parent=11 // pred_region
        _
      $region16: #{transducer_audio_encoder.4} parent=11 // pred_fallthru
        _
      // Predicated region
      $region17: #{transducer_audio_encoder.4} parent=11 // pred_check
        %p364 = pneg %p108
      $region18: #{transducer_audio_encoder.4} parent=11 // pred_check_branch
        %366 = sbr.rel (%p364) target = $region20
      $region19: #{transducer_audio_encoder.4} parent=11 // pred_region
        _
      $region20: #{transducer_audio_encoder.4} parent=11 // pred_fallthru
        _
      // Predicated region
      $region21: #{transducer_audio_encoder.4} parent=11 // pred_check
        %p367 = pneg %p129
      $region22: #{transducer_audio_encoder.4} parent=11 // pred_check_branch
        %369 = sbr.rel (%p367) target = $region24
      $region23: #{transducer_audio_encoder.4} parent=11 // pred_region
        _
      $region24: #{transducer_audio_encoder.4} parent=11 // pred_fallthru
        _
      // Predicated region
      $region25: #{transducer_audio_encoder.4} parent=11 // pred_check
        %p370 = pneg %p150
      $region26: #{transducer_audio_encoder.4} parent=11 // pred_check_branch
        %372 = sbr.rel (%p370) target = $region28
      $region27: #{transducer_audio_encoder.4} parent=11 // pred_region
        _
      $region28: #{transducer_audio_encoder.4} parent=11 // pred_fallthru
        _
      // Predicated region
      $region29: #{transducer_audio_encoder.4} parent=11 // pred_check
        %p373 = pneg %p171
      $region30: #{transducer_audio_encoder.4} parent=11 // pred_check_branch
        %375 = sbr.rel (%p373) target = $region32
      $region31: #{transducer_audio_encoder.4} parent=11 // pred_region
        _
      $region32: #{transducer_audio_encoder.4} parent=11 // pred_fallthru
        _
      // Predicated region
      $region33: #{transducer_audio_encoder.4} parent=11 // pred_check
        %p376 = pneg %p192
      $region34: #{transducer_audio_encoder.4} parent=11 // pred_check_branch
        %378 = sbr.rel (%p376) target = $region36
      $region35: #{transducer_audio_encoder.4} parent=11 // pred_region
        _
      $region36: #{transducer_audio_encoder.4} parent=11 // pred_fallthru
        _
      // Predicated region
      $region37: #{transducer_audio_encoder.4} parent=11 // pred_check
        %p379 = pneg %p213
      $region38: #{transducer_audio_encoder.4} parent=11 // pred_check_branch
        %381 = sbr.rel (%p379) target = $region40
      $region39: #{transducer_audio_encoder.4} parent=11 // pred_region
        _
      $region40: #{transducer_audio_encoder.4} parent=11 // pred_fallthru
        _
      // Predicated region
      $region41: #{transducer_audio_encoder.4} parent=11 // pred_check
        %p382 = pneg %p234
      $region42: #{transducer_audio_encoder.4} parent=11 // pred_check_branch
        %384 = sbr.rel (%p382) target = $region44
      $region43: #{transducer_audio_encoder.4} parent=11 // pred_region
        _
      $region44: #{transducer_audio_encoder.4} parent=11 // pred_fallthru
        _
      // Predicated region
      $region45: #{transducer_audio_encoder.4} parent=11 // pred_check
        %p385 = pneg %p255
      $region46: #{transducer_audio_encoder.4} parent=11 // pred_check_branch
        %387 = sbr.rel (%p385) target = $region48
      $region47: #{transducer_audio_encoder.4} parent=11 // pred_region
        _
      $region48: #{transducer_audio_encoder.4} parent=11 // pred_fallthru
        _
      // Predicated region
      $region49: #{transducer_audio_encoder.4} parent=11 // pred_check
        %p388 = pneg %p276
      $region50: #{transducer_audio_encoder.4} parent=11 // pred_check_branch
        %390 = sbr.rel (%p388) target = $region52
      $region51: #{transducer_audio_encoder.4} parent=11 // pred_region
        _
      $region52: #{transducer_audio_encoder.4} parent=11 // pred_fallthru
        _
      // Predicated region
      $region53: #{transducer_audio_encoder.4} parent=11 // pred_check
        %p391 = pneg %p297
      $region54: #{transducer_audio_encoder.4} parent=11 // pred_check_branch
        %393 = sbr.rel (%p391) target = $region56
      $region55: #{transducer_audio_encoder.4} parent=11 // pred_region
        _
      $region56: #{transducer_audio_encoder.4} parent=11 // pred_fallthru
        _
      // Predicated region
      $region57: #{transducer_audio_encoder.4} parent=11 // pred_check
        %p394 = pneg %p318
      $region58: #{transducer_audio_encoder.4} parent=11 // pred_check_branch
        %396 = sbr.rel (%p394) target = $region60
      $region59: #{transducer_audio_encoder.4} parent=11 // pred_region
        _
      $region60: #{transducer_audio_encoder.4} parent=11 // pred_fallthru
        _
    $region12: #{transducer_audio_encoder.4} parent=5 // pred_fallthru
      _
    %p397 = scmp.lt.s32.totalorder %s28, 2
    // Predicated region
    $region61: #{transducer_audio_encoder.4} parent=5 // pred_check
      %p398 = pneg %p397
    $region62: #{transducer_audio_encoder.4} parent=5 // pred_check_branch
      %400 = sbr.rel (%p398) target = $region64
    $region63: #{transducer_audio_encoder.4} parent=5 // pred_region
      // Predicated region
      $region65: #{transducer_audio_encoder.4} parent=63 // pred_check
        %p401 = pneg %p60
      $region66: #{transducer_audio_encoder.4} parent=63 // pred_check_branch
        %403 = sbr.rel (%p401) target = $region68
      $region67: #{transducer_audio_encoder.4} parent=63 // pred_region
        %p404 = scmp.lt.s32.totalorder %s35, 1
        %s405 = scalar_select %p404, %s35, 1
        %s406 = smul.addr %s405, 8
        %s407 = scalar_lea.vmem %s1, %s406
      $region68: #{transducer_audio_encoder.4} parent=63 // pred_fallthru
        _
    $region64: #{transducer_audio_encoder.4} parent=5 // pred_fallthru
      _
    %p408 = scmp.le.s32.totalorder 1, %s28
    %p409 = scmp.lt.s32.totalorder %s28, 3
    %p410 = pnand %p408, %p409
    %p411 = pneg %p410
    // Predicated region
    $region69: #{transducer_audio_encoder.4} parent=5 // pred_check
      _
    $region70: #{transducer_audio_encoder.4} parent=5 // pred_check_branch
      %413 = sbr.rel (%p410) target = $region72
    $region71: #{transducer_audio_encoder.4} parent=5 // pred_region
      %s414 = ssub.s32 %s28, 1
      %p415 = scmp.lt.s32.totalorder %s37, 1
      %s416 = scalar_select %p415, %s37, 1
      %s417 = smul.addr %s416, 8
      %s418 = scalar_lea.vmem %s1, %s417
      %p419 = pneg %p66
      %p420 = pneg %p63
      %p421 = pneg %p87
      %p422 = pneg %p84
      %p423 = pneg %p108
      %p424 = pneg %p105
      %p425 = pneg %p129
      %p426 = pneg %p126
      %p427 = pneg %p150
      %p428 = pneg %p147
      %p429 = pneg %p171
      %p430 = pneg %p168
      %p431 = pneg %p192
      %p432 = pneg %p189
      %p433 = pneg %p213
      %p434 = pneg %p210
      %p435 = pneg %p234
      %p436 = pneg %p231
      %p437 = pneg %p255
      %p438 = pneg %p252
      %p439 = pneg %p276
      %p440 = pneg %p273
      %p441 = pneg %p297
      %p442 = pneg %p294
      %p443 = pneg %p318
      %p444 = pneg %p315
      %p445 = pneg %p346
      %p446 = pneg %p343
      %p447 = scmp.lt.s32.totalorder %s37, 1
      %s448 = scalar_select %p447, %s37, 1
      %p449 = scmp.lt.s32.totalorder %s38, 0
      %s450 = scalar_select %p449, %s38, 0
      %s451 = sadd.s32 %s450, %s448
      %s452 = smul.addr %s451, 8
      %s453 = scalar_lea.vmem %s14, %s452
      %p454 = scmp.lt.s32.totalorder %s37, 1
      %s455 = scalar_select %p454, %s37, 1
      %s456 = smul.addr %s455, 8
      %s457 = scalar_lea.vmem %s1, %s456
      %p458 = scmp.lt.s32.totalorder %s37, 1
      %s459 = scalar_select %p458, %s37, 1
      %p460 = scmp.lt.s32.totalorder %s38, 0
      %s461 = scalar_select %p460, %s38, 0
      %s462 = sadd.s32 %s461, %s459
      %s463 = smul.addr %s462, 8
      %s464 = scalar_lea.vmem %s14, %s463
      %p466 = scmp.eq.s32.totalorder %s38, 0
      // Predicated region
      $region73: #{transducer_audio_encoder.4} parent=71 // pred_check
        %p467 = pneg %p466
      $region74: #{transducer_audio_encoder.4} parent=71 // pred_check_branch
        %469 = sbr.rel (%p467) target = $region76
      $region75: #{transducer_audio_encoder.4} parent=71 // pred_region
        %v470 = vld [vmem:[%s457] sm:$0xff]
        %vm471 = vcmask 261120
        %v472 = vsel %vm471, %v470, 0.0
        %473 = vadd.xlane.f32.xlu0 %v472
        %v474 = vpop.xlane.xlu0 %473
        %v475 = vrcp.pop 32.0
        %v476 = vmul.f32 32.0, %v475
        %v477 = vsub.f32 1.0, %v476
        %v478 = vmul.f32 %v475, %v477
        %v479 = vadd.f32 %v475, %v478
        %vm480 = vweird.f32 %v475
        %v481 = vsel %vm480, %v475, %v479
        %v482 = vmul.f32 %v474, %v481
        %v483 = vsub.f32 %v470, %v482
        %v484 = vmul.f32 %v483, %v483
        %v485 = vsel %vm471, %v484, 0.0
        %486 = vadd.xlane.f32.xlu0 %v485
        %v487 = vpop.xlane.xlu0 %486
        %v488 = vmul.f32 %v487, %v481
        %v489 = vadd.f32 %v488, 1e-05
        %v490 = vrsqrt.pop %v489
        %v491 = vmul.f32 %v490, %v489
        %v492 = vmul.f32 %v491, %v490
        %v493 = vmul.f32 0.5, %v492
        %v494 = vsub.f32 1.5, %v493
        %v495 = vmul.f32 %v490, %v494
        %vm496 = vweird.f32 %v489
        %vm497 = vweird.f32 %v490
        %vm498 = vmor %vm496, %vm497
        %v499 = vsel %vm498, %v490, %v495
        %v500 = vmul.f32 %v483, %v499
        %v501 = vld [vmem:[%s6] sm:$0x1]
        %v503 = vperm.slane %v501, 0
        %v505 = vmul.f32 %v500, %v503
        %v506 = vld [vmem:[%s7] sm:$0x1]
        %v508 = vperm.slane %v506, 0
        %v510 = vadd.f32 %v505, %v508
        %v511 = vpack.c.bf16 %v510, %v510
        %v512 = vld [vmem:[%s2] sm:$0xf]
        %v513 = vld [vmem:[%s2 + $0x4] sm:$0xf]
        %v514 = vld [vmem:[%s2 + $0x8] sm:$0xf]
        %v515 = vld [vmem:[%s2 + $0xc] sm:$0xf]
        %v516 = vld [vmem:[%s3] sm:$0x1]
        %v518 = vperm.slane %v516, 0
        %v524 = vunpack.c.l.b16 %v512
        %v525 = vunpack.c.l.b16 %v513
        %v526 = vunpack.c.l.b16 %v514
        %v527 = vunpack.c.l.b16 %v515
        %v528 = vpack.c.b16 %v525, %v524
        %v529 = vpack.c.b16 %v527, %v526
        %v533 = vsel %vm471, %v511, 0
        %535 = vmatpush.bf16.msra.mxu0 0
        %536 = vmatpush.bf16.msra.mxu0 0
        %537 = vmatpush.bf16.msra.mxu0 0
        %538 = vmatpush.bf16.msra.mxu0 0
        %539 = vmatpush.bf16.msra.mxu0 0
        %540 = vmatpush.bf16.msra.mxu0 0
        %541 = vmatpush.bf16.msra.mxu0 %v529
        %542 = vmatpush.bf16.msra.mxu0 %v528
        %543 = vmatmul.bf16.gmra.mxu0 %v533
        %v544 = vpop.f32.mrf.mxu0
        %v545 = vadd.f32 %v518, %v544
        %v546 = vpop.f32.mrf.mxu0
        %547 = vdwg.mxu0
        %v548 = vpack.c.bf16 %v545, %v545
        %vm549 = vcmask 781312
        %550 = vst.msk [vmem:[#allocation2] sm:$0xf] %vm549, %v548
      $region76: #{transducer_audio_encoder.4} parent=71 // pred_fallthru
        _
      %s551 = smul.u32 %s38, 8
      %s552 = scalar_lea.vmem %s457, %s551
      %v553 = vld [vmem:[%s552] sm:$0xff]
      %s554 = sshra.s32 %s551, 3
      %s555 = sand.u32 %s551, 7
      %s556 = smul.addr %s554, 4
      %s557 = scalar_lea.vmem [#allocation2], %s556
      %v558 = vld [vmem:[%s557] sm:$0xf]
      %v559 = vlaneseq
      %v560 = vand.u32 %v559, 127
      %s561 = sld [smem:[#allocation4 + %s37]]
      %v562 = vstv %s561
      %vm563 = vcmp.ge.s32.totalorder %v560, %v562
      %v564 = vld [vmem:[#allocation2] sm:$0xf]
      %v566 = vunpack.c.l.b16 %v564
      %v567 = vpack.c.b16 %v566, %v566
      %568 = vrot.lane.b32.xlu0 %v567, 96
      %v569 = vpop.permute.xlu0 %568
      %vm570 = vcmask 64512
      %v572 = vsel %vm570, %v558, 0
      %v575 = vsel %vm570, %v569, 0
      %577 = vmatpush.bf16.xpose.msra.mxu0 0
      %578 = vmatpush.bf16.xpose.msra.mxu0 0
      %579 = vmatpush.bf16.xpose.msra.mxu0 0
      %580 = vmatpush.bf16.xpose.msra.mxu0 0
      %581 = vmatpush.bf16.xpose.msra.mxu0 0
      %582 = vmatpush.bf16.xpose.msra.mxu0 0
      %583 = vmatpush.bf16.xpose.msra.mxu0 0
      %584 = vmatpush.bf16.xpose.msra.mxu0 %v575
      %585 = vmatmul.bf16.gmra.mxu0 %v572
      %v586 = vpop.f32.mrf.mxu0
      %v587 = vadd.f32 0.0, %v586
      %v588 = vpop.f32.mrf.mxu0
      %589 = vdwg.mxu0
      %v590 = vmul.f32 %v587, 0.35355338
      %v591 = vsel %vm563, 1, 0
      %vm592 = vcmp.eq.s32.totalorder %v591, 1
      %v593 = vsel %vm592, -1e+09, %v590
      %v594 = vsel %vm570, %v593, -inf
      %595 = vmax.xlane.f32.xlu0 %v594
      %v596 = vpop.xlane.xlu0 %595
      %v597 = vsub.f32 %v593, %v596
      %v598 = vmul.f32 %v597, 1.442695
      %v599 = vpow.pop %v598
      %v600 = vsel %vm570, %v599, 0.0
      %601 = vadd.xlane.f32.xlu0 %v600
      %v602 = vpop.xlane.xlu0 %601
      %v603 = vrcp.pop %v602
      %v604 = vmul.f32 %v602, %v603
      %v605 = vsub.f32 1.0, %v604
      %v606 = vmul.f32 %v603, %v605
      %v607 = vadd.f32 %v603, %v606
      %vm608 = vweird.f32 %v602
      %vm609 = vweird.f32 %v603
      %vm610 = vmor %vm608, %vm609
      %v611 = vsel %vm610, %v603, %v607
      %v612 = vand.u32 2147483647, %v602
      %vm613 = vcmp.eq.f32.partialorder %v612, 8.507059e+37
      %v614 = vand.u32 %v602, 2147483648
      %v615 = vor.u32 1.1754944e-38, %v614
      %v616 = vsel %vm613, %v615, %v611
      %v617 = vmul.f32 %v599, %v616
      %v618 = vpack.c.bf16 %v617, %v617
      %619 = vrot.lane.b32.xlu0 %v567, 64
      %v620 = vpop.permute.xlu0 %619
      %v622 = vsel %vm570, %v618, 0
      %vm624 = vcmask 1043456
      %v626 = vsel %vm624, %v620, 0
      %628 = vmatpush.bf16.msra.mxu0 0
      %629 = vmatpush.bf16.msra.mxu0 0
      %630 = vmatpush.bf16.msra.mxu0 0
      %631 = vmatpush.bf16.msra.mxu0 0
      %632 = vmatpush.bf16.msra.mxu0 0
      %633 = vmatpush.bf16.msra.mxu0 0
      %634 = vmatpush.bf16.msra.mxu0 0
      %635 = vmatpush.bf16.msra.mxu0 %v626
      %636 = vmatmul.bf16.gmra.mxu0 %v622
      %v637 = vpop.f32.mrf.mxu0
      %v638 = vadd.f32 0.0, %v637
      %v639 = vpop.f32.mrf.mxu0
      %640 = vdwg.mxu0
      %v641 = vpack.c.bf16 %v638, %v638
      %v642 = vld [vmem:[%s4] sm:$0xf]
      %v644 = vunpack.c.l.b16 %v558
      %v645 = vpack.c.b16 %v644, %v644
      %646 = vrot.lane.b32.xlu0 %v645, 120
      %v647 = vpop.permute.xlu0 %646
      %648 = vrot.lane.b32.xlu0 %v567, 88
      %v649 = vpop.permute.xlu0 %648
      %v651 = vsel %vm570, %v647, 0
      %v654 = vsel %vm570, %v649, 0
      %656 = vmatpush.bf16.xpose.msra.mxu0 0
      %657 = vmatpush.bf16.xpose.msra.mxu0 0
      %658 = vmatpush.bf16.xpose.msra.mxu0 0
      %659 = vmatpush.bf16.xpose.msra.mxu0 0
      %660 = vmatpush.bf16.xpose.msra.mxu0 0
      %661 = vmatpush.bf16.xpose.msra.mxu0 0
      %662 = vmatpush.bf16.xpose.msra.mxu0 0
      %663 = vmatpush.bf16.xpose.msra.mxu0 %v654
      %664 = vmatmul.bf16.gmra.mxu0 %v651
      %v665 = vpop.f32.mrf.mxu0
      %v666 = vadd.f32 0.0, %v665
      %v667 = vpop.f32.mrf.mxu0
      %668 = vdwg.mxu0
      %v669 = vmul.f32 %v666, 0.35355338
      %v670 = vsel %vm592, -1e+09, %v669
      %v671 = vsel %vm570, %v670, -inf
      %672 = vmax.xlane.f32.xlu0 %v671
      %v673 = vpop.xlane.xlu0 %672
      %v674 = vsub.f32 %v670, %v673
      %v675 = vmul.f32 %v674, 1.442695
      %v676 = vpow.pop %v675
      %v677 = vsel %vm570, %v676, 0.0
      %678 = vadd.xlane.f32.xlu0 %v677
      %v679 = vpop.xlane.xlu0 %678
      %v680 = vrcp.pop %v679
      %v681 = vmul.f32 %v679, %v680
      %v682 = vsub.f32 1.0, %v681
      %v683 = vmul.f32 %v680, %v682
      %v684 = vadd.f32 %v680, %v683
      %vm685 = vweird.f32 %v679
      %vm686 = vweird.f32 %v680
      %vm687 = vmor %vm685, %vm686
      %v688 = vsel %vm687, %v680, %v684
      %v689 = vand.u32 2147483647, %v679
      %vm690 = vcmp.eq.f32.partialorder %v689, 8.507059e+37
      %v691 = vand.u32 %v679, 2147483648
      %v692 = vor.u32 1.1754944e-38, %v691
      %v693 = vsel %vm690, %v692, %v688
      %v694 = vmul.f32 %v676, %v693
      %v695 = vpack.c.bf16 %v694, %v694
      %696 = vrot.lane.b32.xlu0 %v567, 56
      %v697 = vpop.permute.xlu0 %696
      %v699 = vsel %vm570, %v695, 0
      %v702 = vsel %vm624, %v697, 0
      %704 = vmatpush.bf16.msra.mxu0 0
      %705 = vmatpush.bf16.msra.mxu0 0
      %706 = vmatpush.bf16.msra.mxu0 0
      %707 = vmatpush.bf16.msra.mxu0 0
      %708 = vmatpush.bf16.msra.mxu0 0
      %709 = vmatpush.bf16.msra.mxu0 0
      %710 = vmatpush.bf16.msra.mxu0 0
      %711 = vmatpush.bf16.msra.mxu0 %v702
      %712 = vmatmul.bf16.gmra.mxu0 %v699
      %v713 = vpop.f32.mrf.mxu0
      %v714 = vadd.f32 0.0, %v713
      %v715 = vpop.f32.mrf.mxu0
      %716 = vdwg.mxu0
      %v717 = vpack.c.bf16 %v714, %v714
      %v718 = vld [vmem:[%s4 + $0x4] sm:$0xf]
      %v720 = vsel %vm570, %v717, 0
      %v723 = vsel %vm624, %v718, 0
      %725 = vmatpush.bf16.msra.mxu0 0
      %726 = vmatpush.bf16.msra.mxu0 0
      %727 = vmatpush.bf16.msra.mxu0 0
      %728 = vmatpush.bf16.msra.mxu0 0
      %729 = vmatpush.bf16.msra.mxu0 0
      %730 = vmatpush.bf16.msra.mxu0 0
      %731 = vmatpush.bf16.msra.mxu0 0
      %732 = vmatpush.bf16.msra.mxu0 %v723
      %733 = vmatmul.bf16.gmra.mxu0 %v720
      %v734 = vpop.f32.mrf.mxu0
      %v735 = vadd.f32 0.0, %v734
      %v736 = vpop.f32.mrf.mxu0
      %737 = vdwg.mxu0
      %v739 = vsel %vm570, %v641, 0
      %v742 = vsel %vm624, %v642, 0
      %744 = vmatpush.bf16.msra.mxu0 0
      %745 = vmatpush.bf16.msra.mxu0 0
      %746 = vmatpush.bf16.msra.mxu0 0
      %747 = vmatpush.bf16.msra.mxu0 0
      %748 = vmatpush.bf16.msra.mxu0 0
      %749 = vmatpush.bf16.msra.mxu0 0
      %750 = vmatpush.bf16.msra.mxu0 0
      %751 = vmatpush.bf16.msra.mxu0 %v742
      %752 = vmatmul.bf16.gmra.mxu0 %v739
      %v753 = vpop.f32.mrf.mxu0
      %v754 = vadd.f32 %v735, %v753
      %v755 = vpop.f32.mrf.mxu0
      %756 = vdwg.mxu0
      %757 = vrot.lane.b32.xlu0 %v645, 112
      %v758 = vpop.permute.xlu0 %757
      %759 = vrot.lane.b32.xlu0 %v567, 80
      %v760 = vpop.permute.xlu0 %759
      %v762 = vsel %vm570, %v758, 0
      %v765 = vsel %vm570, %v760, 0
      %767 = vmatpush.bf16.xpose.msra.mxu0 0
      %768 = vmatpush.bf16.xpose.msra.mxu0 0
      %769 = vmatpush.bf16.xpose.msra.mxu0 0
      %770 = vmatpush.bf16.xpose.msra.mxu0 0
      %771 = vmatpush.bf16.xpose.msra.mxu0 0
      %772 = vmatpush.bf16.xpose.msra.mxu0 0
      %773 = vmatpush.bf16.xpose.msra.mxu0 0
      %774 = vmatpush.bf16.xpose.msra.mxu0 %v765
      %775 = vmatmul.bf16.gmra.mxu0 %v762
      %v776 = vpop.f32.mrf.mxu0
      %v777 = vadd.f32 0.0, %v776
      %v778 = vpop.f32.mrf.mxu0
      %779 = vdwg.mxu0
      %v780 = vmul.f32 %v777, 0.35355338
      %v781 = vsel %vm592, -1e+09, %v780
      %v782 = vsel %vm570, %v781, -inf
      %783 = vmax.xlane.f32.xlu0 %v782
      %v784 = vpop.xlane.xlu0 %783
      %v785 = vsub.f32 %v781, %v784
      %v786 = vmul.f32 %v785, 1.442695
      %v787 = vpow.pop %v786
      %v788 = vsel %vm570, %v787, 0.0
      %789 = vadd.xlane.f32.xlu0 %v788
      %v790 = vpop.xlane.xlu0 %789
      %v791 = vrcp.pop %v790
      %v792 = vmul.f32 %v790, %v791
      %v793 = vsub.f32 1.0, %v792
      %v794 = vmul.f32 %v791, %v793
      %v795 = vadd.f32 %v791, %v794
      %vm796 = vweird.f32 %v790
      %vm797 = vweird.f32 %v791
      %vm798 = vmor %vm796, %vm797
      %v799 = vsel %vm798, %v791, %v795
      %v800 = vand.u32 2147483647, %v790
      %vm801 = vcmp.eq.f32.partialorder %v800, 8.507059e+37
      %v802 = vand.u32 %v790, 2147483648
      %v803 = vor.u32 1.1754944e-38, %v802
      %v804 = vsel %vm801, %v803, %v799
      %v805 = vmul.f32 %v787, %v804
      %v806 = vpack.c.bf16 %v805, %v805
      %807 = vrot.lane.b32.xlu0 %v567, 48
      %v808 = vpop.permute.xlu0 %807
      %v810 = vsel %vm570, %v806, 0
      %v813 = vsel %vm624, %v808, 0
      %815 = vmatpush.bf16.msra.mxu0 0
      %816 = vmatpush.bf16.msra.mxu0 0
      %817 = vmatpush.bf16.msra.mxu0 0
      %818 = vmatpush.bf16.msra.mxu0 0
      %819 = vmatpush.bf16.msra.mxu0 0
      %820 = vmatpush.bf16.msra.mxu0 0
      %821 = vmatpush.bf16.msra.mxu0 0
      %822 = vmatpush.bf16.msra.mxu0 %v813
      %823 = vmatmul.bf16.gmra.mxu0 %v810
      %v824 = vpop.f32.mrf.mxu0
      %v825 = vadd.f32 0.0, %v824
      %v826 = vpop.f32.mrf.mxu0
      %827 = vdwg.mxu0
      %v828 = vpack.c.bf16 %v825, %v825
      %v829 = vld [vmem:[%s4 + $0x8] sm:$0xf]
      %v831 = vsel %vm570, %v828, 0
      %v834 = vsel %vm624, %v829, 0
      %836 = vmatpush.bf16.msra.mxu0 0
      %837 = vmatpush.bf16.msra.mxu0 0
      %838 = vmatpush.bf16.msra.mxu0 0
      %839 = vmatpush.bf16.msra.mxu0 0
      %840 = vmatpush.bf16.msra.mxu0 0
      %841 = vmatpush.bf16.msra.mxu0 0
      %842 = vmatpush.bf16.msra.mxu0 0
      %843 = vmatpush.bf16.msra.mxu0 %v834
      %844 = vmatmul.bf16.gmra.mxu0 %v831
      %v845 = vpop.f32.mrf.mxu0
      %v846 = vadd.f32 0.0, %v845
      %v847 = vpop.f32.mrf.mxu0
      %848 = vdwg.mxu0
      %v849 = vadd.f32 %v754, %v846
      %850 = vrot.lane.b32.xlu0 %v645, 104
      %v851 = vpop.permute.xlu0 %850
      %852 = vrot.lane.b32.xlu0 %v567, 72
      %v853 = vpop.permute.xlu0 %852
      %v855 = vsel %vm570, %v851, 0
      %v858 = vsel %vm570, %v853, 0
      %860 = vmatpush.bf16.xpose.msra.mxu0 0
      %861 = vmatpush.bf16.xpose.msra.mxu0 0
      %862 = vmatpush.bf16.xpose.msra.mxu0 0
      %863 = vmatpush.bf16.xpose.msra.mxu0 0
      %864 = vmatpush.bf16.xpose.msra.mxu0 0
      %865 = vmatpush.bf16.xpose.msra.mxu0 0
      %866 = vmatpush.bf16.xpose.msra.mxu0 0
      %867 = vmatpush.bf16.xpose.msra.mxu0 %v858
      %868 = vmatmul.bf16.gmra.mxu0 %v855
      %v869 = vpop.f32.mrf.mxu0
      %v870 = vadd.f32 0.0, %v869
      %v871 = vpop.f32.mrf.mxu0
      %872 = vdwg.mxu0
      %v873 = vmul.f32 %v870, 0.35355338
      %v874 = vsel %vm592, -1e+09, %v873
      %v875 = vsel %vm570, %v874, -inf
      %876 = vmax.xlane.f32.xlu0 %v875
      %v877 = vpop.xlane.xlu0 %876
      %v878 = vsub.f32 %v874, %v877
      %v879 = vmul.f32 %v878, 1.442695
      %v880 = vpow.pop %v879
      %v881 = vsel %vm570, %v880, 0.0
      %882 = vadd.xlane.f32.xlu0 %v881
      %v883 = vpop.xlane.xlu0 %882
      %v884 = vrcp.pop %v883
      %v885 = vmul.f32 %v883, %v884
      %v886 = vsub.f32 1.0, %v885
      %v887 = vmul.f32 %v884, %v886
      %v888 = vadd.f32 %v884, %v887
      %vm889 = vweird.f32 %v883
      %vm890 = vweird.f32 %v884
      %vm891 = vmor %vm889, %vm890
      %v892 = vsel %vm891, %v884, %v888
      %v893 = vand.u32 2147483647, %v883
      %vm894 = vcmp.eq.f32.partialorder %v893, 8.507059e+37
      %v895 = vand.u32 %v883, 2147483648
      %v896 = vor.u32 1.1754944e-38, %v895
      %v897 = vsel %vm894, %v896, %v892
      %v898 = vmul.f32 %v880, %v897
      %v899 = vpack.c.bf16 %v898, %v898
      %900 = vrot.lane.b32.xlu0 %v567, 40
      %v901 = vpop.permute.xlu0 %900
      %v903 = vsel %vm570, %v899, 0
      %v906 = vsel %vm624, %v901, 0
      %908 = vmatpush.bf16.msra.mxu0 0
      %909 = vmatpush.bf16.msra.mxu0 0
      %910 = vmatpush.bf16.msra.mxu0 0
      %911 = vmatpush.bf16.msra.mxu0 0
      %912 = vmatpush.bf16.msra.mxu0 0
      %913 = vmatpush.bf16.msra.mxu0 0
      %914 = vmatpush.bf16.msra.mxu0 0
      %915 = vmatpush.bf16.msra.mxu0 %v906
      %916 = vmatmul.bf16.gmra.mxu0 %v903
      %v917 = vpop.f32.mrf.mxu0
      %v918 = vadd.f32 0.0, %v917
      %v919 = vpop.f32.mrf.mxu0
      %920 = vdwg.mxu0
      %v921 = vpack.c.bf16 %v918, %v918
      %v922 = vld [vmem:[%s4 + $0xc] sm:$0xf]
      %v924 = vsel %vm570, %v921, 0
      %v927 = vsel %vm624, %v922, 0
      %929 = vmatpush.bf16.msra.mxu0 0
      %930 = vmatpush.bf16.msra.mxu0 0
      %931 = vmatpush.bf16.msra.mxu0 0
      %932 = vmatpush.bf16.msra.mxu0 0
      %933 = vmatpush.bf16.msra.mxu0 0
      %934 = vmatpush.bf16.msra.mxu0 0
      %935 = vmatpush.bf16.msra.mxu0 0
      %936 = vmatpush.bf16.msra.mxu0 %v927
      %937 = vmatmul.bf16.gmra.mxu0 %v924
      %v938 = vpop.f32.mrf.mxu0
      %v939 = vadd.f32 0.0, %v938
      %v940 = vpop.f32.mrf.mxu0
      %941 = vdwg.mxu0
      %v942 = vadd.f32 %v849, %v939
      %v943 = vadd.f32 %v553, %v942
      %v944 = vld [vmem:[%s5] sm:$0x1]
      %v946 = vperm.slane %v944, 0
      %v948 = vadd.f32 %v943, %v946
      %vm949 = vcmask 261120
      %v950 = vsel %vm949, %v948, 0.0
      %951 = vadd.xlane.f32.xlu0 %v950
      %v952 = vpop.xlane.xlu0 %951
      %v953 = vrcp.pop 32.0
      %v954 = vmul.f32 32.0, %v953
      %v955 = vsub.f32 1.0, %v954
      %v956 = vmul.f32 %v953, %v955
      %v957 = vadd.f32 %v953, %v956
      %vm958 = vweird.f32 %v953
      %v959 = vsel %vm958, %v953, %v957
      %v960 = vmul.f32 %v952, %v959
      %v961 = vsub.f32 %v948, %v960
      %v962 = vmul.f32 %v961, %v961
      %v963 = vsel %vm949, %v962, 0.0
      %964 = vadd.xlane.f32.xlu0 %v963
      %v965 = vpop.xlane.xlu0 %964
      %v966 = vmul.f32 %v965, %v959
      %v967 = vadd.f32 %v966, 1e-05
      %v968 = vrsqrt.pop %v967
      %v969 = vmul.f32 %v968, %v967
      %v970 = vmul.f32 %v969, %v968
      %v971 = vmul.f32 0.5, %v970
      %v972 = vsub.f32 1.5, %v971
      %v973 = vmul.f32 %v968, %v972
      %vm974 = vweird.f32 %v967
      %vm975 = vweird.f32 %v968
      %vm976 = vmor %vm974, %vm975
      %v977 = vsel %vm976, %v968, %v973
      %v978 = vmul.f32 %v961, %v977
      %v979 = vld [vmem:[%s8] sm:$0x1]
      %v981 = vperm.slane %v979, 0
      %v983 = vmul.f32 %v978, %v981
      %v984 = vld [vmem:[%s9] sm:$0x1]
      %v986 = vperm.slane %v984, 0
      %v988 = vadd.f32 %v983, %v986
      %v989 = vpack.c.bf16 %v988, %v988
      %v990 = vld [vmem:[%s10] sm:$0xf]
      %v991 = vld [vmem:[%s10 + $0x4] sm:$0xf]
      %v992 = vld [vmem:[%s10 + $0x8] sm:$0xf]
      %v993 = vld [vmem:[%s10 + $0xc] sm:$0xf]
      %v994 = vld [vmem:[%s11] sm:$0x1]
      %v996 = vperm.slane %v994, 0
      %v1002 = vunpack.c.l.b16 %v990
      %v1003 = vunpack.c.l.b16 %v991
      %v1004 = vunpack.c.l.b16 %v992
      %v1005 = vunpack.c.l.b16 %v993
      %v1006 = vpack.c.b16 %v1003, %v1002
      %v1007 = vpack.c.b16 %v1005, %v1004
      %v1011 = vsel %vm949, %v989, 0
      %1013 = vmatpush.bf16.msra.mxu0 0
      %1014 = vmatpush.bf16.msra.mxu0 0
      %1015 = vmatpush.bf16.msra.mxu0 0
      %1016 = vmatpush.bf16.msra.mxu0 0
      %1017 = vmatpush.bf16.msra.mxu0 0
      %1018 = vmatpush.bf16.msra.mxu0 0
      %1019 = vmatpush.bf16.msra.mxu0 %v1007
      %1020 = vmatpush.bf16.msra.mxu0 %v1006
      %1021 = vmatmul.bf16.gmra.mxu0 %v1011
      %v1022 = vpop.f32.mrf.mxu0
      %v1023 = vadd.f32 %v996, %v1022
      %v1024 = vpop.f32.mrf.mxu0
      %1025 = vdwg.mxu0
      %v1026 = vmax.f32 %v1023, 0.0
      %v1027 = vpack.c.bf16 %v1026, %v1026
      %v1028 = vld [vmem:[%s12] sm:$0xf]
      %v1029 = vld [vmem:[%s12 + $0x4] sm:$0xf]
      %v1030 = vld [vmem:[%s12 + $0x8] sm:$0xf]
      %v1031 = vld [vmem:[%s12 + $0xc] sm:$0xf]
      %v1032 = vld [vmem:[%s12 + $0x10] sm:$0xf]
      %v1033 = vld [vmem:[%s12 + $0x14] sm:$0xf]
      %v1034 = vld [vmem:[%s12 + $0x18] sm:$0xf]
      %v1035 = vld [vmem:[%s12 + $0x1c] sm:$0xf]
      %v1036 = vld [vmem:[%s13] sm:$0x1]
      %v1038 = vperm.slane %v1036, 0
      %v1048 = vunpack.c.l.b16 %v1028
      %v1049 = vunpack.c.l.b16 %v1029
      %v1050 = vunpack.c.l.b16 %v1030
      %v1051 = vunpack.c.l.b16 %v1031
      %v1052 = vunpack.c.l.b16 %v1032
      %v1053 = vunpack.c.l.b16 %v1033
      %v1054 = vunpack.c.l.b16 %v1034
      %v1055 = vunpack.c.l.b16 %v1035
      %v1056 = vpack.c.b16 %v1049, %v1048
      %v1057 = vpack.c.b16 %v1051, %v1050
      %v1058 = vpack.c.b16 %v1053, %v1052
      %v1059 = vpack.c.b16 %v1055, %v1054
      %vm1064 = vcmask 523264
      %v1066 = vsel %vm1064, %v1027, 0
      %1068 = vmatpush.bf16.msra.mxu0 0
      %1069 = vmatpush.bf16.msra.mxu0 0
      %1070 = vmatpush.bf16.msra.mxu0 0
      %1071 = vmatpush.bf16.msra.mxu0 0
      %1072 = vmatpush.bf16.msra.mxu0 %v1059
      %1073 = vmatpush.bf16.msra.mxu0 %v1058
      %1074 = vmatpush.bf16.msra.mxu0 %v1057
      %1075 = vmatpush.bf16.msra.mxu0 %v1056
      %1076 = vmatmul.bf16.gmra.mxu0 %v1066
      %v1077 = vpop.f32.mrf.mxu0
      %v1078 = vadd.f32 %v1038, %v1077
      %v1079 = vpop.f32.mrf.mxu0
      %1080 = vdwg.mxu0
      %v1081 = vadd.f32 %v948, %v1078
      %1082 = vst.msk [vmem:[%s464] sm:$0xff] %vm949, %v1081
      %p1083 = scmp.lt.s32.totalorder %s37, 1
      %s1084 = scalar_select %p1083, %s37, 1
      %p1085 = scmp.lt.s32.totalorder %s38, 0
      %s1086 = scalar_select %p1085, %s38, 0
      %s1087 = sadd.s32 %s1086, %s1084
      %s1088 = smul.addr %s1087, 8
      %s1089 = scalar_lea.vmem %s14, %s1088
      // Predicated region
      $region77: #{transducer_audio_encoder.4} parent=71 // pred_check
        %p1090 = pneg %p343
      $region78: #{transducer_audio_encoder.4} parent=71 // pred_check_branch
        %1092 = sbr.rel (%p1090) target = $region80
      $region79: #{transducer_audio_encoder.4} parent=71 // pred_region
        _
      $region80: #{transducer_audio_encoder.4} parent=71 // pred_fallthru
        _
    $region72: #{transducer_audio_encoder.4} parent=5 // pred_fallthru
      _
    %p1093 = scmp.le.s32.totalorder 2, %s28
    // Predicated region
    $region81: #{transducer_audio_encoder.4} parent=5 // pred_check
      %p1094 = pneg %p1093
    $region82: #{transducer_audio_encoder.4} parent=5 // pred_check_branch
      %1096 = sbr.rel (%p1094) target = $region84
    $region83: #{transducer_audio_encoder.4} parent=5 // pred_region
      %s1097 = ssub.s32 %s28, 2
      // Predicated region
      $region85: #{transducer_audio_encoder.4} parent=83 // pred_check
        %p1098 = pneg %p349
      $region86: #{transducer_audio_encoder.4} parent=83 // pred_check_branch
        %1100 = sbr.rel (%p1098) target = $region88
      $region87: #{transducer_audio_encoder.4} parent=83 // pred_region
        %p1101 = scmp.lt.s32.totalorder %s39, 1
        %s1102 = scalar_select %p1101, %s39, 1
        %p1103 = scmp.lt.s32.totalorder %s40, 0
        %s1104 = scalar_select %p1103, %s40, 0
        %s1105 = sadd.s32 %s1104, %s1102
        %s1106 = smul.addr %s1105, 8
        %s1107 = scalar_lea.vmem %s14, %s1106
      $region88: #{transducer_audio_encoder.4} parent=83 // pred_fallthru
        _
    $region84: #{transducer_audio_encoder.4} parent=5 // pred_fallthru
      _
  $region6: #{transducer_audio_encoder.4} parent=0 // loop_footer
    %s32 = sadd.s32 1, %s28
  $region7: #{transducer_audio_encoder.4} parent=0 // loop_footer_branch
    %27 = sbr.rel target = $region3
  $region8: #{transducer_audio_encoder.4} parent=0 // loop_exit
    _

// kernel: transducer_audio_encoder.5
$region0: #{transducer_audio_encoder.5}
  #allocation0 [shape = 'u32[]', space=smem, size = 0x4, offset = 0x4, fixed_abs, tag = 'smem constant byte address 0x4 - core index']
  #allocation1 [shape = 'u32[72,128]{1,0:T(1,128)}', space=vmem, size = 0x9000, scoped, tag = 'internal scratch']
  #allocation2 [shape = 'bf16[8,96]{1,0:T(8,128)(2,1)}', space=vmem, size = 0x800, scoped, tag = 'scratch operand']
  #allocation3 [shape = 's32[1]{0}', space=sflag, size = 0x4, scoped, tag = 'scoped memory for transducer_audio_encoder.5']
  #allocation4 [shape = 'u8[512]{0}', space=smem, size = 0x200, scoped, tag = 'prefetched SMEM operand 0']
  %s0 = inlined_call_operand.vmem [shape: s32[2], index: 0, kind: input, shape index: {}]
  %s1 = inlined_call_operand.vmem [shape: f32[2,8,32], index: 1, kind: input, shape index: {}]
  %s2 = inlined_call_operand.vmem [shape: bf16[32,96], index: 2, kind: input, shape index: {}]
  %s3 = inlined_call_operand.vmem [shape: f32[1,96], index: 3, kind: input, shape index: {}]
  %s4 = inlined_call_operand.vmem [shape: bf16[32,32], index: 4, kind: input, shape index: {}]
  %s5 = inlined_call_operand.vmem [shape: f32[1,32], index: 5, kind: input, shape index: {}]
  %s6 = inlined_call_operand.vmem [shape: f32[1,32], index: 6, kind: input, shape index: {}]
  %s7 = inlined_call_operand.vmem [shape: f32[1,32], index: 7, kind: input, shape index: {}]
  %s8 = inlined_call_operand.vmem [shape: f32[1,32], index: 8, kind: input, shape index: {}]
  %s9 = inlined_call_operand.vmem [shape: f32[1,32], index: 9, kind: input, shape index: {}]
  %s10 = inlined_call_operand.vmem [shape: bf16[32,64], index: 10, kind: input, shape index: {}]
  %s11 = inlined_call_operand.vmem [shape: f32[1,64], index: 11, kind: input, shape index: {}]
  %s12 = inlined_call_operand.vmem [shape: bf16[64,32], index: 12, kind: input, shape index: {}]
  %s13 = inlined_call_operand.vmem [shape: f32[1,32], index: 13, kind: input, shape index: {}]
  %s14 = inlined_call_operand.hbm [shape: f32[2,8,32], index: 14, kind: output, shape index: {}]
  %s15 = sld [smem:[#allocation0]]
  $region89: #{transducer_audio_encoder.5} parent=0
    _
  %s17 = ssub.s32 1, %s15
  %s18 = scalar_select 0, %s17, %s15
  %s20 = sshll.u32 %s0, 4
  %s21 = int_to_ptr.vmem [resolvable:$true] %s20
  %23 = dma.vmem_to_smem %s21, 16, [#allocation4], [#allocation3]
  %25 = dma.done [#allocation3], 16
  %26 = sfence
  $region1: #{transducer_audio_encoder.5} parent=0
    #allocation5 [shape = 'u8[8192]{0}', space=vmem, size = 0x2000, scoped, tag = 'output window, operand 0']
    #allocation6 [shape = 's32[2]{0}', space=sflag, size = 0x8, scoped, tag = 'scoped memory for transducer_audio_encoder.5']
    %27 = vsyncpa [#allocation6], 0
    %s28 = scalar_lea.sflag [#allocation6], 1
    %29 = vsyncpa %s28, 0
    loop: start=0, step=1, limit=4
    $region2: #{transducer_audio_encoder.5} parent=1 // loop_pre_header
      _
    $region3: #{transducer_audio_encoder.5} parent=1 // loop_header
      %s31 = sphi 0, %s35
      %p32 = scmp.ge.s32.totalorder %s31, 4
      %s38 = sphi 0, %s50
      %s39 = sphi 0, %s46
      %s40 = sphi 0, %s38
      %s41 = sphi 0, %s39
      %s42 = sphi 0, %s40
      %s43 = sphi 0, %s41
      %s53 = sphi 0, %s55
      %s56 = sphi 0, %s53
      %s57 = sphi 0, %s56
      %s73 = sphi 0, %s57
      %s77 = sphi 0, %s77
      %s79 = sphi 0, %s77
      %s80 = sphi 0, %s79
      %s94 = sphi 0, %s80
      %s98 = sphi 0, %s98
      %s100 = sphi 0, %s98
      %s101 = sphi 0, %s100
      %s115 = sphi 0, %s101
      %s119 = sphi 0, %s119
      %s121 = sphi 0, %s119
      %s122 = sphi 0, %s121
      %s136 = sphi 0, %s122
      %s140 = sphi 0, %s140
      %s142 = sphi 0, %s140
      %s143 = sphi 0, %s142
      %s157 = sphi 0, %s143
      %s161 = sphi 0, %s161
      %s163 = sphi 0, %s161
      %s164 = sphi 0, %s163
      %s178 = sphi 0, %s164
      %s182 = sphi 0, %s182
      %s184 = sphi 0, %s182
      %s185 = sphi 0, %s184
      %s199 = sphi 0, %s185
      %s203 = sphi 0, %s203
      %s205 = sphi 0, %s203
      %s206 = sphi 0, %s205
      %s220 = sphi 0, %s206
      %s224 = sphi 0, %s224
      %s226 = sphi 0, %s224
      %s227 = sphi 0, %s226
      %s241 = sphi 0, %s227
      %s245 = sphi 0, %s245
      %s247 = sphi 0, %s245
      %s248 = sphi 0, %s247
      %s262 = sphi 0, %s248
      %s266 = sphi 0, %s266
      %s268 = sphi 0, %s266
      %s269 = sphi 0, %s268
      %s283 = sphi 0, %s269
      %s287 = sphi 0, %s287
      %s289 = sphi 0, %s287
      %s290 = sphi 0, %s289
      %s304 = sphi 0, %s290
      %s308 = sphi 0, %s308
      %s310 = sphi 0, %s308
      %s311 = sphi 0, %s310
      %s325 = sphi 0, %s311
      %s333 = sphi 0, %s335
      %s336 = sphi 0, %s333
      %s337 = sphi 0, %s336
      %s353 = sphi 0, %s337
    $region4: #{transducer_audio_encoder.5} parent=1 // loop_header_branch
      %34 = sbr.rel (%p32) target = $region8
    $region5: #{transducer_audio_encoder.5} parent=1 // loop_body
      %s36 = ssub.s32 %s31, 1
      %s37 = ssub.s32 %s31, 2
      %s44 = sadd.s32 1, %s39
      %p45 = scmp.ge.s32.totalorder %s44, 1
      %s46 = scalar_select %p45, 0, %s44
      %s47 = sadd.s32 1, %s38
      %s48 = scalar_select %p45, %s47, %s38
      %p49 = scmp.ge.s32.totalorder %s48, 2
      %s50 = scalar_select %p49, 0, %s48
      %s51 = ssub.s32 %s38, %s50
      %p52 = scmp.eq.s32.totalorder %s51, 0
      %s54 = sadd.s32 %s53, 1
      %s55 = scalar_select %p52, %s53, %s54
      %p58 = pneg %p52
      %p59 = scmp.eq.s32.totalorder %s31, 1
      %p60 = por %p58, %p59
      %p61 = scmp.ne.s32.totalorder %s53, %s56
      %p62 = scmp.eq.s32.totalorder %s31, 0
      %p63 = por %p61, %p62
      %p64 = scmp.ne.s32.totalorder %s53, %s56
      %p65 = scmp.eq.s32.totalorder %s36, 1
      %p66 = por %p64, %p65
      %p67 = scmp.ne.s32.totalorder %s56, %s57
      %p68 = scmp.eq.s32.totalorder %s36, 0
      %p69 = por %p67, %p68
      %p70 = scmp.ne.s32.totalorder %s56, %s57
      %p71 = scmp.eq.s32.totalorder %s37, 1
      %p72 = por %p70, %p71
      %p74 = scmp.ne.s32.totalorder %s57, %s73
      %p75 = scmp.eq.s32.totalorder %s37, 0
      %p76 = por %p74, %p75
      %s78 = sadd.s32 %s77, 1
      %p81 = scmp.eq.s32.totalorder %s31, 1
      %p82 = scmp.ne.s32.totalorder %s77, %s79
      %p83 = scmp.eq.s32.totalorder %s31, 0
      %p84 = por %p82, %p83
      %p85 = scmp.ne.s32.totalorder %s77, %s79
      %p86 = scmp.eq.s32.totalorder %s36, 1
      %p87 = por %p85, %p86
      %p88 = scmp.ne.s32.totalorder %s79, %s80
      %p89 = scmp.eq.s32.totalorder %s36, 0
      %p90 = por %p88, %p89
      %p91 = scmp.ne.s32.totalorder %s79, %s80
      %p92 = scmp.eq.s32.totalorder %s37, 1
      %p93 = por %p91, %p92
      %p95 = scmp.ne.s32.totalorder %s80, %s94
      %p96 = scmp.eq.s32.totalorder %s37, 0
      %p97 = por %p95, %p96
      %s99 = sadd.s32 %s98, 1
      %p102 = scmp.eq.s32.totalorder %s31, 1
      %p103 = scmp.ne.s32.totalorder %s98, %s100
      %p104 = scmp.eq.s32.totalorder %s31, 0
      %p105 = por %p103, %p104
      %p106 = scmp.ne.s32.totalorder %s98, %s100
      %p107 = scmp.eq.s32.totalorder %s36, 1
      %p108 = por %p106, %p107
      %p109 = scmp.ne.s32.totalorder %s100, %s101
      %p110 = scmp.eq.s32.totalorder %s36, 0
      %p111 = por %p109, %p110
      %p112 = scmp.ne.s32.totalorder %s100, %s101
      %p113 = scmp.eq.s32.totalorder %s37, 1
      %p114 = por %p112, %p113
      %p116 = scmp.ne.s32.totalorder %s101, %s115
      %p117 = scmp.eq.s32.totalorder %s37, 0
      %p118 = por %p116, %p117
      %s120 = sadd.s32 %s119, 1
      %p123 = scmp.eq.s32.totalorder %s31, 1
      %p124 = scmp.ne.s32.totalorder %s119, %s121
      %p125 = scmp.eq.s32.totalorder %s31, 0
      %p126 = por %p124, %p125
      %p127 = scmp.ne.s32.totalorder %s119, %s121
      %p128 = scmp.eq.s32.totalorder %s36, 1
      %p129 = por %p127, %p128
      %p130 = scmp.ne.s32.totalorder %s121, %s122
      %p131 = scmp.eq.s32.totalorder %s36, 0
      %p132 = por %p130, %p131
      %p133 = scmp.ne.s32.totalorder %s121, %s122
      %p134 = scmp.eq.s32.totalorder %s37, 1
      %p135 = por %p133, %p134
      %p137 = scmp.ne.s32.totalorder %s122, %s136
      %p138 = scmp.eq.s32.totalorder %s37, 0
      %p139 = por %p137, %p138
      %s141 = sadd.s32 %s140, 1
      %p144 = scmp.eq.s32.totalorder %s31, 1
      %p145 = scmp.ne.s32.totalorder %s140, %s142
      %p146 = scmp.eq.s32.totalorder %s31, 0
      %p147 = por %p145, %p146
      %p148 = scmp.ne.s32.totalorder %s140, %s142
      %p149 = scmp.eq.s32.totalorder %s36, 1
      %p150 = por %p148, %p149
      %p151 = scmp.ne.s32.totalorder %s142, %s143
      %p152 = scmp.eq.s32.totalorder %s36, 0
      %p153 = por %p151, %p152
      %p154 = scmp.ne.s32.totalorder %s142, %s143
      %p155 = scmp.eq.s32.totalorder %s37, 1
      %p156 = por %p154, %p155
      %p158 = scmp.ne.s32.totalorder %s143, %s157
      %p159 = scmp.eq.s32.totalorder %s37, 0
      %p160 = por %p158, %p159
      %s162 = sadd.s32 %s161, 1
      %p165 = scmp.eq.s32.totalorder %s31, 1
      %p166 = scmp.ne.s32.totalorder %s161, %s163
      %p167 = scmp.eq.s32.totalorder %s31, 0
      %p168 = por %p166, %p167
      %p169 = scmp.ne.s32.totalorder %s161, %s163
      %p170 = scmp.eq.s32.totalorder %s36, 1
      %p171 = por %p169, %p170
      %p172 = scmp.ne.s32.totalorder %s163, %s164
      %p173 = scmp.eq.s32.totalorder %s36, 0
      %p174 = por %p172, %p173
      %p175 = scmp.ne.s32.totalorder %s163, %s164
      %p176 = scmp.eq.s32.totalorder %s37, 1
      %p177 = por %p175, %p176
      %p179 = scmp.ne.s32.totalorder %s164, %s178
      %p180 = scmp.eq.s32.totalorder %s37, 0
      %p181 = por %p179, %p180
      %s183 = sadd.s32 %s182, 1
      %p186 = scmp.eq.s32.totalorder %s31, 1
      %p187 = scmp.ne.s32.totalorder %s182, %s184
      %p188 = scmp.eq.s32.totalorder %s31, 0
      %p189 = por %p187, %p188
      %p190 = scmp.ne.s32.totalorder %s182, %s184
      %p191 = scmp.eq.s32.totalorder %s36, 1
      %p192 = por %p190, %p191
      %p193 = scmp.ne.s32.totalorder %s184, %s185
      %p194 = scmp.eq.s32.totalorder %s36, 0
      %p195 = por %p193, %p194
      %p196 = scmp.ne.s32.totalorder %s184, %s185
      %p197 = scmp.eq.s32.totalorder %s37, 1
      %p198 = por %p196, %p197
      %p200 = scmp.ne.s32.totalorder %s185, %s199
      %p201 = scmp.eq.s32.totalorder %s37, 0
      %p202 = por %p200, %p201
      %s204 = sadd.s32 %s203, 1
      %p207 = scmp.eq.s32.totalorder %s31, 1
      %p208 = scmp.ne.s32.totalorder %s203, %s205
      %p209 = scmp.eq.s32.totalorder %s31, 0
      %p210 = por %p208, %p209
      %p211 = scmp.ne.s32.totalorder %s203, %s205
      %p212 = scmp.eq.s32.totalorder %s36, 1
      %p213 = por %p211, %p212
      %p214 = scmp.ne.s32.totalorder %s205, %s206
      %p215 = scmp.eq.s32.totalorder %s36, 0
      %p216 = por %p214, %p215
      %p217 = scmp.ne.s32.totalorder %s205, %s206
      %p218 = scmp.eq.s32.totalorder %s37, 1
      %p219 = por %p217, %p218
      %p221 = scmp.ne.s32.totalorder %s206, %s220
      %p222 = scmp.eq.s32.totalorder %s37, 0
      %p223 = por %p221, %p222
      %s225 = sadd.s32 %s224, 1
      %p228 = scmp.eq.s32.totalorder %s31, 1
      %p229 = scmp.ne.s32.totalorder %s224, %s226
      %p230 = scmp.eq.s32.totalorder %s31, 0
      %p231 = por %p229, %p230
      %p232 = scmp.ne.s32.totalorder %s224, %s226
      %p233 = scmp.eq.s32.totalorder %s36, 1
      %p234 = por %p232, %p233
      %p235 = scmp.ne.s32.totalorder %s226, %s227
      %p236 = scmp.eq.s32.totalorder %s36, 0
      %p237 = por %p235, %p236
      %p238 = scmp.ne.s32.totalorder %s226, %s227
      %p239 = scmp.eq.s32.totalorder %s37, 1
      %p240 = por %p238, %p239
      %p242 = scmp.ne.s32.totalorder %s227, %s241
      %p243 = scmp.eq.s32.totalorder %s37, 0
      %p244 = por %p242, %p243
      %s246 = sadd.s32 %s245, 1
      %p249 = scmp.eq.s32.totalorder %s31, 1
      %p250 = scmp.ne.s32.totalorder %s245, %s247
      %p251 = scmp.eq.s32.totalorder %s31, 0
      %p252 = por %p250, %p251
      %p253 = scmp.ne.s32.totalorder %s245, %s247
      %p254 = scmp.eq.s32.totalorder %s36, 1
      %p255 = por %p253, %p254
      %p256 = scmp.ne.s32.totalorder %s247, %s248
      %p257 = scmp.eq.s32.totalorder %s36, 0
      %p258 = por %p256, %p257
      %p259 = scmp.ne.s32.totalorder %s247, %s248
      %p260 = scmp.eq.s32.totalorder %s37, 1
      %p261 = por %p259, %p260
      %p263 = scmp.ne.s32.totalorder %s248, %s262
      %p264 = scmp.eq.s32.totalorder %s37, 0
      %p265 = por %p263, %p264
      %s267 = sadd.s32 %s266, 1
      %p270 = scmp.eq.s32.totalorder %s31, 1
      %p271 = scmp.ne.s32.totalorder %s266, %s268
      %p272 = scmp.eq.s32.totalorder %s31, 0
      %p273 = por %p271, %p272
      %p274 = scmp.ne.s32.totalorder %s266, %s268
      %p275 = scmp.eq.s32.totalorder %s36, 1
      %p276 = por %p274, %p275
      %p277 = scmp.ne.s32.totalorder %s268, %s269
      %p278 = scmp.eq.s32.totalorder %s36, 0
      %p279 = por %p277, %p278
      %p280 = scmp.ne.s32.totalorder %s268, %s269
      %p281 = scmp.eq.s32.totalorder %s37, 1
      %p282 = por %p280, %p281
      %p284 = scmp.ne.s32.totalorder %s269, %s283
      %p285 = scmp.eq.s32.totalorder %s37, 0
      %p286 = por %p284, %p285
      %s288 = sadd.s32 %s287, 1
      %p291 = scmp.eq.s32.totalorder %s31, 1
      %p292 = scmp.ne.s32.totalorder %s287, %s289
      %p293 = scmp.eq.s32.totalorder %s31, 0
      %p294 = por %p292, %p293
      %p295 = scmp.ne.s32.totalorder %s287, %s289
      %p296 = scmp.eq.s32.totalorder %s36, 1
      %p297 = por %p295, %p296
      %p298 = scmp.ne.s32.totalorder %s289, %s290
      %p299 = scmp.eq.s32.totalorder %s36, 0
      %p300 = por %p298, %p299
      %p301 = scmp.ne.s32.totalorder %s289, %s290
      %p302 = scmp.eq.s32.totalorder %s37, 1
      %p303 = por %p301, %p302
      %p305 = scmp.ne.s32.totalorder %s290, %s304
      %p306 = scmp.eq.s32.totalorder %s37, 0
      %p307 = por %p305, %p306
      %s309 = sadd.s32 %s308, 1
      %p312 = scmp.eq.s32.totalorder %s31, 1
      %p313 = scmp.ne.s32.totalorder %s308, %s310
      %p314 = scmp.eq.s32.totalorder %s31, 0
      %p315 = por %p313, %p314
      %p316 = scmp.ne.s32.totalorder %s308, %s310
      %p317 = scmp.eq.s32.totalorder %s36, 1
      %p318 = por %p316, %p317
      %p319 = scmp.ne.s32.totalorder %s310, %s311
      %p320 = scmp.eq.s32.totalorder %s36, 0
      %p321 = por %p319, %p320
      %p322 = scmp.ne.s32.totalorder %s310, %s311
      %p323 = scmp.eq.s32.totalorder %s37, 1
      %p324 = por %p322, %p323
      %p326 = scmp.ne.s32.totalorder %s311, %s325
      %p327 = scmp.eq.s32.totalorder %s37, 0
      %p328 = por %p326, %p327
      %s329 = ssub.s32 %s38, %s50
      %s330 = ssub.s32 %s39, %s46
      %s331 = sor.u32 %s329, %s330
      %p332 = scmp.eq.s32.totalorder %s331, 0
      %s334 = sadd.s32 %s333, 1
      %s335 = scalar_select %p332, %s333, %s334
      %p338 = pneg %p332
      %p339 = scmp.eq.s32.totalorder %s31, 1
      %p340 = por %p338, %p339
      %p341 = scmp.ne.s32.totalorder %s333, %s336
      %p342 = scmp.eq.s32.totalorder %s31, 0
      %p343 = por %p341, %p342
      %p344 = scmp.ne.s32.totalorder %s333, %s336
      %p345 = scmp.eq.s32.totalorder %s36, 1
      %p346 = por %p344, %p345
      %p347 = scmp.ne.s32.totalorder %s336, %s337
      %p348 = scmp.eq.s32.totalorder %s36, 0
      %p349 = por %p347, %p348
      %p350 = scmp.ne.s32.totalorder %s336, %s337
      %p351 = scmp.eq.s32.totalorder %s37, 1
      %p352 = por %p350, %p351
      %p354 = scmp.ne.s32.totalorder %s337, %s353
      %p355 = scmp.eq.s32.totalorder %s37, 0
      %p356 = por %p354, %p355
      %p357 = scmp.le.s32.totalorder 1, %s31
      %p358 = scmp.lt.s32.totalorder %s31, 3
      %p359 = pnand %p357, %p358
      %p360 = pneg %p359
      // Predicated region
      $region9: #{transducer_audio_encoder.5} parent=5 // pred_check
        _
      $region10: #{transducer_audio_encoder.5} parent=5 // pred_check_branch
        %362 = sbr.rel (%p359) target = $region12
      $region11: #{transducer_audio_encoder.5} parent=5 // pred_region
        %s363 = ssub.s32 %s31, 1
        // Predicated region
        $region13: #{transducer_audio_encoder.5} parent=11 // pred_check
          %p364 = pneg %p90
        $region14: #{transducer_audio_encoder.5} parent=11 // pred_check_branch
          %366 = sbr.rel (%p364) target = $region16
        $region15: #{transducer_audio_encoder.5} parent=11 // pred_region
          _
        $region16: #{transducer_audio_encoder.5} parent=11 // pred_fallthru
          _
        // Predicated region
        $region17: #{transducer_audio_encoder.5} parent=11 // pred_check
          %p367 = pneg %p111
        $region18: #{transducer_audio_encoder.5} parent=11 // pred_check_branch
          %369 = sbr.rel (%p367) target = $region20
        $region19: #{transducer_audio_encoder.5} parent=11 // pred_region
          _
        $region20: #{transducer_audio_encoder.5} parent=11 // pred_fallthru
          _
        // Predicated region
        $region21: #{transducer_audio_encoder.5} parent=11 // pred_check
          %p370 = pneg %p132
        $region22: #{transducer_audio_encoder.5} parent=11 // pred_check_branch
          %372 = sbr.rel (%p370) target = $region24
        $region23: #{transducer_audio_encoder.5} parent=11 // pred_region
          _
        $region24: #{transducer_audio_encoder.5} parent=11 // pred_fallthru
          _
        // Predicated region
        $region25: #{transducer_audio_encoder.5} parent=11 // pred_check
          %p373 = pneg %p153
        $region26: #{transducer_audio_encoder.5} parent=11 // pred_check_branch
          %375 = sbr.rel (%p373) target = $region28
        $region27: #{transducer_audio_encoder.5} parent=11 // pred_region
          _
        $region28: #{transducer_audio_encoder.5} parent=11 // pred_fallthru
          _
        // Predicated region
        $region29: #{transducer_audio_encoder.5} parent=11 // pred_check
          %p376 = pneg %p174
        $region30: #{transducer_audio_encoder.5} parent=11 // pred_check_branch
          %378 = sbr.rel (%p376) target = $region32
        $region31: #{transducer_audio_encoder.5} parent=11 // pred_region
          _
        $region32: #{transducer_audio_encoder.5} parent=11 // pred_fallthru
          _
        // Predicated region
        $region33: #{transducer_audio_encoder.5} parent=11 // pred_check
          %p379 = pneg %p195
        $region34: #{transducer_audio_encoder.5} parent=11 // pred_check_branch
          %381 = sbr.rel (%p379) target = $region36
        $region35: #{transducer_audio_encoder.5} parent=11 // pred_region
          _
        $region36: #{transducer_audio_encoder.5} parent=11 // pred_fallthru
          _
        // Predicated region
        $region37: #{transducer_audio_encoder.5} parent=11 // pred_check
          %p382 = pneg %p216
        $region38: #{transducer_audio_encoder.5} parent=11 // pred_check_branch
          %384 = sbr.rel (%p382) target = $region40
        $region39: #{transducer_audio_encoder.5} parent=11 // pred_region
          _
        $region40: #{transducer_audio_encoder.5} parent=11 // pred_fallthru
          _
        // Predicated region
        $region41: #{transducer_audio_encoder.5} parent=11 // pred_check
          %p385 = pneg %p237
        $region42: #{transducer_audio_encoder.5} parent=11 // pred_check_branch
          %387 = sbr.rel (%p385) target = $region44
        $region43: #{transducer_audio_encoder.5} parent=11 // pred_region
          _
        $region44: #{transducer_audio_encoder.5} parent=11 // pred_fallthru
          _
        // Predicated region
        $region45: #{transducer_audio_encoder.5} parent=11 // pred_check
          %p388 = pneg %p258
        $region46: #{transducer_audio_encoder.5} parent=11 // pred_check_branch
          %390 = sbr.rel (%p388) target = $region48
        $region47: #{transducer_audio_encoder.5} parent=11 // pred_region
          _
        $region48: #{transducer_audio_encoder.5} parent=11 // pred_fallthru
          _
        // Predicated region
        $region49: #{transducer_audio_encoder.5} parent=11 // pred_check
          %p391 = pneg %p279
        $region50: #{transducer_audio_encoder.5} parent=11 // pred_check_branch
          %393 = sbr.rel (%p391) target = $region52
        $region51: #{transducer_audio_encoder.5} parent=11 // pred_region
          _
        $region52: #{transducer_audio_encoder.5} parent=11 // pred_fallthru
          _
        // Predicated region
        $region53: #{transducer_audio_encoder.5} parent=11 // pred_check
          %p394 = pneg %p300
        $region54: #{transducer_audio_encoder.5} parent=11 // pred_check_branch
          %396 = sbr.rel (%p394) target = $region56
        $region55: #{transducer_audio_encoder.5} parent=11 // pred_region
          _
        $region56: #{transducer_audio_encoder.5} parent=11 // pred_fallthru
          _
        // Predicated region
        $region57: #{transducer_audio_encoder.5} parent=11 // pred_check
          %p397 = pneg %p321
        $region58: #{transducer_audio_encoder.5} parent=11 // pred_check_branch
          %399 = sbr.rel (%p397) target = $region60
        $region59: #{transducer_audio_encoder.5} parent=11 // pred_region
          _
        $region60: #{transducer_audio_encoder.5} parent=11 // pred_fallthru
          _
      $region12: #{transducer_audio_encoder.5} parent=5 // pred_fallthru
        _
      %p400 = scmp.lt.s32.totalorder %s31, 2
      // Predicated region
      $region61: #{transducer_audio_encoder.5} parent=5 // pred_check
        %p401 = pneg %p400
      $region62: #{transducer_audio_encoder.5} parent=5 // pred_check_branch
        %403 = sbr.rel (%p401) target = $region64
      $region63: #{transducer_audio_encoder.5} parent=5 // pred_region
        // Predicated region
        $region65: #{transducer_audio_encoder.5} parent=63 // pred_check
          %p404 = pneg %p63
        $region66: #{transducer_audio_encoder.5} parent=63 // pred_check_branch
          %406 = sbr.rel (%p404) target = $region68
        $region67: #{transducer_audio_encoder.5} parent=63 // pred_region
          %p407 = scmp.lt.s32.totalorder %s38, 1
          %s408 = scalar_select %p407, %s38, 1
          %s409 = smul.addr %s408, 8
          %s410 = scalar_lea.vmem %s1, %s409
        $region68: #{transducer_audio_encoder.5} parent=63 // pred_fallthru
          _
      $region64: #{transducer_audio_encoder.5} parent=5 // pred_fallthru
        _
      %p411 = scmp.le.s32.totalorder 1, %s31
      %p412 = scmp.lt.s32.totalorder %s31, 3
      %p413 = pnand %p411, %p412
      %p414 = pneg %p413
      // Predicated region
      $region69: #{transducer_audio_encoder.5} parent=5 // pred_check
        _
      $region70: #{transducer_audio_encoder.5} parent=5 // pred_check_branch
        %416 = sbr.rel (%p413) target = $region72
      $region71: #{transducer_audio_encoder.5} parent=5 // pred_region
        %s417 = ssub.s32 %s31, 1
        %p418 = scmp.lt.s32.totalorder %s40, 1
        %s419 = scalar_select %p418, %s40, 1
        %s420 = smul.addr %s419, 8
        %s421 = scalar_lea.vmem %s1, %s420
        %p422 = pneg %p69
        %p423 = pneg %p66
        %p424 = pneg %p90
        %p425 = pneg %p87
        %p426 = pneg %p111
        %p427 = pneg %p108
        %p428 = pneg %p132
        %p429 = pneg %p129
        %p430 = pneg %p153
        %p431 = pneg %p150
        %p432 = pneg %p174
        %p433 = pneg %p171
        %p434 = pneg %p195
        %p435 = pneg %p192
        %p436 = pneg %p216
        %p437 = pneg %p213
        %p438 = pneg %p237
        %p439 = pneg %p234
        %p440 = pneg %p258
        %p441 = pneg %p255
        %p442 = pneg %p279
        %p443 = pneg %p276
        %p444 = pneg %p300
        %p445 = pneg %p297
        %p446 = pneg %p321
        %p447 = pneg %p318
        %p448 = pneg %p349
        %p449 = pneg %p346
        %s450 = sand.u32 %s336, 1
        %s451 = scalar_lea.sflag [#allocation6], %s450
        %s452 = sand.u32 %s336, 1
        %s453 = smul.addr %s452, 8
        %s454 = scalar_lea.vmem [#allocation5], %s453
        %p455 = scmp.lt.s32.totalorder %s40, 1
        %s456 = scalar_select %p455, %s40, 1
        %s457 = smul.addr %s456, 8
        %s458 = scalar_lea.vmem %s1, %s457
        %p460 = scmp.eq.s32.totalorder %s41, 0
        // Predicated region
        $region73: #{transducer_audio_encoder.5} parent=71 // pred_check
          %p461 = pneg %p460
        $region74: #{transducer_audio_encoder.5} parent=71 // pred_check_branch
          %463 = sbr.rel (%p461) target = $region76
        $region75: #{transducer_audio_encoder.5} parent=71 // pred_region
          %v464 = vld [vmem:[%s458] sm:$0xff]
          %vm465 = vcmask 261120
          %v466 = vsel %vm465, %v464, 0.0
          %467 = vadd.xlane.f32.xlu0 %v466
          %v468 = vpop.xlane.xlu0 %467
          %v469 = vrcp.pop 32.0
          %v470 = vmul.f32 32.0, %v469
          %v471 = vsub.f32 1.0, %v470
          %v472 = vmul.f32 %v469, %v471
          %v473 = vadd.f32 %v469, %v472
          %vm474 = vweird.f32 %v469
          %v475 = vsel %vm474, %v469, %v473
          %v476 = vmul.f32 %v468, %v475
          %v477 = vsub.f32 %v464, %v476
          %v478 = vmul.f32 %v477, %v477
          %v479 = vsel %vm465, %v478, 0.0
          %480 = vadd.xlane.f32.xlu0 %v479
          %v481 = vpop.xlane.xlu0 %480
          %v482 = vmul.f32 %v481, %v475
          %v483 = vadd.f32 %v482, 1e-05
          %v484 = vrsqrt.pop %v483
          %v485 = vmul.f32 %v484, %v483
          %v486 = vmul.f32 %v485, %v484
          %v487 = vmul.f32 0.5, %v486
          %v488 = vsub.f32 1.5, %v487
          %v489 = vmul.f32 %v484, %v488
          %vm490 = vweird.f32 %v483
          %vm491 = vweird.f32 %v484
          %vm492 = vmor %vm490, %vm491
          %v493 = vsel %vm492, %v484, %v489
          %v494 = vmul.f32 %v477, %v493
          %v495 = vld [vmem:[%s6] sm:$0x1]
          %v497 = vperm.slane %v495, 0
          %v499 = vmul.f32 %v494, %v497
          %v500 = vld [vmem:[%s7] sm:$0x1]
          %v502 = vperm.slane %v500, 0
          %v504 = vadd.f32 %v499, %v502
          %v505 = vpack.c.bf16 %v504, %v504
          %v506 = vld [vmem:[%s2] sm:$0xf]
          %v507 = vld [vmem:[%s2 + $0x4] sm:$0xf]
          %v508 = vld [vmem:[%s2 + $0x8] sm:$0xf]
          %v509 = vld [vmem:[%s2 + $0xc] sm:$0xf]
          %v510 = vld [vmem:[%s3] sm:$0x1]
          %v512 = vperm.slane %v510, 0
          %v518 = vunpack.c.l.b16 %v506
          %v519 = vunpack.c.l.b16 %v507
          %v520 = vunpack.c.l.b16 %v508
          %v521 = vunpack.c.l.b16 %v509
          %v522 = vpack.c.b16 %v519, %v518
          %v523 = vpack.c.b16 %v521, %v520
          %v527 = vsel %vm465, %v505, 0
          %529 = vmatpush.bf16.msra.mxu0 0
          %530 = vmatpush.bf16.msra.mxu0 0
          %531 = vmatpush.bf16.msra.mxu0 0
          %532 = vmatpush.bf16.msra.mxu0 0
          %533 = vmatpush.bf16.msra.mxu0 0
          %534 = vmatpush.bf16.msra.mxu0 0
          %535 = vmatpush.bf16.msra.mxu0 %v523
          %536 = vmatpush.bf16.msra.mxu0 %v522
          %537 = vmatmul.bf16.gmra.mxu0 %v527
          %v538 = vpop.f32.mrf.mxu0
          %v539 = vadd.f32 %v512, %v538
          %v540 = vpop.f32.mrf.mxu0
          %541 = vdwg.mxu0
          %v542 = vpack.c.bf16 %v539, %v539
          %vm543 = vcmask 781312
          %544 = vst.msk [vmem:[#allocation2] sm:$0xf] %vm543, %v542
        $region76: #{transducer_audio_encoder.5} parent=71 // pred_fallthru
          _
        %s545 = smul.u32 %s41, 8
        %s546 = scalar_lea.vmem %s458, %s545
        %v547 = vld [vmem:[%s546] sm:$0xff]
        %s548 = sshra.s32 %s545, 3
        %s549 = sand.u32 %s545, 7
        %s550 = smul.addr %s548, 4
        %s551 = scalar_lea.vmem [#allocation2], %s550
        %v552 = vld [vmem:[%s551] sm:$0xf]
        %v553 = vlaneseq
        %v554 = vand.u32 %v553, 127
        %s555 = sld [smem:[#allocation4 + %s40]]
        %v556 = vstv %s555
        %vm557 = vcmp.ge.s32.totalorder %v554, %v556
        %v558 = vld [vmem:[#allocation2] sm:$0xf]
        %v560 = vunpack.c.l.b16 %v558
        %v561 = vpack.c.b16 %v560, %v560
        %562 = vrot.lane.b32.xlu0 %v561, 96
        %v563 = vpop.permute.xlu0 %562
        %vm564 = vcmask 64512
        %v566 = vsel %vm564, %v552, 0
        %v569 = vsel %vm564, %v563, 0
        %571 = vmatpush.bf16.xpose.msra.mxu0 0
        %572 = vmatpush.bf16.xpose.msra.mxu0 0
        %573 = vmatpush.bf16.xpose.msra.mxu0 0
        %574 = vmatpush.bf16.xpose.msra.mxu0 0
        %575 = vmatpush.bf16.xpose.msra.mxu0 0
        %576 = vmatpush.bf16.xpose.msra.mxu0 0
        %577 = vmatpush.bf16.xpose.msra.mxu0 0
        %578 = vmatpush.bf16.xpose.msra.mxu0 %v569
        %579 = vmatmul.bf16.gmra.mxu0 %v566
        %v580 = vpop.f32.mrf.mxu0
        %v581 = vadd.f32 0.0, %v580
        %v582 = vpop.f32.mrf.mxu0
        %583 = vdwg.mxu0
        %v584 = vmul.f32 %v581, 0.35355338
        %v585 = vsel %vm557, 1, 0
        %vm586 = vcmp.eq.s32.totalorder %v585, 1
        %v587 = vsel %vm586, -1e+09, %v584
        %v588 = vsel %vm564, %v587, -inf
        %589 = vmax.xlane.f32.xlu0 %v588
        %v590 = vpop.xlane.xlu0 %589
        %v591 = vsub.f32 %v587, %v590
        %v592 = vmul.f32 %v591, 1.442695
        %v593 = vpow.pop %v592
        %v594 = vsel %vm564, %v593, 0.0
        %595 = vadd.xlane.f32.xlu0 %v594
        %v596 = vpop.xlane.xlu0 %595
        %v597 = vrcp.pop %v596
        %v598 = vmul.f32 %v596, %v597
        %v599 = vsub.f32 1.0, %v598
        %v600 = vmul.f32 %v597, %v599
        %v601 = vadd.f32 %v597, %v600
        %vm602 = vweird.f32 %v596
        %vm603 = vweird.f32 %v597
        %vm604 = vmor %vm602, %vm603
        %v605 = vsel %vm604, %v597, %v601
        %v606 = vand.u32 2147483647, %v596
        %vm607 = vcmp.eq.f32.partialorder %v606, 8.507059e+37
        %v608 = vand.u32 %v596, 2147483648
        %v609 = vor.u32 1.1754944e-38, %v608
        %v610 = vsel %vm607, %v609, %v605
        %v611 = vmul.f32 %v593, %v610
        %v612 = vpack.c.bf16 %v611, %v611
        %613 = vrot.lane.b32.xlu0 %v561, 64
        %v614 = vpop.permute.xlu0 %613
        %v616 = vsel %vm564, %v612, 0
        %vm618 = vcmask 1043456
        %v620 = vsel %vm618, %v614, 0
        %622 = vmatpush.bf16.msra.mxu0 0
        %623 = vmatpush.bf16.msra.mxu0 0
        %624 = vmatpush.bf16.msra.mxu0 0
        %625 = vmatpush.bf16.msra.mxu0 0
        %626 = vmatpush.bf16.msra.mxu0 0
        %627 = vmatpush.bf16.msra.mxu0 0
        %628 = vmatpush.bf16.msra.mxu0 0
        %629 = vmatpush.bf16.msra.mxu0 %v620
        %630 = vmatmul.bf16.gmra.mxu0 %v616
        %v631 = vpop.f32.mrf.mxu0
        %v632 = vadd.f32 0.0, %v631
        %v633 = vpop.f32.mrf.mxu0
        %634 = vdwg.mxu0
        %v635 = vpack.c.bf16 %v632, %v632
        %v636 = vld [vmem:[%s4] sm:$0xf]
        %v638 = vunpack.c.l.b16 %v552
        %v639 = vpack.c.b16 %v638, %v638
        %640 = vrot.lane.b32.xlu0 %v639, 120
        %v641 = vpop.permute.xlu0 %640
        %642 = vrot.lane.b32.xlu0 %v561, 88
        %v643 = vpop.permute.xlu0 %642
        %v645 = vsel %vm564, %v641, 0
        %v648 = vsel %vm564, %v643, 0
        %650 = vmatpush.bf16.xpose.msra.mxu0 0
        %651 = vmatpush.bf16.xpose.msra.mxu0 0
        %652 = vmatpush.bf16.xpose.msra.mxu0 0
        %653 = vmatpush.bf16.xpose.msra.mxu0 0
        %654 = vmatpush.bf16.xpose.msra.mxu0 0
        %655 = vmatpush.bf16.xpose.msra.mxu0 0
        %656 = vmatpush.bf16.xpose.msra.mxu0 0
        %657 = vmatpush.bf16.xpose.msra.mxu0 %v648
        %658 = vmatmul.bf16.gmra.mxu0 %v645
        %v659 = vpop.f32.mrf.mxu0
        %v660 = vadd.f32 0.0, %v659
        %v661 = vpop.f32.mrf.mxu0
        %662 = vdwg.mxu0
        %v663 = vmul.f32 %v660, 0.35355338
        %v664 = vsel %vm586, -1e+09, %v663
        %v665 = vsel %vm564, %v664, -inf
        %666 = vmax.xlane.f32.xlu0 %v665
        %v667 = vpop.xlane.xlu0 %666
        %v668 = vsub.f32 %v664, %v667
        %v669 = vmul.f32 %v668, 1.442695
        %v670 = vpow.pop %v669
        %v671 = vsel %vm564, %v670, 0.0
        %672 = vadd.xlane.f32.xlu0 %v671
        %v673 = vpop.xlane.xlu0 %672
        %v674 = vrcp.pop %v673
        %v675 = vmul.f32 %v673, %v674
        %v676 = vsub.f32 1.0, %v675
        %v677 = vmul.f32 %v674, %v676
        %v678 = vadd.f32 %v674, %v677
        %vm679 = vweird.f32 %v673
        %vm680 = vweird.f32 %v674
        %vm681 = vmor %vm679, %vm680
        %v682 = vsel %vm681, %v674, %v678
        %v683 = vand.u32 2147483647, %v673
        %vm684 = vcmp.eq.f32.partialorder %v683, 8.507059e+37
        %v685 = vand.u32 %v673, 2147483648
        %v686 = vor.u32 1.1754944e-38, %v685
        %v687 = vsel %vm684, %v686, %v682
        %v688 = vmul.f32 %v670, %v687
        %v689 = vpack.c.bf16 %v688, %v688
        %690 = vrot.lane.b32.xlu0 %v561, 56
        %v691 = vpop.permute.xlu0 %690
        %v693 = vsel %vm564, %v689, 0
        %v696 = vsel %vm618, %v691, 0
        %698 = vmatpush.bf16.msra.mxu0 0
        %699 = vmatpush.bf16.msra.mxu0 0
        %700 = vmatpush.bf16.msra.mxu0 0
        %701 = vmatpush.bf16.msra.mxu0 0
        %702 = vmatpush.bf16.msra.mxu0 0
        %703 = vmatpush.bf16.msra.mxu0 0
        %704 = vmatpush.bf16.msra.mxu0 0
        %705 = vmatpush.bf16.msra.mxu0 %v696
        %706 = vmatmul.bf16.gmra.mxu0 %v693
        %v707 = vpop.f32.mrf.mxu0
        %v708 = vadd.f32 0.0, %v707
        %v709 = vpop.f32.mrf.mxu0
        %710 = vdwg.mxu0
        %v711 = vpack.c.bf16 %v708, %v708
        %v712 = vld [vmem:[%s4 + $0x4] sm:$0xf]
        %v714 = vsel %vm564, %v711, 0
        %v717 = vsel %vm618, %v712, 0
        %719 = vmatpush.bf16.msra.mxu0 0
        %720 = vmatpush.bf16.msra.mxu0 0
        %721 = vmatpush.bf16.msra.mxu0 0
        %722 = vmatpush.bf16.msra.mxu0 0
        %723 = vmatpush.bf16.msra.mxu0 0
        %724 = vmatpush.bf16.msra.mxu0 0
        %725 = vmatpush.bf16.msra.mxu0 0
        %726 = vmatpush.bf16.msra.mxu0 %v717
        %727 = vmatmul.bf16.gmra.mxu0 %v714
        %v728 = vpop.f32.mrf.mxu0
        %v729 = vadd.f32 0.0, %v728
        %v730 = vpop.f32.mrf.mxu0
        %731 = vdwg.mxu0
        %v733 = vsel %vm564, %v635, 0
        %v736 = vsel %vm618, %v636, 0
        %738 = vmatpush.bf16.msra.mxu0 0
        %739 = vmatpush.bf16.msra.mxu0 0
        %740 = vmatpush.bf16.msra.mxu0 0
        %741 = vmatpush.bf16.msra.mxu0 0
        %742 = vmatpush.bf16.msra.mxu0 0
        %743 = vmatpush.bf16.msra.mxu0 0
        %744 = vmatpush.bf16.msra.mxu0 0
        %745 = vmatpush.bf16.msra.mxu0 %v736
        %746 = vmatmul.bf16.gmra.mxu0 %v733
        %v747 = vpop.f32.mrf.mxu0
        %v748 = vadd.f32 %v729, %v747
        %v749 = vpop.f32.mrf.mxu0
        %750 = vdwg.mxu0
        %751 = vrot.lane.b32.xlu0 %v639, 112
        %v752 = vpop.permute.xlu0 %751
        %753 = vrot.lane.b32.xlu0 %v561, 80
        %v754 = vpop.permute.xlu0 %753
        %v756 = vsel %vm564, %v752, 0
        %v759 = vsel %vm564, %v754, 0
        %761 = vmatpush.bf16.xpose.msra.mxu0 0
        %762 = vmatpush.bf16.xpose.msra.mxu0 0
        %763 = vmatpush.bf16.xpose.msra.mxu0 0
        %764 = vmatpush.bf16.xpose.msra.mxu0 0
        %765 = vmatpush.bf16.xpose.msra.mxu0 0
        %766 = vmatpush.bf16.xpose.msra.mxu0 0
        %767 = vmatpush.bf16.xpose.msra.mxu0 0
        %768 = vmatpush.bf16.xpose.msra.mxu0 %v759
        %769 = vmatmul.bf16.gmra.mxu0 %v756
        %v770 = vpop.f32.mrf.mxu0
        %v771 = vadd.f32 0.0, %v770
        %v772 = vpop.f32.mrf.mxu0
        %773 = vdwg.mxu0
        %v774 = vmul.f32 %v771, 0.35355338
        %v775 = vsel %vm586, -1e+09, %v774
        %v776 = vsel %vm564, %v775, -inf
        %777 = vmax.xlane.f32.xlu0 %v776
        %v778 = vpop.xlane.xlu0 %777
        %v779 = vsub.f32 %v775, %v778
        %v780 = vmul.f32 %v779, 1.442695
        %v781 = vpow.pop %v780
        %v782 = vsel %vm564, %v781, 0.0
        %783 = vadd.xlane.f32.xlu0 %v782
        %v784 = vpop.xlane.xlu0 %783
        %v785 = vrcp.pop %v784
        %v786 = vmul.f32 %v784, %v785
        %v787 = vsub.f32 1.0, %v786
        %v788 = vmul.f32 %v785, %v787
        %v789 = vadd.f32 %v785, %v788
        %vm790 = vweird.f32 %v784
        %vm791 = vweird.f32 %v785
        %vm792 = vmor %vm790, %vm791
        %v793 = vsel %vm792, %v785, %v789
        %v794 = vand.u32 2147483647, %v784
        %vm795 = vcmp.eq.f32.partialorder %v794, 8.507059e+37
        %v796 = vand.u32 %v784, 2147483648
        %v797 = vor.u32 1.1754944e-38, %v796
        %v798 = vsel %vm795, %v797, %v793
        %v799 = vmul.f32 %v781, %v798
        %v800 = vpack.c.bf16 %v799, %v799
        %801 = vrot.lane.b32.xlu0 %v561, 48
        %v802 = vpop.permute.xlu0 %801
        %v804 = vsel %vm564, %v800, 0
        %v807 = vsel %vm618, %v802, 0
        %809 = vmatpush.bf16.msra.mxu0 0
        %810 = vmatpush.bf16.msra.mxu0 0
        %811 = vmatpush.bf16.msra.mxu0 0
        %812 = vmatpush.bf16.msra.mxu0 0
        %813 = vmatpush.bf16.msra.mxu0 0
        %814 = vmatpush.bf16.msra.mxu0 0
        %815 = vmatpush.bf16.msra.mxu0 0
        %816 = vmatpush.bf16.msra.mxu0 %v807
        %817 = vmatmul.bf16.gmra.mxu0 %v804
        %v818 = vpop.f32.mrf.mxu0
        %v819 = vadd.f32 0.0, %v818
        %v820 = vpop.f32.mrf.mxu0
        %821 = vdwg.mxu0
        %v822 = vpack.c.bf16 %v819, %v819
        %v823 = vld [vmem:[%s4 + $0x8] sm:$0xf]
        %v825 = vsel %vm564, %v822, 0
        %v828 = vsel %vm618, %v823, 0
        %830 = vmatpush.bf16.msra.mxu0 0
        %831 = vmatpush.bf16.msra.mxu0 0
        %832 = vmatpush.bf16.msra.mxu0 0
        %833 = vmatpush.bf16.msra.mxu0 0
        %834 = vmatpush.bf16.msra.mxu0 0
        %835 = vmatpush.bf16.msra.mxu0 0
        %836 = vmatpush.bf16.msra.mxu0 0
        %837 = vmatpush.bf16.msra.mxu0 %v828
        %838 = vmatmul.bf16.gmra.mxu0 %v825
        %v839 = vpop.f32.mrf.mxu0
        %v840 = vadd.f32 0.0, %v839
        %v841 = vpop.f32.mrf.mxu0
        %842 = vdwg.mxu0
        %v843 = vadd.f32 %v748, %v840
        %844 = vrot.lane.b32.xlu0 %v639, 104
        %v845 = vpop.permute.xlu0 %844
        %846 = vrot.lane.b32.xlu0 %v561, 72
        %v847 = vpop.permute.xlu0 %846
        %v849 = vsel %vm564, %v845, 0
        %v852 = vsel %vm564, %v847, 0
        %854 = vmatpush.bf16.xpose.msra.mxu0 0
        %855 = vmatpush.bf16.xpose.msra.mxu0 0
        %856 = vmatpush.bf16.xpose.msra.mxu0 0
        %857 = vmatpush.bf16.xpose.msra.mxu0 0
        %858 = vmatpush.bf16.xpose.msra.mxu0 0
        %859 = vmatpush.bf16.xpose.msra.mxu0 0
        %860 = vmatpush.bf16.xpose.msra.mxu0 0
        %861 = vmatpush.bf16.xpose.msra.mxu0 %v852
        %862 = vmatmul.bf16.gmra.mxu0 %v849
        %v863 = vpop.f32.mrf.mxu0
        %v864 = vadd.f32 0.0, %v863
        %v865 = vpop.f32.mrf.mxu0
        %866 = vdwg.mxu0
        %v867 = vmul.f32 %v864, 0.35355338
        %v868 = vsel %vm586, -1e+09, %v867
        %v869 = vsel %vm564, %v868, -inf
        %870 = vmax.xlane.f32.xlu0 %v869
        %v871 = vpop.xlane.xlu0 %870
        %v872 = vsub.f32 %v868, %v871
        %v873 = vmul.f32 %v872, 1.442695
        %v874 = vpow.pop %v873
        %v875 = vsel %vm564, %v874, 0.0
        %876 = vadd.xlane.f32.xlu0 %v875
        %v877 = vpop.xlane.xlu0 %876
        %v878 = vrcp.pop %v877
        %v879 = vmul.f32 %v877, %v878
        %v880 = vsub.f32 1.0, %v879
        %v881 = vmul.f32 %v878, %v880
        %v882 = vadd.f32 %v878, %v881
        %vm883 = vweird.f32 %v877
        %vm884 = vweird.f32 %v878
        %vm885 = vmor %vm883, %vm884
        %v886 = vsel %vm885, %v878, %v882
        %v887 = vand.u32 2147483647, %v877
        %vm888 = vcmp.eq.f32.partialorder %v887, 8.507059e+37
        %v889 = vand.u32 %v877, 2147483648
        %v890 = vor.u32 1.1754944e-38, %v889
        %v891 = vsel %vm888, %v890, %v886
        %v892 = vmul.f32 %v874, %v891
        %v893 = vpack.c.bf16 %v892, %v892
        %894 = vrot.lane.b32.xlu0 %v561, 40
        %v895 = vpop.permute.xlu0 %894
        %v897 = vsel %vm564, %v893, 0
        %v900 = vsel %vm618, %v895, 0
        %902 = vmatpush.bf16.msra.mxu0 0
        %903 = vmatpush.bf16.msra.mxu0 0
        %904 = vmatpush.bf16.msra.mxu0 0
        %905 = vmatpush.bf16.msra.mxu0 0
        %906 = vmatpush.bf16.msra.mxu0 0
        %907 = vmatpush.bf16.msra.mxu0 0
        %908 = vmatpush.bf16.msra.mxu0 0
        %909 = vmatpush.bf16.msra.mxu0 %v900
        %910 = vmatmul.bf16.gmra.mxu0 %v897
        %v911 = vpop.f32.mrf.mxu0
        %v912 = vadd.f32 0.0, %v911
        %v913 = vpop.f32.mrf.mxu0
        %914 = vdwg.mxu0
        %v915 = vpack.c.bf16 %v912, %v912
        %v916 = vld [vmem:[%s4 + $0xc] sm:$0xf]
        %v918 = vsel %vm564, %v915, 0
        %v921 = vsel %vm618, %v916, 0
        %923 = vmatpush.bf16.msra.mxu0 0
        %924 = vmatpush.bf16.msra.mxu0 0
        %925 = vmatpush.bf16.msra.mxu0 0
        %926 = vmatpush.bf16.msra.mxu0 0
        %927 = vmatpush.bf16.msra.mxu0 0
        %928 = vmatpush.bf16.msra.mxu0 0
        %929 = vmatpush.bf16.msra.mxu0 0
        %930 = vmatpush.bf16.msra.mxu0 %v921
        %931 = vmatmul.bf16.gmra.mxu0 %v918
        %v932 = vpop.f32.mrf.mxu0
        %v933 = vadd.f32 0.0, %v932
        %v934 = vpop.f32.mrf.mxu0
        %935 = vdwg.mxu0
        %v936 = vadd.f32 %v843, %v933
        %v937 = vadd.f32 %v547, %v936
        %v938 = vld [vmem:[%s5] sm:$0x1]
        %v940 = vperm.slane %v938, 0
        %v942 = vadd.f32 %v937, %v940
        %vm943 = vcmask 261120
        %v944 = vsel %vm943, %v942, 0.0
        %945 = vadd.xlane.f32.xlu0 %v944
        %v946 = vpop.xlane.xlu0 %945
        %v947 = vrcp.pop 32.0
        %v948 = vmul.f32 32.0, %v947
        %v949 = vsub.f32 1.0, %v948
        %v950 = vmul.f32 %v947, %v949
        %v951 = vadd.f32 %v947, %v950
        %vm952 = vweird.f32 %v947
        %v953 = vsel %vm952, %v947, %v951
        %v954 = vmul.f32 %v946, %v953
        %v955 = vsub.f32 %v942, %v954
        %v956 = vmul.f32 %v955, %v955
        %v957 = vsel %vm943, %v956, 0.0
        %958 = vadd.xlane.f32.xlu0 %v957
        %v959 = vpop.xlane.xlu0 %958
        %v960 = vmul.f32 %v959, %v953
        %v961 = vadd.f32 %v960, 1e-05
        %v962 = vrsqrt.pop %v961
        %v963 = vmul.f32 %v962, %v961
        %v964 = vmul.f32 %v963, %v962
        %v965 = vmul.f32 0.5, %v964
        %v966 = vsub.f32 1.5, %v965
        %v967 = vmul.f32 %v962, %v966
        %vm968 = vweird.f32 %v961
        %vm969 = vweird.f32 %v962
        %vm970 = vmor %vm968, %vm969
        %v971 = vsel %vm970, %v962, %v967
        %v972 = vmul.f32 %v955, %v971
        %v973 = vld [vmem:[%s8] sm:$0x1]
        %v975 = vperm.slane %v973, 0
        %v977 = vmul.f32 %v972, %v975
        %v978 = vld [vmem:[%s9] sm:$0x1]
        %v980 = vperm.slane %v978, 0
        %v982 = vadd.f32 %v977, %v980
        %v983 = vpack.c.bf16 %v982, %v982
        %v984 = vld [vmem:[%s10] sm:$0xf]
        %v985 = vld [vmem:[%s10 + $0x4] sm:$0xf]
        %v986 = vld [vmem:[%s10 + $0x8] sm:$0xf]
        %v987 = vld [vmem:[%s10 + $0xc] sm:$0xf]
        %v988 = vld [vmem:[%s11] sm:$0x1]
        %v990 = vperm.slane %v988, 0
        %v996 = vunpack.c.l.b16 %v984
        %v997 = vunpack.c.l.b16 %v985
        %v998 = vunpack.c.l.b16 %v986
        %v999 = vunpack.c.l.b16 %v987
        %v1000 = vpack.c.b16 %v997, %v996
        %v1001 = vpack.c.b16 %v999, %v998
        %v1005 = vsel %vm943, %v983, 0
        %1007 = vmatpush.bf16.msra.mxu0 0
        %1008 = vmatpush.bf16.msra.mxu0 0
        %1009 = vmatpush.bf16.msra.mxu0 0
        %1010 = vmatpush.bf16.msra.mxu0 0
        %1011 = vmatpush.bf16.msra.mxu0 0
        %1012 = vmatpush.bf16.msra.mxu0 0
        %1013 = vmatpush.bf16.msra.mxu0 %v1001
        %1014 = vmatpush.bf16.msra.mxu0 %v1000
        %1015 = vmatmul.bf16.gmra.mxu0 %v1005
        %v1016 = vpop.f32.mrf.mxu0
        %v1017 = vadd.f32 %v990, %v1016
        %v1018 = vpop.f32.mrf.mxu0
        %1019 = vdwg.mxu0
        %v1020 = vmax.f32 %v1017, 0.0
        %v1021 = vpack.c.bf16 %v1020, %v1020
        %v1022 = vld [vmem:[%s12] sm:$0xf]
        %v1023 = vld [vmem:[%s12 + $0x4] sm:$0xf]
        %v1024 = vld [vmem:[%s12 + $0x8] sm:$0xf]
        %v1025 = vld [vmem:[%s12 + $0xc] sm:$0xf]
        %v1026 = vld [vmem:[%s12 + $0x10] sm:$0xf]
        %v1027 = vld [vmem:[%s12 + $0x14] sm:$0xf]
        %v1028 = vld [vmem:[%s12 + $0x18] sm:$0xf]
        %v1029 = vld [vmem:[%s12 + $0x1c] sm:$0xf]
        %v1030 = vld [vmem:[%s13] sm:$0x1]
        %v1032 = vperm.slane %v1030, 0
        %v1042 = vunpack.c.l.b16 %v1022
        %v1043 = vunpack.c.l.b16 %v1023
        %v1044 = vunpack.c.l.b16 %v1024
        %v1045 = vunpack.c.l.b16 %v1025
        %v1046 = vunpack.c.l.b16 %v1026
        %v1047 = vunpack.c.l.b16 %v1027
        %v1048 = vunpack.c.l.b16 %v1028
        %v1049 = vunpack.c.l.b16 %v1029
        %v1050 = vpack.c.b16 %v1043, %v1042
        %v1051 = vpack.c.b16 %v1045, %v1044
        %v1052 = vpack.c.b16 %v1047, %v1046
        %v1053 = vpack.c.b16 %v1049, %v1048
        %vm1058 = vcmask 523264
        %v1060 = vsel %vm1058, %v1021, 0
        %1062 = vmatpush.bf16.msra.mxu0 0
        %1063 = vmatpush.bf16.msra.mxu0 0
        %1064 = vmatpush.bf16.msra.mxu0 0
        %1065 = vmatpush.bf16.msra.mxu0 0
        %1066 = vmatpush.bf16.msra.mxu0 %v1053
        %1067 = vmatpush.bf16.msra.mxu0 %v1052
        %1068 = vmatpush.bf16.msra.mxu0 %v1051
        %1069 = vmatpush.bf16.msra.mxu0 %v1050
        %1070 = vmatmul.bf16.gmra.mxu0 %v1060
        %v1071 = vpop.f32.mrf.mxu0
        %v1072 = vadd.f32 %v1032, %v1071
        %v1073 = vpop.f32.mrf.mxu0
        %1074 = vdwg.mxu0
        %v1075 = vadd.f32 %v942, %v1072
        %1076 = vst.msk [vmem:[%s454] sm:$0xff] %vm943, %v1075
        %s1077 = sand.u32 %s336, 1
        %s1078 = scalar_lea.sflag [#allocation6], %s1077
        %s1079 = sand.u32 %s336, 1
        %s1080 = smul.addr %s1079, 8
        %s1081 = scalar_lea.vmem [#allocation5], %s1080
        // Predicated region
        $region77: #{transducer_audio_encoder.5} parent=71 // pred_check
          %p1082 = pneg %p346
        $region78: #{transducer_audio_encoder.5} parent=71 // pred_check_branch
          %1084 = sbr.rel (%p1082) target = $region80
        $region79: #{transducer_audio_encoder.5} parent=71 // pred_region
          %1086 = vsyncadd %s1078, 0
          %s1087 = sadd.s32 %s41, %s40
          %s1088 = smul.addr %s1087, 8
          %s1089 = scalar_lea.hbm %s14, %s1088
          %s1091 = sshll.u32 %s1081, 4
          %s1092 = int_to_ptr.vmem [resolvable:$true] %s1091
          %s1093 = sshll.u32 %s1089, 4
          %s1094 = int_to_ptr.hbm [resolvable:$true] %s1093
          %1096 = dma.vmem_to_hbm [thread:$0]  %s1092, 128, %s1094, %s1078
        $region80: #{transducer_audio_encoder.5} parent=71 // pred_fallthru
          _
      $region72: #{transducer_audio_encoder.5} parent=5 // pred_fallthru
        _
      %p1097 = scmp.le.s32.totalorder 2, %s31
      // Predicated region
      $region81: #{transducer_audio_encoder.5} parent=5 // pred_check
        %p1098 = pneg %p1097
      $region82: #{transducer_audio_encoder.5} parent=5 // pred_check_branch
        %1100 = sbr.rel (%p1098) target = $region84
      $region83: #{transducer_audio_encoder.5} parent=5 // pred_region
        %s1101 = ssub.s32 %s31, 2
        // Predicated region
        $region85: #{transducer_audio_encoder.5} parent=83 // pred_check
          %p1102 = pneg %p352
        $region86: #{transducer_audio_encoder.5} parent=83 // pred_check_branch
          %1104 = sbr.rel (%p1102) target = $region88
        $region87: #{transducer_audio_encoder.5} parent=83 // pred_region
          %s1105 = sand.u32 %s337, 1
          %s1106 = scalar_lea.sflag [#allocation6], %s1105
          %s1107 = sand.u32 %s337, 1
          %s1108 = smul.addr %s1107, 8
          %s1109 = scalar_lea.vmem [#allocation5], %s1108
          %1111 = dma.done %s1106, 128
        $region88: #{transducer_audio_encoder.5} parent=83 // pred_fallthru
          _
      $region84: #{transducer_audio_encoder.5} parent=5 // pred_fallthru
        _
    $region6: #{transducer_audio_encoder.5} parent=1 // loop_footer
      %s35 = sadd.s32 1, %s31
    $region7: #{transducer_audio_encoder.5} parent=1 // loop_footer_branch
      %30 = sbr.rel target = $region3
    $region8: #{transducer_audio_encoder.5} parent=1 // loop_exit
      _
    %1112 = vsyncpa [#allocation6], 1
    %s1113 = scalar_lea.sflag [#allocation6], 1
    %1114 = vsyncpa %s1113, 1

</llo_original>
